<compile_context>
chip_gen: v7x
topology: tpu7x:2x2x1
jax: 0.10.0
libtpu: 0.0.40
codegen_flags: <defaults>
</compile_context>

<pallas_src>
import functools

import jax
import jax.numpy as jnp
from jax.experimental import pallas as pl
from jax.experimental.pallas import tpu as pltpu


def _lstm_seq_kernel(x_ref,                       # (T, E)   pre-gathered embeddings
                     h0_ref, c0_ref,              # (L, H)   initial state (flattened)
                     wih0_ref, whh0_ref,          # (E, 4H), (H, 4H)   layer-0 weights
                     wihr_ref, whhr_ref,          # (Lr, H, 4H) x2     layers 1.. weights
                     b_ref,                       # (L, 4H)  combined b_ih + b_hh
                     fcw_ref, fcb_ref,            # (H, E), (1, E)
                     logits_ref,                  # (T, E)
                     h_out_ref, c_out_ref,        # (L, H)
                     htop_scr,                    # (T, H)   VMEM scratch
                     *, n_layers, hidden_size, seq_len):
    H = hidden_size
    L = n_layers
    T = seq_len

    # Load the recurrent state once; it is carried as values (vregs) through
    # the fully-unrolled time loop below — no per-step VMEM round trips.
    h = [h0_ref[pl.ds(l, 1), :] for l in range(L)]   # each (1, H)
    c = [c0_ref[pl.ds(l, 1), :] for l in range(L)]

    for t in range(T):                               # static, unrolled
        x = x_ref[pl.ds(t, 1), :]                    # (1, E)
        for l in range(L):                           # static, small
            if l == 0:
                gx = jnp.dot(x, wih0_ref[...], preferred_element_type=jnp.float32)
                gh = jnp.dot(h[0], whh0_ref[...], preferred_element_type=jnp.float32)
            else:
                gx = jnp.dot(x, wihr_ref[l - 1], preferred_element_type=jnp.float32)
                gh = jnp.dot(h[l], whhr_ref[l - 1], preferred_element_type=jnp.float32)
            gates = gx + gh + b_ref[pl.ds(l, 1), :]  # (1, 4H), torch order [i,f,g,o]
            # Two full-vector transcendentals (EUP) instead of four per-gate ones.
            sig = jax.nn.sigmoid(gates)
            th = jnp.tanh(gates)
            i_g = sig[:, 0 * H:1 * H]
            f_g = sig[:, 1 * H:2 * H]
            g_g = th[:, 2 * H:3 * H]
            o_g = sig[:, 3 * H:4 * H]
            c[l] = f_g * c[l] + i_g * g_g
            h[l] = o_g * jnp.tanh(c[l])
            x = h[l]
        htop_scr[pl.ds(t, 1), :] = x                 # stash top-layer h for batched FC

    # Batched FC across time: one (T,H)@(H,E) matmul, one (T,E) store.
    logits_ref[...] = (jnp.dot(htop_scr[...], fcw_ref[...],
                               preferred_element_type=jnp.float32)
                       + fcb_ref[...])

    # Publish the final recurrent state once.
    h_out_ref[...] = jnp.concatenate(h, axis=0)
    c_out_ref[...] = jnp.concatenate(c, axis=0)


def lstm_forward(tokens, emb, h0, c0,
                 w_ih_l0, w_hh_l0, w_ih_r, w_hh_r, bias,
                 fc_w, fc_b,
                 *, n_layers, hidden_size, embedding_size):
    """Multi-token forward: the module's single-token forward applied T times,
    threading (hidden, cell) inside one kernel invocation.

    Returns (logits (T, E), hidden (L, 1, H), cell (L, 1, H)).
    With T == 1 this is exactly the PyTorch module's forward().
    """
    T = tokens.shape[0]
    L = n_layers
    H = hidden_size
    E = embedding_size
    Lr = w_ih_r.shape[0]

    # Embedding gather outside the latency-critical recurrence (cheap XLA op).
    x_all = jnp.take(emb, tokens, axis=0)            # (T, E)

    # Flatten (L, 1, H) -> (L, H) so state blocks don't carry a padded middle dim.
    h0_flat = h0.reshape(L, H)
    c0_flat = c0.reshape(L, H)

    kernel = functools.partial(_lstm_seq_kernel,
                               n_layers=L, hidden_size=H, seq_len=T)

    out_shapes = (
        jax.ShapeDtypeStruct((T, E), jnp.float32),
        jax.ShapeDtypeStruct((L, H), jnp.float32),
        jax.ShapeDtypeStruct((L, H), jnp.float32),
    )

    logits, h_fin, c_fin = pl.pallas_call(
        kernel,
        out_shape=out_shapes,
        grid=(1,),                                   # single invocation
        in_specs=[
            pl.BlockSpec((T, E), lambda i: (0, 0)),              # x_all
            pl.BlockSpec((L, H), lambda i: (0, 0)),              # h0
            pl.BlockSpec((L, H), lambda i: (0, 0)),              # c0
            pl.BlockSpec((E, 4 * H), lambda i: (0, 0)),          # layer-0 W_ih
            pl.BlockSpec((H, 4 * H), lambda i: (0, 0)),          # layer-0 W_hh
            pl.BlockSpec((Lr, H, 4 * H), lambda i: (0, 0, 0)),   # layers 1.. W_ih
            pl.BlockSpec((Lr, H, 4 * H), lambda i: (0, 0, 0)),   # layers 1.. W_hh
            pl.BlockSpec((L, 4 * H), lambda i: (0, 0)),          # biases (b_ih + b_hh)
            pl.BlockSpec((H, E), lambda i: (0, 0)),              # fc weight
            pl.BlockSpec((1, E), lambda i: (0, 0)),              # fc bias
        ],
        out_specs=[
            pl.BlockSpec((T, E), lambda i: (0, 0)),              # logits (one store)
            pl.BlockSpec((L, H), lambda i: (0, 0)),              # final hidden
            pl.BlockSpec((L, H), lambda i: (0, 0)),              # final cell
        ],
        scratch_shapes=[pltpu.VMEM((T, H), jnp.float32)],        # top-layer h per step
        compiler_params=pltpu.CompilerParams(
            dimension_semantics=("arbitrary",)),
    )(x_all, h0_flat, c0_flat, w_ih_l0, w_hh_l0, w_ih_r, w_hh_r, bias,
      fc_w, fc_b)

    return logits, h_fin.reshape(L, 1, H), c_fin.reshape(L, 1, H)


def lstm_reference(tokens, emb, h0, c0,
                   w_ih_l0, w_hh_l0, w_ih_r, w_hh_r, bias,
                   fc_w, fc_b,
                   *, n_layers, hidden_size, embedding_size):
    """Pure-JAX reference for correctness checking."""
    H = hidden_size
    h = [h0[l] for l in range(n_layers)]
    c = [c0[l] for l in range(n_layers)]
    outs = []
    for s in range(tokens.shape[0]):
        x = emb[tokens[s]][None, :]
        for l in range(n_layers):
            w_ih = w_ih_l0 if l == 0 else w_ih_r[l - 1]
            w_hh = w_hh_l0 if l == 0 else w_hh_r[l - 1]
            gates = x @ w_ih + h[l] @ w_hh + bias[l][None, :]
            i = jax.nn.sigmoid(gates[:, 0 * H:1 * H])
            f = jax.nn.sigmoid(gates[:, 1 * H:2 * H])
            g = jnp.tanh(gates[:, 2 * H:3 * H])
            o = jax.nn.sigmoid(gates[:, 3 * H:4 * H])
            c[l] = f * c[l] + i * g
            h[l] = o * jnp.tanh(c[l])
            x = h[l]
        outs.append(x @ fc_w + fc_b)
    return jnp.concatenate(outs, axis=0), jnp.stack(h), jnp.stack(c)


if __name__ == "__main__":
    num_embeddings = 65
    embedding_size = 32
    hidden_size = 32
    n_layers = 2
    seq_len = 8

    key = jax.random.PRNGKey(0)
    ks = jax.random.split(key, 13)
    k_scale = 1.0 / jnp.sqrt(hidden_size)

    def unif(k, shape):
        return jax.random.uniform(k, shape, jnp.float32, -k_scale, k_scale)

    # Parameters (deterministic, PyTorch-default-style init); weights stored
    # transposed vs. torch ((D, 4H) form), gate order [i, f, g, o].
    emb = jax.random.normal(ks[0], (num_embeddings, embedding_size), jnp.float32)

    w_ih_l0 = unif(ks[1], (embedding_size, 4 * hidden_size))
    w_hh_l0 = unif(ks[2], (hidden_size, 4 * hidden_size))
    b_l0 = unif(ks[3], (4 * hidden_size,)) + unif(ks[4], (4 * hidden_size,))

    n_rest = max(n_layers - 1, 1)                       # dummy slot if n_layers == 1
    w_ih_r = unif(ks[5], (n_rest, hidden_size, 4 * hidden_size))
    w_hh_r = unif(ks[6], (n_rest, hidden_size, 4 * hidden_size))
    b_r = (unif(ks[7], (n_rest, 4 * hidden_size))
           + unif(ks[8], (n_rest, 4 * hidden_size)))

    if n_layers > 1:
        bias = jnp.concatenate([b_l0[None, :], b_r[:n_layers - 1]], axis=0)  # (L, 4H)
    else:
        bias = b_l0[None, :]

    fc_w = unif(ks[9], (hidden_size, embedding_size))   # stored transposed: (H, E)
    fc_b = unif(ks[10], (1, embedding_size))

    tokens = jax.random.randint(ks[11], (seq_len,), 0, num_embeddings,
                                dtype=jnp.int32)
    h0 = jnp.zeros((n_layers, 1, hidden_size), jnp.float32)   # init_hidden()
    c0 = jnp.zeros((n_layers, 1, hidden_size), jnp.float32)

    logits, hidden, cell = lstm_forward(
        tokens, emb, h0, c0, w_ih_l0, w_hh_l0, w_ih_r, w_hh_r, bias,
        fc_w, fc_b,
        n_layers=n_layers, hidden_size=hidden_size,
        embedding_size=embedding_size)
    jax.block_until_ready((logits, hidden, cell))

    # Correctness check against pure-JAX reference.
    l_ref, h_ref, c_ref = lstm_reference(
        tokens, emb, h0, c0, w_ih_l0, w_hh_l0, w_ih_r, w_hh_r, bias,
        fc_w, fc_b,
        n_layers=n_layers, hidden_size=hidden_size,
        embedding_size=embedding_size)

    assert logits.shape == (seq_len, embedding_size)
    assert hidden.shape == (n_layers, 1, hidden_size)
    assert cell.shape == (n_layers, 1, hidden_size)
    assert jnp.allclose(logits, l_ref, atol=1e-4)
    assert jnp.allclose(hidden, h_ref, atol=1e-4)
    assert jnp.allclose(cell, c_ref, atol=1e-4)

    print("KERNEL_OK")
</pallas_src>

<mosaic_0001>
module attributes {stable_mosaic.version = 11 : i64} {
  func.func @_lstm_seq_kernel(%arg0: i32, %arg1: memref<8x32xf32, #tpu.memory_space<vmem>>, %arg2: memref<2x32xf32, #tpu.memory_space<vmem>>, %arg3: memref<2x32xf32, #tpu.memory_space<vmem>>, %arg4: memref<32x128xf32, #tpu.memory_space<vmem>>, %arg5: memref<32x128xf32, #tpu.memory_space<vmem>>, %arg6: memref<1x32x128xf32, #tpu.memory_space<vmem>>, %arg7: memref<1x32x128xf32, #tpu.memory_space<vmem>>, %arg8: memref<2x128xf32, #tpu.memory_space<vmem>>, %arg9: memref<32x32xf32, #tpu.memory_space<vmem>>, %arg10: memref<1x32xf32, #tpu.memory_space<vmem>>, %arg11: memref<8x32xf32, #tpu.memory_space<vmem>>, %arg12: memref<2x32xf32, #tpu.memory_space<vmem>>, %arg13: memref<2x32xf32, #tpu.memory_space<vmem>>, %arg14: memref<8x32xf32, #tpu.memory_space<vmem>>) attributes {dimension_semantics = [#tpu.dimension_semantics<arbitrary>], iteration_bounds = array<i64: 1>, scalar_prefetch = 0 : i64, scratch_operands = 1 : i64, tpu.core_type = #tpu.core_type<tc>, window_params = [{pipeline_mode = #tpu.pipeline_mode<synchronous>, transform_indices = @transform_0, window_bounds = array<i64: 8, 32>}, {pipeline_mode = #tpu.pipeline_mode<synchronous>, transform_indices = @transform_1, window_bounds = array<i64: 2, 32>}, {pipeline_mode = #tpu.pipeline_mode<synchronous>, transform_indices = @transform_2, window_bounds = array<i64: 2, 32>}, {pipeline_mode = #tpu.pipeline_mode<synchronous>, transform_indices = @transform_3, window_bounds = array<i64: 32, 128>}, {pipeline_mode = #tpu.pipeline_mode<synchronous>, transform_indices = @transform_4, window_bounds = array<i64: 32, 128>}, {pipeline_mode = #tpu.pipeline_mode<synchronous>, transform_indices = @transform_5, window_bounds = array<i64: 1, 32, 128>}, {pipeline_mode = #tpu.pipeline_mode<synchronous>, transform_indices = @transform_6, window_bounds = array<i64: 1, 32, 128>}, {pipeline_mode = #tpu.pipeline_mode<synchronous>, transform_indices = @transform_7, window_bounds = array<i64: 2, 128>}, {pipeline_mode = #tpu.pipeline_mode<synchronous>, transform_indices = @transform_8, window_bounds = array<i64: 32, 32>}, {pipeline_mode = #tpu.pipeline_mode<synchronous>, transform_indices = @transform_9, window_bounds = array<i64: 1, 32>}, {pipeline_mode = #tpu.pipeline_mode<synchronous>, transform_indices = @transform_10, window_bounds = array<i64: 8, 32>}, {pipeline_mode = #tpu.pipeline_mode<synchronous>, transform_indices = @transform_11, window_bounds = array<i64: 2, 32>}, {pipeline_mode = #tpu.pipeline_mode<synchronous>, transform_indices = @transform_12, window_bounds = array<i64: 2, 32>}]} {
    %c0 = arith.constant 0 : index
    %c0_0 = arith.constant 0 : index
    %0 = vector.load %arg2[%c0, %c0_0] : memref<2x32xf32, #tpu.memory_space<vmem>>, vector<1x32xf32>
    %c1 = arith.constant 1 : index
    %c0_1 = arith.constant 0 : index
    %1 = vector.load %arg2[%c1, %c0_1] : memref<2x32xf32, #tpu.memory_space<vmem>>, vector<1x32xf32>
    %c0_2 = arith.constant 0 : index
    %c0_3 = arith.constant 0 : index
    %2 = vector.load %arg3[%c0_2, %c0_3] : memref<2x32xf32, #tpu.memory_space<vmem>>, vector<1x32xf32>
    %c1_4 = arith.constant 1 : index
    %c0_5 = arith.constant 0 : index
    %3 = vector.load %arg3[%c1_4, %c0_5] : memref<2x32xf32, #tpu.memory_space<vmem>>, vector<1x32xf32>
    %c0_6 = arith.constant 0 : index
    %c0_7 = arith.constant 0 : index
    %4 = vector.load %arg1[%c0_6, %c0_7] : memref<8x32xf32, #tpu.memory_space<vmem>>, vector<1x32xf32>
    %c0_8 = arith.constant 0 : index
    %c0_9 = arith.constant 0 : index
    %5 = vector.load %arg4[%c0_8, %c0_9] : memref<32x128xf32, #tpu.memory_space<vmem>>, vector<32x128xf32>
    %cst = arith.constant dense<0.000000e+00> : vector<1x128xf32>
    %6 = tpu.matmul %4, %5, %cst {dimension_numbers = #tpu.dot_dimension_numbers<[1], [0], [0], [1], [0, 0, 1, 1], [], []>} : vector<1x32xf32>, vector<32x128xf32>, vector<1x128xf32> -> vector<1x128xf32>
    %c0_10 = arith.constant 0 : index
    %c0_11 = arith.constant 0 : index
    %7 = vector.load %arg5[%c0_10, %c0_11] : memref<32x128xf32, #tpu.memory_space<vmem>>, vector<32x128xf32>
    %cst_12 = arith.constant dense<0.000000e+00> : vector<1x128xf32>
    %8 = tpu.matmul %0, %7, %cst_12 {dimension_numbers = #tpu.dot_dimension_numbers<[1], [0], [0], [1], [0, 0, 1, 1], [], []>} : vector<1x32xf32>, vector<32x128xf32>, vector<1x128xf32> -> vector<1x128xf32>
    %9 = arith.addf %6, %8 : vector<1x128xf32>
    %c0_13 = arith.constant 0 : index
    %c0_14 = arith.constant 0 : index
    %10 = vector.load %arg8[%c0_13, %c0_14] : memref<2x128xf32, #tpu.memory_space<vmem>>, vector<1x128xf32>
    %11 = arith.addf %9, %10 : vector<1x128xf32>
    %12 = arith.negf %11 : vector<1x128xf32>
    %13 = math.exp %12 : vector<1x128xf32>
    %cst_15 = arith.constant 1.000000e+00 : f32
    %14 = vector.broadcast %cst_15 : f32 to vector<1x128xf32>
    %15 = arith.addf %14, %13 : vector<1x128xf32>
    %16 = arith.divf %14, %15 : vector<1x128xf32>
    %17 = math.tanh %11 : vector<1x128xf32>
    %18 = vector.extract_strided_slice %16 {offsets = [0, 0], sizes = [1, 32], strides = [1, 1]} : vector<1x128xf32> to vector<1x32xf32>
    %19 = vector.extract_strided_slice %16 {offsets = [0, 32], sizes = [1, 32], strides = [1, 1]} : vector<1x128xf32> to vector<1x32xf32>
    %20 = vector.extract_strided_slice %17 {offsets = [0, 64], sizes = [1, 32], strides = [1, 1]} : vector<1x128xf32> to vector<1x32xf32>
    %21 = vector.extract_strided_slice %16 {offsets = [0, 96], sizes = [1, 32], strides = [1, 1]} : vector<1x128xf32> to vector<1x32xf32>
    %22 = arith.mulf %19, %2 : vector<1x32xf32>
    %23 = arith.mulf %18, %20 : vector<1x32xf32>
    %24 = arith.addf %22, %23 : vector<1x32xf32>
    %25 = math.tanh %24 : vector<1x32xf32>
    %26 = arith.mulf %21, %25 : vector<1x32xf32>
    %c0_16 = arith.constant 0 : index
    %c0_17 = arith.constant 0 : index
    %c0_18 = arith.constant 0 : index
    %27 = vector.load %arg6[%c0_16, %c0_17, %c0_18] : memref<1x32x128xf32, #tpu.memory_space<vmem>>, vector<1x32x128xf32>
    %28 = vector.shape_cast %27 : vector<1x32x128xf32> to vector<32x128xf32>
    %cst_19 = arith.constant dense<0.000000e+00> : vector<1x128xf32>
    %29 = tpu.matmul %26, %28, %cst_19 {dimension_numbers = #tpu.dot_dimension_numbers<[1], [0], [0], [1], [0, 0, 1, 1], [], []>} : vector<1x32xf32>, vector<32x128xf32>, vector<1x128xf32> -> vector<1x128xf32>
    %c0_20 = arith.constant 0 : index
    %c0_21 = arith.constant 0 : index
    %c0_22 = arith.constant 0 : index
    %30 = vector.load %arg7[%c0_20, %c0_21, %c0_22] : memref<1x32x128xf32, #tpu.memory_space<vmem>>, vector<1x32x128xf32>
    %31 = vector.shape_cast %30 : vector<1x32x128xf32> to vector<32x128xf32>
    %cst_23 = arith.constant dense<0.000000e+00> : vector<1x128xf32>
    %32 = tpu.matmul %1, %31, %cst_23 {dimension_numbers = #tpu.dot_dimension_numbers<[1], [0], [0], [1], [0, 0, 1, 1], [], []>} : vector<1x32xf32>, vector<32x128xf32>, vector<1x128xf32> -> vector<1x128xf32>
    %33 = arith.addf %29, %32 : vector<1x128xf32>
    %c1_24 = arith.constant 1 : index
    %c0_25 = arith.constant 0 : index
    %34 = vector.load %arg8[%c1_24, %c0_25] : memref<2x128xf32, #tpu.memory_space<vmem>>, vector<1x128xf32>
    %35 = arith.addf %33, %34 : vector<1x128xf32>
    %36 = arith.negf %35 : vector<1x128xf32>
    %37 = math.exp %36 : vector<1x128xf32>
    %cst_26 = arith.constant 1.000000e+00 : f32
    %38 = vector.broadcast %cst_26 : f32 to vector<1x128xf32>
    %39 = arith.addf %38, %37 : vector<1x128xf32>
    %40 = arith.divf %38, %39 : vector<1x128xf32>
    %41 = math.tanh %35 : vector<1x128xf32>
    %42 = vector.extract_strided_slice %40 {offsets = [0, 0], sizes = [1, 32], strides = [1, 1]} : vector<1x128xf32> to vector<1x32xf32>
    %43 = vector.extract_strided_slice %40 {offsets = [0, 32], sizes = [1, 32], strides = [1, 1]} : vector<1x128xf32> to vector<1x32xf32>
    %44 = vector.extract_strided_slice %41 {offsets = [0, 64], sizes = [1, 32], strides = [1, 1]} : vector<1x128xf32> to vector<1x32xf32>
    %45 = vector.extract_strided_slice %40 {offsets = [0, 96], sizes = [1, 32], strides = [1, 1]} : vector<1x128xf32> to vector<1x32xf32>
    %46 = arith.mulf %43, %3 : vector<1x32xf32>
    %47 = arith.mulf %42, %44 : vector<1x32xf32>
    %48 = arith.addf %46, %47 : vector<1x32xf32>
    %49 = math.tanh %48 : vector<1x32xf32>
    %50 = arith.mulf %45, %49 : vector<1x32xf32>
    %c0_27 = arith.constant 0 : index
    %c0_28 = arith.constant 0 : index
    %51 = vector.load %arg14[%c0_27, %c0_28] : memref<8x32xf32, #tpu.memory_space<vmem>>, vector<1x32xf32>
    tpu.vector_store %arg14[%c0_27, %c0_28], %50 {strides = array<i32>} : memref<8x32xf32, #tpu.memory_space<vmem>>, vector<1x32xf32>,
    %c1_29 = arith.constant 1 : index
    %c0_30 = arith.constant 0 : index
    %52 = vector.load %arg1[%c1_29, %c0_30] : memref<8x32xf32, #tpu.memory_space<vmem>>, vector<1x32xf32>
    %c0_31 = arith.constant 0 : index
    %c0_32 = arith.constant 0 : index
    %53 = vector.load %arg4[%c0_31, %c0_32] : memref<32x128xf32, #tpu.memory_space<vmem>>, vector<32x128xf32>
    %cst_33 = arith.constant dense<0.000000e+00> : vector<1x128xf32>
    %54 = tpu.matmul %52, %53, %cst_33 {dimension_numbers = #tpu.dot_dimension_numbers<[1], [0], [0], [1], [0, 0, 1, 1], [], []>} : vector<1x32xf32>, vector<32x128xf32>, vector<1x128xf32> -> vector<1x128xf32>
    %c0_34 = arith.constant 0 : index
    %c0_35 = arith.constant 0 : index
    %55 = vector.load %arg5[%c0_34, %c0_35] : memref<32x128xf32, #tpu.memory_space<vmem>>, vector<32x128xf32>
    %cst_36 = arith.constant dense<0.000000e+00> : vector<1x128xf32>
    %56 = tpu.matmul %26, %55, %cst_36 {dimension_numbers = #tpu.dot_dimension_numbers<[1], [0], [0], [1], [0, 0, 1, 1], [], []>} : vector<1x32xf32>, vector<32x128xf32>, vector<1x128xf32> -> vector<1x128xf32>
    %57 = arith.addf %54, %56 : vector<1x128xf32>
    %c0_37 = arith.constant 0 : index
    %c0_38 = arith.constant 0 : index
    %58 = vector.load %arg8[%c0_37, %c0_38] : memref<2x128xf32, #tpu.memory_space<vmem>>, vector<1x128xf32>
    %59 = arith.addf %57, %58 : vector<1x128xf32>
    %60 = arith.negf %59 : vector<1x128xf32>
    %61 = math.exp %60 : vector<1x128xf32>
    %cst_39 = arith.constant 1.000000e+00 : f32
    %62 = vector.broadcast %cst_39 : f32 to vector<1x128xf32>
    %63 = arith.addf %62, %61 : vector<1x128xf32>
    %64 = arith.divf %62, %63 : vector<1x128xf32>
    %65 = math.tanh %59 : vector<1x128xf32>
    %66 = vector.extract_strided_slice %64 {offsets = [0, 0], sizes = [1, 32], strides = [1, 1]} : vector<1x128xf32> to vector<1x32xf32>
    %67 = vector.extract_strided_slice %64 {offsets = [0, 32], sizes = [1, 32], strides = [1, 1]} : vector<1x128xf32> to vector<1x32xf32>
    %68 = vector.extract_strided_slice %65 {offsets = [0, 64], sizes = [1, 32], strides = [1, 1]} : vector<1x128xf32> to vector<1x32xf32>
    %69 = vector.extract_strided_slice %64 {offsets = [0, 96], sizes = [1, 32], strides = [1, 1]} : vector<1x128xf32> to vector<1x32xf32>
    %70 = arith.mulf %67, %24 : vector<1x32xf32>
    %71 = arith.mulf %66, %68 : vector<1x32xf32>
    %72 = arith.addf %70, %71 : vector<1x32xf32>
    %73 = math.tanh %72 : vector<1x32xf32>
    %74 = arith.mulf %69, %73 : vector<1x32xf32>
    %c0_40 = arith.constant 0 : index
    %c0_41 = arith.constant 0 : index
    %c0_42 = arith.constant 0 : index
    %75 = vector.load %arg6[%c0_40, %c0_41, %c0_42] : memref<1x32x128xf32, #tpu.memory_space<vmem>>, vector<1x32x128xf32>
    %76 = vector.shape_cast %75 : vector<1x32x128xf32> to vector<32x128xf32>
    %cst_43 = arith.constant dense<0.000000e+00> : vector<1x128xf32>
    %77 = tpu.matmul %74, %76, %cst_43 {dimension_numbers = #tpu.dot_dimension_numbers<[1], [0], [0], [1], [0, 0, 1, 1], [], []>} : vector<1x32xf32>, vector<32x128xf32>, vector<1x128xf32> -> vector<1x128xf32>
    %c0_44 = arith.constant 0 : index
    %c0_45 = arith.constant 0 : index
    %c0_46 = arith.constant 0 : index
    %78 = vector.load %arg7[%c0_44, %c0_45, %c0_46] : memref<1x32x128xf32, #tpu.memory_space<vmem>>, vector<1x32x128xf32>
    %79 = vector.shape_cast %78 : vector<1x32x128xf32> to vector<32x128xf32>
    %cst_47 = arith.constant dense<0.000000e+00> : vector<1x128xf32>
    %80 = tpu.matmul %50, %79, %cst_47 {dimension_numbers = #tpu.dot_dimension_numbers<[1], [0], [0], [1], [0, 0, 1, 1], [], []>} : vector<1x32xf32>, vector<32x128xf32>, vector<1x128xf32> -> vector<1x128xf32>
    %81 = arith.addf %77, %80 : vector<1x128xf32>
    %c1_48 = arith.constant 1 : index
    %c0_49 = arith.constant 0 : index
    %82 = vector.load %arg8[%c1_48, %c0_49] : memref<2x128xf32, #tpu.memory_space<vmem>>, vector<1x128xf32>
    %83 = arith.addf %81, %82 : vector<1x128xf32>
    %84 = arith.negf %83 : vector<1x128xf32>
    %85 = math.exp %84 : vector<1x128xf32>
    %cst_50 = arith.constant 1.000000e+00 : f32
    %86 = vector.broadcast %cst_50 : f32 to vector<1x128xf32>
    %87 = arith.addf %86, %85 : vector<1x128xf32>
    %88 = arith.divf %86, %87 : vector<1x128xf32>
    %89 = math.tanh %83 : vector<1x128xf32>
    %90 = vector.extract_strided_slice %88 {offsets = [0, 0], sizes = [1, 32], strides = [1, 1]} : vector<1x128xf32> to vector<1x32xf32>
    %91 = vector.extract_strided_slice %88 {offsets = [0, 32], sizes = [1, 32], strides = [1, 1]} : vector<1x128xf32> to vector<1x32xf32>
    %92 = vector.extract_strided_slice %89 {offsets = [0, 64], sizes = [1, 32], strides = [1, 1]} : vector<1x128xf32> to vector<1x32xf32>
    %93 = vector.extract_strided_slice %88 {offsets = [0, 96], sizes = [1, 32], strides = [1, 1]} : vector<1x128xf32> to vector<1x32xf32>
    %94 = arith.mulf %91, %48 : vector<1x32xf32>
    %95 = arith.mulf %90, %92 : vector<1x32xf32>
    %96 = arith.addf %94, %95 : vector<1x32xf32>
    %97 = math.tanh %96 : vector<1x32xf32>
    %98 = arith.mulf %93, %97 : vector<1x32xf32>
    %c1_51 = arith.constant 1 : index
    %c0_52 = arith.constant 0 : index
    %99 = vector.load %arg14[%c1_51, %c0_52] : memref<8x32xf32, #tpu.memory_space<vmem>>, vector<1x32xf32>
    tpu.vector_store %arg14[%c1_51, %c0_52], %98 {strides = array<i32>} : memref<8x32xf32, #tpu.memory_space<vmem>>, vector<1x32xf32>,
    %c2 = arith.constant 2 : index
    %c0_53 = arith.constant 0 : index
    %100 = vector.load %arg1[%c2, %c0_53] : memref<8x32xf32, #tpu.memory_space<vmem>>, vector<1x32xf32>
    %c0_54 = arith.constant 0 : index
    %c0_55 = arith.constant 0 : index
    %101 = vector.load %arg4[%c0_54, %c0_55] : memref<32x128xf32, #tpu.memory_space<vmem>>, vector<32x128xf32>
    %cst_56 = arith.constant dense<0.000000e+00> : vector<1x128xf32>
    %102 = tpu.matmul %100, %101, %cst_56 {dimension_numbers = #tpu.dot_dimension_numbers<[1], [0], [0], [1], [0, 0, 1, 1], [], []>} : vector<1x32xf32>, vector<32x128xf32>, vector<1x128xf32> -> vector<1x128xf32>
    %c0_57 = arith.constant 0 : index
    %c0_58 = arith.constant 0 : index
    %103 = vector.load %arg5[%c0_57, %c0_58] : memref<32x128xf32, #tpu.memory_space<vmem>>, vector<32x128xf32>
    %cst_59 = arith.constant dense<0.000000e+00> : vector<1x128xf32>
    %104 = tpu.matmul %74, %103, %cst_59 {dimension_numbers = #tpu.dot_dimension_numbers<[1], [0], [0], [1], [0, 0, 1, 1], [], []>} : vector<1x32xf32>, vector<32x128xf32>, vector<1x128xf32> -> vector<1x128xf32>
    %105 = arith.addf %102, %104 : vector<1x128xf32>
    %c0_60 = arith.constant 0 : index
    %c0_61 = arith.constant 0 : index
    %106 = vector.load %arg8[%c0_60, %c0_61] : memref<2x128xf32, #tpu.memory_space<vmem>>, vector<1x128xf32>
    %107 = arith.addf %105, %106 : vector<1x128xf32>
    %108 = arith.negf %107 : vector<1x128xf32>
    %109 = math.exp %108 : vector<1x128xf32>
    %cst_62 = arith.constant 1.000000e+00 : f32
    %110 = vector.broadcast %cst_62 : f32 to vector<1x128xf32>
    %111 = arith.addf %110, %109 : vector<1x128xf32>
    %112 = arith.divf %110, %111 : vector<1x128xf32>
    %113 = math.tanh %107 : vector<1x128xf32>
    %114 = vector.extract_strided_slice %112 {offsets = [0, 0], sizes = [1, 32], strides = [1, 1]} : vector<1x128xf32> to vector<1x32xf32>
    %115 = vector.extract_strided_slice %112 {offsets = [0, 32], sizes = [1, 32], strides = [1, 1]} : vector<1x128xf32> to vector<1x32xf32>
    %116 = vector.extract_strided_slice %113 {offsets = [0, 64], sizes = [1, 32], strides = [1, 1]} : vector<1x128xf32> to vector<1x32xf32>
    %117 = vector.extract_strided_slice %112 {offsets = [0, 96], sizes = [1, 32], strides = [1, 1]} : vector<1x128xf32> to vector<1x32xf32>
    %118 = arith.mulf %115, %72 : vector<1x32xf32>
    %119 = arith.mulf %114, %116 : vector<1x32xf32>
    %120 = arith.addf %118, %119 : vector<1x32xf32>
    %121 = math.tanh %120 : vector<1x32xf32>
    %122 = arith.mulf %117, %121 : vector<1x32xf32>
    %c0_63 = arith.constant 0 : index
    %c0_64 = arith.constant 0 : index
    %c0_65 = arith.constant 0 : index
    %123 = vector.load %arg6[%c0_63, %c0_64, %c0_65] : memref<1x32x128xf32, #tpu.memory_space<vmem>>, vector<1x32x128xf32>
    %124 = vector.shape_cast %123 : vector<1x32x128xf32> to vector<32x128xf32>
    %cst_66 = arith.constant dense<0.000000e+00> : vector<1x128xf32>
    %125 = tpu.matmul %122, %124, %cst_66 {dimension_numbers = #tpu.dot_dimension_numbers<[1], [0], [0], [1], [0, 0, 1, 1], [], []>} : vector<1x32xf32>, vector<32x128xf32>, vector<1x128xf32> -> vector<1x128xf32>
    %c0_67 = arith.constant 0 : index
    %c0_68 = arith.constant 0 : index
    %c0_69 = arith.constant 0 : index
    %126 = vector.load %arg7[%c0_67, %c0_68, %c0_69] : memref<1x32x128xf32, #tpu.memory_space<vmem>>, vector<1x32x128xf32>
    %127 = vector.shape_cast %126 : vector<1x32x128xf32> to vector<32x128xf32>
    %cst_70 = arith.constant dense<0.000000e+00> : vector<1x128xf32>
    %128 = tpu.matmul %98, %127, %cst_70 {dimension_numbers = #tpu.dot_dimension_numbers<[1], [0], [0], [1], [0, 0, 1, 1], [], []>} : vector<1x32xf32>, vector<32x128xf32>, vector<1x128xf32> -> vector<1x128xf32>
    %129 = arith.addf %125, %128 : vector<1x128xf32>
    %c1_71 = arith.constant 1 : index
    %c0_72 = arith.constant 0 : index
    %130 = vector.load %arg8[%c1_71, %c0_72] : memref<2x128xf32, #tpu.memory_space<vmem>>, vector<1x128xf32>
    %131 = arith.addf %129, %130 : vector<1x128xf32>
    %132 = arith.negf %131 : vector<1x128xf32>
    %133 = math.exp %132 : vector<1x128xf32>
    %cst_73 = arith.constant 1.000000e+00 : f32
    %134 = vector.broadcast %cst_73 : f32 to vector<1x128xf32>
    %135 = arith.addf %134, %133 : vector<1x128xf32>
    %136 = arith.divf %134, %135 : vector<1x128xf32>
    %137 = math.tanh %131 : vector<1x128xf32>
    %138 = vector.extract_strided_slice %136 {offsets = [0, 0], sizes = [1, 32], strides = [1, 1]} : vector<1x128xf32> to vector<1x32xf32>
    %139 = vector.extract_strided_slice %136 {offsets = [0, 32], sizes = [1, 32], strides = [1, 1]} : vector<1x128xf32> to vector<1x32xf32>
    %140 = vector.extract_strided_slice %137 {offsets = [0, 64], sizes = [1, 32], strides = [1, 1]} : vector<1x128xf32> to vector<1x32xf32>
    %141 = vector.extract_strided_slice %136 {offsets = [0, 96], sizes = [1, 32], strides = [1, 1]} : vector<1x128xf32> to vector<1x32xf32>
    %142 = arith.mulf %139, %96 : vector<1x32xf32>
    %143 = arith.mulf %138, %140 : vector<1x32xf32>
    %144 = arith.addf %142, %143 : vector<1x32xf32>
    %145 = math.tanh %144 : vector<1x32xf32>
    %146 = arith.mulf %141, %145 : vector<1x32xf32>
    %c2_74 = arith.constant 2 : index
    %c0_75 = arith.constant 0 : index
    %147 = vector.load %arg14[%c2_74, %c0_75] : memref<8x32xf32, #tpu.memory_space<vmem>>, vector<1x32xf32>
    tpu.vector_store %arg14[%c2_74, %c0_75], %146 {strides = array<i32>} : memref<8x32xf32, #tpu.memory_space<vmem>>, vector<1x32xf32>,
    %c3 = arith.constant 3 : index
    %c0_76 = arith.constant 0 : index
    %148 = vector.load %arg1[%c3, %c0_76] : memref<8x32xf32, #tpu.memory_space<vmem>>, vector<1x32xf32>
    %c0_77 = arith.constant 0 : index
    %c0_78 = arith.constant 0 : index
    %149 = vector.load %arg4[%c0_77, %c0_78] : memref<32x128xf32, #tpu.memory_space<vmem>>, vector<32x128xf32>
    %cst_79 = arith.constant dense<0.000000e+00> : vector<1x128xf32>
    %150 = tpu.matmul %148, %149, %cst_79 {dimension_numbers = #tpu.dot_dimension_numbers<[1], [0], [0], [1], [0, 0, 1, 1], [], []>} : vector<1x32xf32>, vector<32x128xf32>, vector<1x128xf32> -> vector<1x128xf32>
    %c0_80 = arith.constant 0 : index
    %c0_81 = arith.constant 0 : index
    %151 = vector.load %arg5[%c0_80, %c0_81] : memref<32x128xf32, #tpu.memory_space<vmem>>, vector<32x128xf32>
    %cst_82 = arith.constant dense<0.000000e+00> : vector<1x128xf32>
    %152 = tpu.matmul %122, %151, %cst_82 {dimension_numbers = #tpu.dot_dimension_numbers<[1], [0], [0], [1], [0, 0, 1, 1], [], []>} : vector<1x32xf32>, vector<32x128xf32>, vector<1x128xf32> -> vector<1x128xf32>
    %153 = arith.addf %150, %152 : vector<1x128xf32>
    %c0_83 = arith.constant 0 : index
    %c0_84 = arith.constant 0 : index
    %154 = vector.load %arg8[%c0_83, %c0_84] : memref<2x128xf32, #tpu.memory_space<vmem>>, vector<1x128xf32>
    %155 = arith.addf %153, %154 : vector<1x128xf32>
    %156 = arith.negf %155 : vector<1x128xf32>
    %157 = math.exp %156 : vector<1x128xf32>
    %cst_85 = arith.constant 1.000000e+00 : f32
    %158 = vector.broadcast %cst_85 : f32 to vector<1x128xf32>
    %159 = arith.addf %158, %157 : vector<1x128xf32>
    %160 = arith.divf %158, %159 : vector<1x128xf32>
    %161 = math.tanh %155 : vector<1x128xf32>
    %162 = vector.extract_strided_slice %160 {offsets = [0, 0], sizes = [1, 32], strides = [1, 1]} : vector<1x128xf32> to vector<1x32xf32>
    %163 = vector.extract_strided_slice %160 {offsets = [0, 32], sizes = [1, 32], strides = [1, 1]} : vector<1x128xf32> to vector<1x32xf32>
    %164 = vector.extract_strided_slice %161 {offsets = [0, 64], sizes = [1, 32], strides = [1, 1]} : vector<1x128xf32> to vector<1x32xf32>
    %165 = vector.extract_strided_slice %160 {offsets = [0, 96], sizes = [1, 32], strides = [1, 1]} : vector<1x128xf32> to vector<1x32xf32>
    %166 = arith.mulf %163, %120 : vector<1x32xf32>
    %167 = arith.mulf %162, %164 : vector<1x32xf32>
    %168 = arith.addf %166, %167 : vector<1x32xf32>
    %169 = math.tanh %168 : vector<1x32xf32>
    %170 = arith.mulf %165, %169 : vector<1x32xf32>
    %c0_86 = arith.constant 0 : index
    %c0_87 = arith.constant 0 : index
    %c0_88 = arith.constant 0 : index
    %171 = vector.load %arg6[%c0_86, %c0_87, %c0_88] : memref<1x32x128xf32, #tpu.memory_space<vmem>>, vector<1x32x128xf32>
    %172 = vector.shape_cast %171 : vector<1x32x128xf32> to vector<32x128xf32>
    %cst_89 = arith.constant dense<0.000000e+00> : vector<1x128xf32>
    %173 = tpu.matmul %170, %172, %cst_89 {dimension_numbers = #tpu.dot_dimension_numbers<[1], [0], [0], [1], [0, 0, 1, 1], [], []>} : vector<1x32xf32>, vector<32x128xf32>, vector<1x128xf32> -> vector<1x128xf32>
    %c0_90 = arith.constant 0 : index
    %c0_91 = arith.constant 0 : index
    %c0_92 = arith.constant 0 : index
    %174 = vector.load %arg7[%c0_90, %c0_91, %c0_92] : memref<1x32x128xf32, #tpu.memory_space<vmem>>, vector<1x32x128xf32>
    %175 = vector.shape_cast %174 : vector<1x32x128xf32> to vector<32x128xf32>
    %cst_93 = arith.constant dense<0.000000e+00> : vector<1x128xf32>
    %176 = tpu.matmul %146, %175, %cst_93 {dimension_numbers = #tpu.dot_dimension_numbers<[1], [0], [0], [1], [0, 0, 1, 1], [], []>} : vector<1x32xf32>, vector<32x128xf32>, vector<1x128xf32> -> vector<1x128xf32>
    %177 = arith.addf %173, %176 : vector<1x128xf32>
    %c1_94 = arith.constant 1 : index
    %c0_95 = arith.constant 0 : index
    %178 = vector.load %arg8[%c1_94, %c0_95] : memref<2x128xf32, #tpu.memory_space<vmem>>, vector<1x128xf32>
    %179 = arith.addf %177, %178 : vector<1x128xf32>
    %180 = arith.negf %179 : vector<1x128xf32>
    %181 = math.exp %180 : vector<1x128xf32>
    %cst_96 = arith.constant 1.000000e+00 : f32
    %182 = vector.broadcast %cst_96 : f32 to vector<1x128xf32>
    %183 = arith.addf %182, %181 : vector<1x128xf32>
    %184 = arith.divf %182, %183 : vector<1x128xf32>
    %185 = math.tanh %179 : vector<1x128xf32>
    %186 = vector.extract_strided_slice %184 {offsets = [0, 0], sizes = [1, 32], strides = [1, 1]} : vector<1x128xf32> to vector<1x32xf32>
    %187 = vector.extract_strided_slice %184 {offsets = [0, 32], sizes = [1, 32], strides = [1, 1]} : vector<1x128xf32> to vector<1x32xf32>
    %188 = vector.extract_strided_slice %185 {offsets = [0, 64], sizes = [1, 32], strides = [1, 1]} : vector<1x128xf32> to vector<1x32xf32>
    %189 = vector.extract_strided_slice %184 {offsets = [0, 96], sizes = [1, 32], strides = [1, 1]} : vector<1x128xf32> to vector<1x32xf32>
    %190 = arith.mulf %187, %144 : vector<1x32xf32>
    %191 = arith.mulf %186, %188 : vector<1x32xf32>
    %192 = arith.addf %190, %191 : vector<1x32xf32>
    %193 = math.tanh %192 : vector<1x32xf32>
    %194 = arith.mulf %189, %193 : vector<1x32xf32>
    %c3_97 = arith.constant 3 : index
    %c0_98 = arith.constant 0 : index
    %195 = vector.load %arg14[%c3_97, %c0_98] : memref<8x32xf32, #tpu.memory_space<vmem>>, vector<1x32xf32>
    tpu.vector_store %arg14[%c3_97, %c0_98], %194 {strides = array<i32>} : memref<8x32xf32, #tpu.memory_space<vmem>>, vector<1x32xf32>,
    %c4 = arith.constant 4 : index
    %c0_99 = arith.constant 0 : index
    %196 = vector.load %arg1[%c4, %c0_99] : memref<8x32xf32, #tpu.memory_space<vmem>>, vector<1x32xf32>
    %c0_100 = arith.constant 0 : index
    %c0_101 = arith.constant 0 : index
    %197 = vector.load %arg4[%c0_100, %c0_101] : memref<32x128xf32, #tpu.memory_space<vmem>>, vector<32x128xf32>
    %cst_102 = arith.constant dense<0.000000e+00> : vector<1x128xf32>
    %198 = tpu.matmul %196, %197, %cst_102 {dimension_numbers = #tpu.dot_dimension_numbers<[1], [0], [0], [1], [0, 0, 1, 1], [], []>} : vector<1x32xf32>, vector<32x128xf32>, vector<1x128xf32> -> vector<1x128xf32>
    %c0_103 = arith.constant 0 : index
    %c0_104 = arith.constant 0 : index
    %199 = vector.load %arg5[%c0_103, %c0_104] : memref<32x128xf32, #tpu.memory_space<vmem>>, vector<32x128xf32>
    %cst_105 = arith.constant dense<0.000000e+00> : vector<1x128xf32>
    %200 = tpu.matmul %170, %199, %cst_105 {dimension_numbers = #tpu.dot_dimension_numbers<[1], [0], [0], [1], [0, 0, 1, 1], [], []>} : vector<1x32xf32>, vector<32x128xf32>, vector<1x128xf32> -> vector<1x128xf32>
    %201 = arith.addf %198, %200 : vector<1x128xf32>
    %c0_106 = arith.constant 0 : index
    %c0_107 = arith.constant 0 : index
    %202 = vector.load %arg8[%c0_106, %c0_107] : memref<2x128xf32, #tpu.memory_space<vmem>>, vector<1x128xf32>
    %203 = arith.addf %201, %202 : vector<1x128xf32>
    %204 = arith.negf %203 : vector<1x128xf32>
    %205 = math.exp %204 : vector<1x128xf32>
    %cst_108 = arith.constant 1.000000e+00 : f32
    %206 = vector.broadcast %cst_108 : f32 to vector<1x128xf32>
    %207 = arith.addf %206, %205 : vector<1x128xf32>
    %208 = arith.divf %206, %207 : vector<1x128xf32>
    %209 = math.tanh %203 : vector<1x128xf32>
    %210 = vector.extract_strided_slice %208 {offsets = [0, 0], sizes = [1, 32], strides = [1, 1]} : vector<1x128xf32> to vector<1x32xf32>
    %211 = vector.extract_strided_slice %208 {offsets = [0, 32], sizes = [1, 32], strides = [1, 1]} : vector<1x128xf32> to vector<1x32xf32>
    %212 = vector.extract_strided_slice %209 {offsets = [0, 64], sizes = [1, 32], strides = [1, 1]} : vector<1x128xf32> to vector<1x32xf32>
    %213 = vector.extract_strided_slice %208 {offsets = [0, 96], sizes = [1, 32], strides = [1, 1]} : vector<1x128xf32> to vector<1x32xf32>
    %214 = arith.mulf %211, %168 : vector<1x32xf32>
    %215 = arith.mulf %210, %212 : vector<1x32xf32>
    %216 = arith.addf %214, %215 : vector<1x32xf32>
    %217 = math.tanh %216 : vector<1x32xf32>
    %218 = arith.mulf %213, %217 : vector<1x32xf32>
    %c0_109 = arith.constant 0 : index
    %c0_110 = arith.constant 0 : index
    %c0_111 = arith.constant 0 : index
    %219 = vector.load %arg6[%c0_109, %c0_110, %c0_111] : memref<1x32x128xf32, #tpu.memory_space<vmem>>, vector<1x32x128xf32>
    %220 = vector.shape_cast %219 : vector<1x32x128xf32> to vector<32x128xf32>
    %cst_112 = arith.constant dense<0.000000e+00> : vector<1x128xf32>
    %221 = tpu.matmul %218, %220, %cst_112 {dimension_numbers = #tpu.dot_dimension_numbers<[1], [0], [0], [1], [0, 0, 1, 1], [], []>} : vector<1x32xf32>, vector<32x128xf32>, vector<1x128xf32> -> vector<1x128xf32>
    %c0_113 = arith.constant 0 : index
    %c0_114 = arith.constant 0 : index
    %c0_115 = arith.constant 0 : index
    %222 = vector.load %arg7[%c0_113, %c0_114, %c0_115] : memref<1x32x128xf32, #tpu.memory_space<vmem>>, vector<1x32x128xf32>
    %223 = vector.shape_cast %222 : vector<1x32x128xf32> to vector<32x128xf32>
    %cst_116 = arith.constant dense<0.000000e+00> : vector<1x128xf32>
    %224 = tpu.matmul %194, %223, %cst_116 {dimension_numbers = #tpu.dot_dimension_numbers<[1], [0], [0], [1], [0, 0, 1, 1], [], []>} : vector<1x32xf32>, vector<32x128xf32>, vector<1x128xf32> -> vector<1x128xf32>
    %225 = arith.addf %221, %224 : vector<1x128xf32>
    %c1_117 = arith.constant 1 : index
    %c0_118 = arith.constant 0 : index
    %226 = vector.load %arg8[%c1_117, %c0_118] : memref<2x128xf32, #tpu.memory_space<vmem>>, vector<1x128xf32>
    %227 = arith.addf %225, %226 : vector<1x128xf32>
    %228 = arith.negf %227 : vector<1x128xf32>
    %229 = math.exp %228 : vector<1x128xf32>
    %cst_119 = arith.constant 1.000000e+00 : f32
    %230 = vector.broadcast %cst_119 : f32 to vector<1x128xf32>
    %231 = arith.addf %230, %229 : vector<1x128xf32>
    %232 = arith.divf %230, %231 : vector<1x128xf32>
    %233 = math.tanh %227 : vector<1x128xf32>
    %234 = vector.extract_strided_slice %232 {offsets = [0, 0], sizes = [1, 32], strides = [1, 1]} : vector<1x128xf32> to vector<1x32xf32>
    %235 = vector.extract_strided_slice %232 {offsets = [0, 32], sizes = [1, 32], strides = [1, 1]} : vector<1x128xf32> to vector<1x32xf32>
    %236 = vector.extract_strided_slice %233 {offsets = [0, 64], sizes = [1, 32], strides = [1, 1]} : vector<1x128xf32> to vector<1x32xf32>
    %237 = vector.extract_strided_slice %232 {offsets = [0, 96], sizes = [1, 32], strides = [1, 1]} : vector<1x128xf32> to vector<1x32xf32>
    %238 = arith.mulf %235, %192 : vector<1x32xf32>
    %239 = arith.mulf %234, %236 : vector<1x32xf32>
    %240 = arith.addf %238, %239 : vector<1x32xf32>
    %241 = math.tanh %240 : vector<1x32xf32>
    %242 = arith.mulf %237, %241 : vector<1x32xf32>
    %c4_120 = arith.constant 4 : index
    %c0_121 = arith.constant 0 : index
    %243 = vector.load %arg14[%c4_120, %c0_121] : memref<8x32xf32, #tpu.memory_space<vmem>>, vector<1x32xf32>
    tpu.vector_store %arg14[%c4_120, %c0_121], %242 {strides = array<i32>} : memref<8x32xf32, #tpu.memory_space<vmem>>, vector<1x32xf32>,
    %c5 = arith.constant 5 : index
    %c0_122 = arith.constant 0 : index
    %244 = vector.load %arg1[%c5, %c0_122] : memref<8x32xf32, #tpu.memory_space<vmem>>, vector<1x32xf32>
    %c0_123 = arith.constant 0 : index
    %c0_124 = arith.constant 0 : index
    %245 = vector.load %arg4[%c0_123, %c0_124] : memref<32x128xf32, #tpu.memory_space<vmem>>, vector<32x128xf32>
    %cst_125 = arith.constant dense<0.000000e+00> : vector<1x128xf32>
    %246 = tpu.matmul %244, %245, %cst_125 {dimension_numbers = #tpu.dot_dimension_numbers<[1], [0], [0], [1], [0, 0, 1, 1], [], []>} : vector<1x32xf32>, vector<32x128xf32>, vector<1x128xf32> -> vector<1x128xf32>
    %c0_126 = arith.constant 0 : index
    %c0_127 = arith.constant 0 : index
    %247 = vector.load %arg5[%c0_126, %c0_127] : memref<32x128xf32, #tpu.memory_space<vmem>>, vector<32x128xf32>
    %cst_128 = arith.constant dense<0.000000e+00> : vector<1x128xf32>
    %248 = tpu.matmul %218, %247, %cst_128 {dimension_numbers = #tpu.dot_dimension_numbers<[1], [0], [0], [1], [0, 0, 1, 1], [], []>} : vector<1x32xf32>, vector<32x128xf32>, vector<1x128xf32> -> vector<1x128xf32>
    %249 = arith.addf %246, %248 : vector<1x128xf32>
    %c0_129 = arith.constant 0 : index
    %c0_130 = arith.constant 0 : index
    %250 = vector.load %arg8[%c0_129, %c0_130] : memref<2x128xf32, #tpu.memory_space<vmem>>, vector<1x128xf32>
    %251 = arith.addf %249, %250 : vector<1x128xf32>
    %252 = arith.negf %251 : vector<1x128xf32>
    %253 = math.exp %252 : vector<1x128xf32>
    %cst_131 = arith.constant 1.000000e+00 : f32
    %254 = vector.broadcast %cst_131 : f32 to vector<1x128xf32>
    %255 = arith.addf %254, %253 : vector<1x128xf32>
    %256 = arith.divf %254, %255 : vector<1x128xf32>
    %257 = math.tanh %251 : vector<1x128xf32>
    %258 = vector.extract_strided_slice %256 {offsets = [0, 0], sizes = [1, 32], strides = [1, 1]} : vector<1x128xf32> to vector<1x32xf32>
    %259 = vector.extract_strided_slice %256 {offsets = [0, 32], sizes = [1, 32], strides = [1, 1]} : vector<1x128xf32> to vector<1x32xf32>
    %260 = vector.extract_strided_slice %257 {offsets = [0, 64], sizes = [1, 32], strides = [1, 1]} : vector<1x128xf32> to vector<1x32xf32>
    %261 = vector.extract_strided_slice %256 {offsets = [0, 96], sizes = [1, 32], strides = [1, 1]} : vector<1x128xf32> to vector<1x32xf32>
    %262 = arith.mulf %259, %216 : vector<1x32xf32>
    %263 = arith.mulf %258, %260 : vector<1x32xf32>
    %264 = arith.addf %262, %263 : vector<1x32xf32>
    %265 = math.tanh %264 : vector<1x32xf32>
    %266 = arith.mulf %261, %265 : vector<1x32xf32>
    %c0_132 = arith.constant 0 : index
    %c0_133 = arith.constant 0 : index
    %c0_134 = arith.constant 0 : index
    %267 = vector.load %arg6[%c0_132, %c0_133, %c0_134] : memref<1x32x128xf32, #tpu.memory_space<vmem>>, vector<1x32x128xf32>
    %268 = vector.shape_cast %267 : vector<1x32x128xf32> to vector<32x128xf32>
    %cst_135 = arith.constant dense<0.000000e+00> : vector<1x128xf32>
    %269 = tpu.matmul %266, %268, %cst_135 {dimension_numbers = #tpu.dot_dimension_numbers<[1], [0], [0], [1], [0, 0, 1, 1], [], []>} : vector<1x32xf32>, vector<32x128xf32>, vector<1x128xf32> -> vector<1x128xf32>
    %c0_136 = arith.constant 0 : index
    %c0_137 = arith.constant 0 : index
    %c0_138 = arith.constant 0 : index
    %270 = vector.load %arg7[%c0_136, %c0_137, %c0_138] : memref<1x32x128xf32, #tpu.memory_space<vmem>>, vector<1x32x128xf32>
    %271 = vector.shape_cast %270 : vector<1x32x128xf32> to vector<32x128xf32>
    %cst_139 = arith.constant dense<0.000000e+00> : vector<1x128xf32>
    %272 = tpu.matmul %242, %271, %cst_139 {dimension_numbers = #tpu.dot_dimension_numbers<[1], [0], [0], [1], [0, 0, 1, 1], [], []>} : vector<1x32xf32>, vector<32x128xf32>, vector<1x128xf32> -> vector<1x128xf32>
    %273 = arith.addf %269, %272 : vector<1x128xf32>
    %c1_140 = arith.constant 1 : index
    %c0_141 = arith.constant 0 : index
    %274 = vector.load %arg8[%c1_140, %c0_141] : memref<2x128xf32, #tpu.memory_space<vmem>>, vector<1x128xf32>
    %275 = arith.addf %273, %274 : vector<1x128xf32>
    %276 = arith.negf %275 : vector<1x128xf32>
    %277 = math.exp %276 : vector<1x128xf32>
    %cst_142 = arith.constant 1.000000e+00 : f32
    %278 = vector.broadcast %cst_142 : f32 to vector<1x128xf32>
    %279 = arith.addf %278, %277 : vector<1x128xf32>
    %280 = arith.divf %278, %279 : vector<1x128xf32>
    %281 = math.tanh %275 : vector<1x128xf32>
    %282 = vector.extract_strided_slice %280 {offsets = [0, 0], sizes = [1, 32], strides = [1, 1]} : vector<1x128xf32> to vector<1x32xf32>
    %283 = vector.extract_strided_slice %280 {offsets = [0, 32], sizes = [1, 32], strides = [1, 1]} : vector<1x128xf32> to vector<1x32xf32>
    %284 = vector.extract_strided_slice %281 {offsets = [0, 64], sizes = [1, 32], strides = [1, 1]} : vector<1x128xf32> to vector<1x32xf32>
    %285 = vector.extract_strided_slice %280 {offsets = [0, 96], sizes = [1, 32], strides = [1, 1]} : vector<1x128xf32> to vector<1x32xf32>
    %286 = arith.mulf %283, %240 : vector<1x32xf32>
    %287 = arith.mulf %282, %284 : vector<1x32xf32>
    %288 = arith.addf %286, %287 : vector<1x32xf32>
    %289 = math.tanh %288 : vector<1x32xf32>
    %290 = arith.mulf %285, %289 : vector<1x32xf32>
    %c5_143 = arith.constant 5 : index
    %c0_144 = arith.constant 0 : index
    %291 = vector.load %arg14[%c5_143, %c0_144] : memref<8x32xf32, #tpu.memory_space<vmem>>, vector<1x32xf32>
    tpu.vector_store %arg14[%c5_143, %c0_144], %290 {strides = array<i32>} : memref<8x32xf32, #tpu.memory_space<vmem>>, vector<1x32xf32>,
    %c6 = arith.constant 6 : index
    %c0_145 = arith.constant 0 : index
    %292 = vector.load %arg1[%c6, %c0_145] : memref<8x32xf32, #tpu.memory_space<vmem>>, vector<1x32xf32>
    %c0_146 = arith.constant 0 : index
    %c0_147 = arith.constant 0 : index
    %293 = vector.load %arg4[%c0_146, %c0_147] : memref<32x128xf32, #tpu.memory_space<vmem>>, vector<32x128xf32>
    %cst_148 = arith.constant dense<0.000000e+00> : vector<1x128xf32>
    %294 = tpu.matmul %292, %293, %cst_148 {dimension_numbers = #tpu.dot_dimension_numbers<[1], [0], [0], [1], [0, 0, 1, 1], [], []>} : vector<1x32xf32>, vector<32x128xf32>, vector<1x128xf32> -> vector<1x128xf32>
    %c0_149 = arith.constant 0 : index
    %c0_150 = arith.constant 0 : index
    %295 = vector.load %arg5[%c0_149, %c0_150] : memref<32x128xf32, #tpu.memory_space<vmem>>, vector<32x128xf32>
    %cst_151 = arith.constant dense<0.000000e+00> : vector<1x128xf32>
    %296 = tpu.matmul %266, %295, %cst_151 {dimension_numbers = #tpu.dot_dimension_numbers<[1], [0], [0], [1], [0, 0, 1, 1], [], []>} : vector<1x32xf32>, vector<32x128xf32>, vector<1x128xf32> -> vector<1x128xf32>
    %297 = arith.addf %294, %296 : vector<1x128xf32>
    %c0_152 = arith.constant 0 : index
    %c0_153 = arith.constant 0 : index
    %298 = vector.load %arg8[%c0_152, %c0_153] : memref<2x128xf32, #tpu.memory_space<vmem>>, vector<1x128xf32>
    %299 = arith.addf %297, %298 : vector<1x128xf32>
    %300 = arith.negf %299 : vector<1x128xf32>
    %301 = math.exp %300 : vector<1x128xf32>
    %cst_154 = arith.constant 1.000000e+00 : f32
    %302 = vector.broadcast %cst_154 : f32 to vector<1x128xf32>
    %303 = arith.addf %302, %301 : vector<1x128xf32>
    %304 = arith.divf %302, %303 : vector<1x128xf32>
    %305 = math.tanh %299 : vector<1x128xf32>
    %306 = vector.extract_strided_slice %304 {offsets = [0, 0], sizes = [1, 32], strides = [1, 1]} : vector<1x128xf32> to vector<1x32xf32>
    %307 = vector.extract_strided_slice %304 {offsets = [0, 32], sizes = [1, 32], strides = [1, 1]} : vector<1x128xf32> to vector<1x32xf32>
    %308 = vector.extract_strided_slice %305 {offsets = [0, 64], sizes = [1, 32], strides = [1, 1]} : vector<1x128xf32> to vector<1x32xf32>
    %309 = vector.extract_strided_slice %304 {offsets = [0, 96], sizes = [1, 32], strides = [1, 1]} : vector<1x128xf32> to vector<1x32xf32>
    %310 = arith.mulf %307, %264 : vector<1x32xf32>
    %311 = arith.mulf %306, %308 : vector<1x32xf32>
    %312 = arith.addf %310, %311 : vector<1x32xf32>
    %313 = math.tanh %312 : vector<1x32xf32>
    %314 = arith.mulf %309, %313 : vector<1x32xf32>
    %c0_155 = arith.constant 0 : index
    %c0_156 = arith.constant 0 : index
    %c0_157 = arith.constant 0 : index
    %315 = vector.load %arg6[%c0_155, %c0_156, %c0_157] : memref<1x32x128xf32, #tpu.memory_space<vmem>>, vector<1x32x128xf32>
    %316 = vector.shape_cast %315 : vector<1x32x128xf32> to vector<32x128xf32>
    %cst_158 = arith.constant dense<0.000000e+00> : vector<1x128xf32>
    %317 = tpu.matmul %314, %316, %cst_158 {dimension_numbers = #tpu.dot_dimension_numbers<[1], [0], [0], [1], [0, 0, 1, 1], [], []>} : vector<1x32xf32>, vector<32x128xf32>, vector<1x128xf32> -> vector<1x128xf32>
    %c0_159 = arith.constant 0 : index
    %c0_160 = arith.constant 0 : index
    %c0_161 = arith.constant 0 : index
    %318 = vector.load %arg7[%c0_159, %c0_160, %c0_161] : memref<1x32x128xf32, #tpu.memory_space<vmem>>, vector<1x32x128xf32>
    %319 = vector.shape_cast %318 : vector<1x32x128xf32> to vector<32x128xf32>
    %cst_162 = arith.constant dense<0.000000e+00> : vector<1x128xf32>
    %320 = tpu.matmul %290, %319, %cst_162 {dimension_numbers = #tpu.dot_dimension_numbers<[1], [0], [0], [1], [0, 0, 1, 1], [], []>} : vector<1x32xf32>, vector<32x128xf32>, vector<1x128xf32> -> vector<1x128xf32>
    %321 = arith.addf %317, %320 : vector<1x128xf32>
    %c1_163 = arith.constant 1 : index
    %c0_164 = arith.constant 0 : index
    %322 = vector.load %arg8[%c1_163, %c0_164] : memref<2x128xf32, #tpu.memory_space<vmem>>, vector<1x128xf32>
    %323 = arith.addf %321, %322 : vector<1x128xf32>
    %324 = arith.negf %323 : vector<1x128xf32>
    %325 = math.exp %324 : vector<1x128xf32>
    %cst_165 = arith.constant 1.000000e+00 : f32
    %326 = vector.broadcast %cst_165 : f32 to vector<1x128xf32>
    %327 = arith.addf %326, %325 : vector<1x128xf32>
    %328 = arith.divf %326, %327 : vector<1x128xf32>
    %329 = math.tanh %323 : vector<1x128xf32>
    %330 = vector.extract_strided_slice %328 {offsets = [0, 0], sizes = [1, 32], strides = [1, 1]} : vector<1x128xf32> to vector<1x32xf32>
    %331 = vector.extract_strided_slice %328 {offsets = [0, 32], sizes = [1, 32], strides = [1, 1]} : vector<1x128xf32> to vector<1x32xf32>
    %332 = vector.extract_strided_slice %329 {offsets = [0, 64], sizes = [1, 32], strides = [1, 1]} : vector<1x128xf32> to vector<1x32xf32>
    %333 = vector.extract_strided_slice %328 {offsets = [0, 96], sizes = [1, 32], strides = [1, 1]} : vector<1x128xf32> to vector<1x32xf32>
    %334 = arith.mulf %331, %288 : vector<1x32xf32>
    %335 = arith.mulf %330, %332 : vector<1x32xf32>
    %336 = arith.addf %334, %335 : vector<1x32xf32>
    %337 = math.tanh %336 : vector<1x32xf32>
    %338 = arith.mulf %333, %337 : vector<1x32xf32>
    %c6_166 = arith.constant 6 : index
    %c0_167 = arith.constant 0 : index
    %339 = vector.load %arg14[%c6_166, %c0_167] : memref<8x32xf32, #tpu.memory_space<vmem>>, vector<1x32xf32>
    tpu.vector_store %arg14[%c6_166, %c0_167], %338 {strides = array<i32>} : memref<8x32xf32, #tpu.memory_space<vmem>>, vector<1x32xf32>,
    %c7 = arith.constant 7 : index
    %c0_168 = arith.constant 0 : index
    %340 = vector.load %arg1[%c7, %c0_168] : memref<8x32xf32, #tpu.memory_space<vmem>>, vector<1x32xf32>
    %c0_169 = arith.constant 0 : index
    %c0_170 = arith.constant 0 : index
    %341 = vector.load %arg4[%c0_169, %c0_170] : memref<32x128xf32, #tpu.memory_space<vmem>>, vector<32x128xf32>
    %cst_171 = arith.constant dense<0.000000e+00> : vector<1x128xf32>
    %342 = tpu.matmul %340, %341, %cst_171 {dimension_numbers = #tpu.dot_dimension_numbers<[1], [0], [0], [1], [0, 0, 1, 1], [], []>} : vector<1x32xf32>, vector<32x128xf32>, vector<1x128xf32> -> vector<1x128xf32>
    %c0_172 = arith.constant 0 : index
    %c0_173 = arith.constant 0 : index
    %343 = vector.load %arg5[%c0_172, %c0_173] : memref<32x128xf32, #tpu.memory_space<vmem>>, vector<32x128xf32>
    %cst_174 = arith.constant dense<0.000000e+00> : vector<1x128xf32>
    %344 = tpu.matmul %314, %343, %cst_174 {dimension_numbers = #tpu.dot_dimension_numbers<[1], [0], [0], [1], [0, 0, 1, 1], [], []>} : vector<1x32xf32>, vector<32x128xf32>, vector<1x128xf32> -> vector<1x128xf32>
    %345 = arith.addf %342, %344 : vector<1x128xf32>
    %c0_175 = arith.constant 0 : index
    %c0_176 = arith.constant 0 : index
    %346 = vector.load %arg8[%c0_175, %c0_176] : memref<2x128xf32, #tpu.memory_space<vmem>>, vector<1x128xf32>
    %347 = arith.addf %345, %346 : vector<1x128xf32>
    %348 = arith.negf %347 : vector<1x128xf32>
    %349 = math.exp %348 : vector<1x128xf32>
    %cst_177 = arith.constant 1.000000e+00 : f32
    %350 = vector.broadcast %cst_177 : f32 to vector<1x128xf32>
    %351 = arith.addf %350, %349 : vector<1x128xf32>
    %352 = arith.divf %350, %351 : vector<1x128xf32>
    %353 = math.tanh %347 : vector<1x128xf32>
    %354 = vector.extract_strided_slice %352 {offsets = [0, 0], sizes = [1, 32], strides = [1, 1]} : vector<1x128xf32> to vector<1x32xf32>
    %355 = vector.extract_strided_slice %352 {offsets = [0, 32], sizes = [1, 32], strides = [1, 1]} : vector<1x128xf32> to vector<1x32xf32>
    %356 = vector.extract_strided_slice %353 {offsets = [0, 64], sizes = [1, 32], strides = [1, 1]} : vector<1x128xf32> to vector<1x32xf32>
    %357 = vector.extract_strided_slice %352 {offsets = [0, 96], sizes = [1, 32], strides = [1, 1]} : vector<1x128xf32> to vector<1x32xf32>
    %358 = arith.mulf %355, %312 : vector<1x32xf32>
    %359 = arith.mulf %354, %356 : vector<1x32xf32>
    %360 = arith.addf %358, %359 : vector<1x32xf32>
    %361 = math.tanh %360 : vector<1x32xf32>
    %362 = arith.mulf %357, %361 : vector<1x32xf32>
    %c0_178 = arith.constant 0 : index
    %c0_179 = arith.constant 0 : index
    %c0_180 = arith.constant 0 : index
    %363 = vector.load %arg6[%c0_178, %c0_179, %c0_180] : memref<1x32x128xf32, #tpu.memory_space<vmem>>, vector<1x32x128xf32>
    %364 = vector.shape_cast %363 : vector<1x32x128xf32> to vector<32x128xf32>
    %cst_181 = arith.constant dense<0.000000e+00> : vector<1x128xf32>
    %365 = tpu.matmul %362, %364, %cst_181 {dimension_numbers = #tpu.dot_dimension_numbers<[1], [0], [0], [1], [0, 0, 1, 1], [], []>} : vector<1x32xf32>, vector<32x128xf32>, vector<1x128xf32> -> vector<1x128xf32>
    %c0_182 = arith.constant 0 : index
    %c0_183 = arith.constant 0 : index
    %c0_184 = arith.constant 0 : index
    %366 = vector.load %arg7[%c0_182, %c0_183, %c0_184] : memref<1x32x128xf32, #tpu.memory_space<vmem>>, vector<1x32x128xf32>
    %367 = vector.shape_cast %366 : vector<1x32x128xf32> to vector<32x128xf32>
    %cst_185 = arith.constant dense<0.000000e+00> : vector<1x128xf32>
    %368 = tpu.matmul %338, %367, %cst_185 {dimension_numbers = #tpu.dot_dimension_numbers<[1], [0], [0], [1], [0, 0, 1, 1], [], []>} : vector<1x32xf32>, vector<32x128xf32>, vector<1x128xf32> -> vector<1x128xf32>
    %369 = arith.addf %365, %368 : vector<1x128xf32>
    %c1_186 = arith.constant 1 : index
    %c0_187 = arith.constant 0 : index
    %370 = vector.load %arg8[%c1_186, %c0_187] : memref<2x128xf32, #tpu.memory_space<vmem>>, vector<1x128xf32>
    %371 = arith.addf %369, %370 : vector<1x128xf32>
    %372 = arith.negf %371 : vector<1x128xf32>
    %373 = math.exp %372 : vector<1x128xf32>
    %cst_188 = arith.constant 1.000000e+00 : f32
    %374 = vector.broadcast %cst_188 : f32 to vector<1x128xf32>
    %375 = arith.addf %374, %373 : vector<1x128xf32>
    %376 = arith.divf %374, %375 : vector<1x128xf32>
    %377 = math.tanh %371 : vector<1x128xf32>
    %378 = vector.extract_strided_slice %376 {offsets = [0, 0], sizes = [1, 32], strides = [1, 1]} : vector<1x128xf32> to vector<1x32xf32>
    %379 = vector.extract_strided_slice %376 {offsets = [0, 32], sizes = [1, 32], strides = [1, 1]} : vector<1x128xf32> to vector<1x32xf32>
    %380 = vector.extract_strided_slice %377 {offsets = [0, 64], sizes = [1, 32], strides = [1, 1]} : vector<1x128xf32> to vector<1x32xf32>
    %381 = vector.extract_strided_slice %376 {offsets = [0, 96], sizes = [1, 32], strides = [1, 1]} : vector<1x128xf32> to vector<1x32xf32>
    %382 = arith.mulf %379, %336 : vector<1x32xf32>
    %383 = arith.mulf %378, %380 : vector<1x32xf32>
    %384 = arith.addf %382, %383 : vector<1x32xf32>
    %385 = math.tanh %384 : vector<1x32xf32>
    %386 = arith.mulf %381, %385 : vector<1x32xf32>
    %c7_189 = arith.constant 7 : index
    %c0_190 = arith.constant 0 : index
    %387 = vector.load %arg14[%c7_189, %c0_190] : memref<8x32xf32, #tpu.memory_space<vmem>>, vector<1x32xf32>
    tpu.vector_store %arg14[%c7_189, %c0_190], %386 {strides = array<i32>} : memref<8x32xf32, #tpu.memory_space<vmem>>, vector<1x32xf32>,
    %c0_191 = arith.constant 0 : index
    %c0_192 = arith.constant 0 : index
    %388 = vector.load %arg14[%c0_191, %c0_192] : memref<8x32xf32, #tpu.memory_space<vmem>>, vector<8x32xf32>
    %c0_193 = arith.constant 0 : index
    %c0_194 = arith.constant 0 : index
    %389 = vector.load %arg9[%c0_193, %c0_194] : memref<32x32xf32, #tpu.memory_space<vmem>>, vector<32x32xf32>
    %cst_195 = arith.constant dense<0.000000e+00> : vector<8x32xf32>
    %390 = tpu.matmul %388, %389, %cst_195 {dimension_numbers = #tpu.dot_dimension_numbers<[1], [0], [0], [1], [0, 0, 1, 1], [], []>} : vector<8x32xf32>, vector<32x32xf32>, vector<8x32xf32> -> vector<8x32xf32>
    %c0_196 = arith.constant 0 : index
    %c0_197 = arith.constant 0 : index
    %391 = vector.load %arg10[%c0_196, %c0_197] : memref<1x32xf32, #tpu.memory_space<vmem>>, vector<1x32xf32>
    %392 = vector.broadcast %391 : vector<1x32xf32> to vector<8x32xf32>
    %393 = arith.addf %390, %392 : vector<8x32xf32>
    %c0_198 = arith.constant 0 : index
    %c0_199 = arith.constant 0 : index
    %394 = vector.load %arg11[%c0_198, %c0_199] : memref<8x32xf32, #tpu.memory_space<vmem>>, vector<8x32xf32>
    tpu.vector_store %arg11[%c0_198, %c0_199], %393 {strides = array<i32>} : memref<8x32xf32, #tpu.memory_space<vmem>>, vector<8x32xf32>,
    %395 = tpu.concatenate %362, %386 in 0 : vector<1x32xf32>, vector<1x32xf32> -> vector<2x32xf32>
    %c0_200 = arith.constant 0 : index
    %c0_201 = arith.constant 0 : index
    %396 = vector.load %arg12[%c0_200, %c0_201] : memref<2x32xf32, #tpu.memory_space<vmem>>, vector<2x32xf32>
    tpu.vector_store %arg12[%c0_200, %c0_201], %395 {strides = array<i32>} : memref<2x32xf32, #tpu.memory_space<vmem>>, vector<2x32xf32>,
    %397 = tpu.concatenate %360, %384 in 0 : vector<1x32xf32>, vector<1x32xf32> -> vector<2x32xf32>
    %c0_202 = arith.constant 0 : index
    %c0_203 = arith.constant 0 : index
    %398 = vector.load %arg13[%c0_202, %c0_203] : memref<2x32xf32, #tpu.memory_space<vmem>>, vector<2x32xf32>
    tpu.vector_store %arg13[%c0_202, %c0_203], %397 {strides = array<i32>} : memref<2x32xf32, #tpu.memory_space<vmem>>, vector<2x32xf32>,
    return
  }
  func.func @transform_0(%arg0: i32) -> (i32, i32) {
    %c0_i32 = arith.constant 0 : i32
    %c0_i32_0 = arith.constant 0 : i32
    %c0_i32_1 = arith.constant 0 : i32
    return %c0_i32, %c0_i32_0 : i32, i32
  }
  func.func @transform_1(%arg0: i32) -> (i32, i32) {
    %c0_i32 = arith.constant 0 : i32
    %c0_i32_0 = arith.constant 0 : i32
    %c0_i32_1 = arith.constant 0 : i32
    return %c0_i32, %c0_i32_0 : i32, i32
  }
  func.func @transform_2(%arg0: i32) -> (i32, i32) {
    %c0_i32 = arith.constant 0 : i32
    %c0_i32_0 = arith.constant 0 : i32
    %c0_i32_1 = arith.constant 0 : i32
    return %c0_i32, %c0_i32_0 : i32, i32
  }
  func.func @transform_3(%arg0: i32) -> (i32, i32) {
    %c0_i32 = arith.constant 0 : i32
    %c0_i32_0 = arith.constant 0 : i32
    %c0_i32_1 = arith.constant 0 : i32
    return %c0_i32, %c0_i32_0 : i32, i32
  }
  func.func @transform_4(%arg0: i32) -> (i32, i32) {
    %c0_i32 = arith.constant 0 : i32
    %c0_i32_0 = arith.constant 0 : i32
    %c0_i32_1 = arith.constant 0 : i32
    return %c0_i32, %c0_i32_0 : i32, i32
  }
  func.func @transform_5(%arg0: i32) -> (i32, i32, i32) {
    %c0_i32 = arith.constant 0 : i32
    %c0_i32_0 = arith.constant 0 : i32
    %c0_i32_1 = arith.constant 0 : i32
    %c0_i32_2 = arith.constant 0 : i32
    return %c0_i32, %c0_i32_0, %c0_i32_1 : i32, i32, i32
  }
  func.func @transform_6(%arg0: i32) -> (i32, i32, i32) {
    %c0_i32 = arith.constant 0 : i32
    %c0_i32_0 = arith.constant 0 : i32
    %c0_i32_1 = arith.constant 0 : i32
    %c0_i32_2 = arith.constant 0 : i32
    return %c0_i32, %c0_i32_0, %c0_i32_1 : i32, i32, i32
  }
  func.func @transform_7(%arg0: i32) -> (i32, i32) {
    %c0_i32 = arith.constant 0 : i32
    %c0_i32_0 = arith.constant 0 : i32
    %c0_i32_1 = arith.constant 0 : i32
    return %c0_i32, %c0_i32_0 : i32, i32
  }
  func.func @transform_8(%arg0: i32) -> (i32, i32) {
    %c0_i32 = arith.constant 0 : i32
    %c0_i32_0 = arith.constant 0 : i32
    %c0_i32_1 = arith.constant 0 : i32
    return %c0_i32, %c0_i32_0 : i32, i32
  }
  func.func @transform_9(%arg0: i32) -> (i32, i32) {
    %c0_i32 = arith.constant 0 : i32
    %c0_i32_0 = arith.constant 0 : i32
    %c0_i32_1 = arith.constant 0 : i32
    return %c0_i32, %c0_i32_0 : i32, i32
  }
  func.func @transform_10(%arg0: i32) -> (i32, i32) {
    %c0_i32 = arith.constant 0 : i32
    %c0_i32_0 = arith.constant 0 : i32
    %c0_i32_1 = arith.constant 0 : i32
    return %c0_i32, %c0_i32_0 : i32, i32
  }
  func.func @transform_11(%arg0: i32) -> (i32, i32) {
    %c0_i32 = arith.constant 0 : i32
    %c0_i32_0 = arith.constant 0 : i32
    %c0_i32_1 = arith.constant 0 : i32
    return %c0_i32, %c0_i32_0 : i32, i32
  }
  func.func @transform_12(%arg0: i32) -> (i32, i32) {
    %c0_i32 = arith.constant 0 : i32
    %c0_i32_0 = arith.constant 0 : i32
    %c0_i32_1 = arith.constant 0 : i32
    return %c0_i32, %c0_i32_0 : i32, i32
  }
}

</mosaic_0001>

<llo_original>
// kernel: tpu_custom_call.1
$region0: #{tpu_custom_call.1}
  #allocation0 [shape = 'u32[]', space=smem, size = 0x4, offset = 0x4, fixed_abs, tag = 'smem constant byte address 0x4 - core index']
  #allocation1 [shape = 'u32[144,128]{1,0:T(1,128)}', space=vmem, size = 0x12000, scoped, tag = 'internal scratch']
  #allocation2 [shape = 'f32[8,32]{1,0:T(8,128)}', space=vmem, size = 0x1000, scoped, tag = 'scratch operand']
  %s0 = inlined_call_operand.hbm [shape: f32[8,32], index: 0, kind: input, shape index: {}]
  %s1 = inlined_call_operand.vmem [shape: f32[2,32], index: 1, kind: input, shape index: {}]
  %s2 = inlined_call_operand.vmem [shape: f32[2,32], index: 2, kind: input, shape index: {}]
  %s3 = inlined_call_operand.hbm [shape: f32[32,128], index: 3, kind: input, shape index: {}]
  %s4 = inlined_call_operand.hbm [shape: f32[32,128], index: 4, kind: input, shape index: {}]
  %s5 = inlined_call_operand.hbm [shape: f32[1,32,128], index: 5, kind: input, shape index: {}]
  %s6 = inlined_call_operand.hbm [shape: f32[1,32,128], index: 6, kind: input, shape index: {}]
  %s7 = inlined_call_operand.vmem [shape: f32[2,128], index: 7, kind: input, shape index: {}]
  %s8 = inlined_call_operand.hbm [shape: f32[32,32], index: 8, kind: input, shape index: {}]
  %s9 = inlined_call_operand.vmem [shape: f32[1,32], index: 9, kind: input, shape index: {}]
  %s10 = inlined_call_operand.hbm [shape: f32[8,32], index: 10, kind: output, shape index: {0}]
  %s11 = inlined_call_operand.hbm [shape: f32[2,32], index: 11, kind: output, shape index: {1}]
  %s12 = inlined_call_operand.hbm [shape: f32[2,32], index: 12, kind: output, shape index: {2}]
  %13 = xla_tuple %s10, %s11, %s12
  %s14 = sld [smem:[#allocation0]]
  $region90: #{tpu_custom_call.1} parent=0
    _
  %s16 = ssub.s32 1, %s14
  %s17 = scalar_select 0, %s16, %s14
  $region1: #{tpu_custom_call.1} parent=0
    #allocation3 [shape = 'u8[4096]{0}', space=vmem, size = 0x1000, scoped, tag = 'input window, operand 0, single buffered']
    #allocation4 [shape = 's32[1]{0}', space=sflag, size = 0x4, scoped, tag = 'scoped memory for tpu_custom_call.1']
    #allocation5 [shape = 's32[1]{0}', space=sflag, size = 0x4, scoped, tag = 'scoped memory for tpu_custom_call.1']
    #allocation6 [shape = 'u8[16384]{0}', space=vmem, size = 0x4000, scoped, tag = 'input window, operand 3, single buffered']
    #allocation7 [shape = 's32[1]{0}', space=sflag, size = 0x4, scoped, tag = 'scoped memory for tpu_custom_call.1']
    #allocation8 [shape = 'u8[16384]{0}', space=vmem, size = 0x4000, scoped, tag = 'input window, operand 4, single buffered']
    #allocation9 [shape = 'u8[16384]{0}', space=vmem, size = 0x4000, scoped, tag = 'input window, operand 5, single buffered']
    #allocation10 [shape = 's32[1]{0}', space=sflag, size = 0x4, scoped, tag = 'scoped memory for tpu_custom_call.1']
    #allocation11 [shape = 'u8[16384]{0}', space=vmem, size = 0x4000, scoped, tag = 'input window, operand 6, single buffered']
    #allocation12 [shape = 'u8[16384]{0}', space=vmem, size = 0x4000, scoped, tag = 'input window, operand 8, single buffered']
    #allocation13 [shape = 's32[1]{0}', space=sflag, size = 0x4, scoped, tag = 'scoped memory for tpu_custom_call.1']
    #allocation14 [shape = 'u8[4096]{0}', space=vmem, size = 0x1000, scoped, tag = 'output window, operand 0, single buffered']
    #allocation15 [shape = 'u8[1024]{0}', space=vmem, size = 0x400, scoped, tag = 'output window, operand 1, single buffered']
    #allocation16 [shape = 's32[1]{0}', space=sflag, size = 0x4, scoped, tag = 'scoped memory for tpu_custom_call.1']
    #allocation17 [shape = 'u8[1024]{0}', space=vmem, size = 0x400, scoped, tag = 'output window, operand 2, single buffered']
    %18 = vsyncpa [#allocation4], 0
    %19 = vsyncpa [#allocation7], 0
    %20 = vsyncpa [#allocation10], 0
    %21 = vsyncpa [#allocation13], 0
    %22 = vsyncpa [#allocation5], 0
    %23 = vsyncpa [#allocation16], 0
    // Predicated region
    $region2: #{tpu_custom_call.1} parent=1 // pred_check
      _
    $region3: #{tpu_custom_call.1} parent=1 // pred_check_branch
      %25 = sbr.rel (0) target = $region5
    $region4: #{tpu_custom_call.1} parent=1 // pred_region
      %s27 = ssub.s32 128, 128
      %28 = vsyncadd [#allocation4], %s27
      %s30 = sshll.u32 [#allocation3], 4
      %s31 = int_to_ptr.vmem [resolvable:$true] %s30
      %33 = dma.hbm_to_vmem [thread:$0]  %s0, 128, %s31, [#allocation4]
    $region5: #{tpu_custom_call.1} parent=1 // pred_fallthru
      _
    // Predicated region
    $region6: #{tpu_custom_call.1} parent=1 // pred_check
      _
    $region7: #{tpu_custom_call.1} parent=1 // pred_check_branch
      %35 = sbr.rel (0) target = $region9
    $region8: #{tpu_custom_call.1} parent=1 // pred_region
      _
    $region9: #{tpu_custom_call.1} parent=1 // pred_fallthru
      _
    // Predicated region
    $region10: #{tpu_custom_call.1} parent=1 // pred_check
      _
    $region11: #{tpu_custom_call.1} parent=1 // pred_check_branch
      %37 = sbr.rel (0) target = $region13
    $region12: #{tpu_custom_call.1} parent=1 // pred_region
      _
    $region13: #{tpu_custom_call.1} parent=1 // pred_fallthru
      _
    // Predicated region
    $region14: #{tpu_custom_call.1} parent=1 // pred_check
      _
    $region15: #{tpu_custom_call.1} parent=1 // pred_check_branch
      %39 = sbr.rel (0) target = $region17
    $region16: #{tpu_custom_call.1} parent=1 // pred_region
      %s41 = ssub.s32 512, 512
      %42 = vsyncadd [#allocation7], %s41
      %s43 = sshll.u32 [#allocation6], 4
      %s44 = int_to_ptr.vmem [resolvable:$true] %s43
      %49 = dma.hbm_to_vmem [thread:$0]  %s3, 512, %s44, [#allocation7], 128, 128, 8
    $region17: #{tpu_custom_call.1} parent=1 // pred_fallthru
      _
    // Predicated region
    $region18: #{tpu_custom_call.1} parent=1 // pred_check
      _
    $region19: #{tpu_custom_call.1} parent=1 // pred_check_branch
      %51 = sbr.rel (0) target = $region21
    $region20: #{tpu_custom_call.1} parent=1 // pred_region
      %s53 = ssub.s32 512, 512
      %54 = vsyncadd [#allocation7], %s53
      %s55 = sshll.u32 [#allocation8], 4
      %s56 = int_to_ptr.vmem [resolvable:$true] %s55
      %61 = dma.hbm_to_vmem [thread:$0]  %s4, 512, %s56, [#allocation7], 128, 128, 8
    $region21: #{tpu_custom_call.1} parent=1 // pred_fallthru
      _
    // Predicated region
    $region22: #{tpu_custom_call.1} parent=1 // pred_check
      _
    $region23: #{tpu_custom_call.1} parent=1 // pred_check_branch
      %63 = sbr.rel (0) target = $region25
    $region24: #{tpu_custom_call.1} parent=1 // pred_region
      %s65 = ssub.s32 512, 512
      %66 = vsyncadd [#allocation10], %s65
      %s67 = sshll.u32 [#allocation9], 4
      %s68 = int_to_ptr.vmem [resolvable:$true] %s67
      %73 = dma.hbm_to_vmem [thread:$0]  %s5, 512, %s68, [#allocation10], 128, 128, 8
    $region25: #{tpu_custom_call.1} parent=1 // pred_fallthru
      _
    // Predicated region
    $region26: #{tpu_custom_call.1} parent=1 // pred_check
      _
    $region27: #{tpu_custom_call.1} parent=1 // pred_check_branch
      %75 = sbr.rel (0) target = $region29
    $region28: #{tpu_custom_call.1} parent=1 // pred_region
      %s77 = ssub.s32 512, 512
      %78 = vsyncadd [#allocation10], %s77
      %s79 = sshll.u32 [#allocation11], 4
      %s80 = int_to_ptr.vmem [resolvable:$true] %s79
      %85 = dma.hbm_to_vmem [thread:$0]  %s6, 512, %s80, [#allocation10], 128, 128, 8
    $region29: #{tpu_custom_call.1} parent=1 // pred_fallthru
      _
    // Predicated region
    $region30: #{tpu_custom_call.1} parent=1 // pred_check
      _
    $region31: #{tpu_custom_call.1} parent=1 // pred_check_branch
      %87 = sbr.rel (0) target = $region33
    $region32: #{tpu_custom_call.1} parent=1 // pred_region
      _
    $region33: #{tpu_custom_call.1} parent=1 // pred_fallthru
      _
    // Predicated region
    $region34: #{tpu_custom_call.1} parent=1 // pred_check
      _
    $region35: #{tpu_custom_call.1} parent=1 // pred_check_branch
      %89 = sbr.rel (0) target = $region37
    $region36: #{tpu_custom_call.1} parent=1 // pred_region
      %s91 = ssub.s32 512, 512
      %92 = vsyncadd [#allocation13], %s91
      %s93 = sshll.u32 [#allocation12], 4
      %s94 = int_to_ptr.vmem [resolvable:$true] %s93
      %99 = dma.hbm_to_vmem [thread:$0]  %s8, 512, %s94, [#allocation13], 128, 128, 8
    $region37: #{tpu_custom_call.1} parent=1 // pred_fallthru
      _
    // Predicated region
    $region38: #{tpu_custom_call.1} parent=1 // pred_check
      _
    $region39: #{tpu_custom_call.1} parent=1 // pred_check_branch
      %101 = sbr.rel (0) target = $region41
    $region40: #{tpu_custom_call.1} parent=1 // pred_region
      _
    $region41: #{tpu_custom_call.1} parent=1 // pred_fallthru
      _
    // Predicated region
    $region42: #{tpu_custom_call.1} parent=1 // pred_check
      _
    $region43: #{tpu_custom_call.1} parent=1 // pred_check_branch
      %103 = sbr.rel (0) target = $region45
    $region44: #{tpu_custom_call.1} parent=1 // pred_region
      %104 = dma.done [#allocation4], 128
    $region45: #{tpu_custom_call.1} parent=1 // pred_fallthru
      _
    // Predicated region
    $region46: #{tpu_custom_call.1} parent=1 // pred_check
      _
    $region47: #{tpu_custom_call.1} parent=1 // pred_check_branch
      %106 = sbr.rel (0) target = $region49
    $region48: #{tpu_custom_call.1} parent=1 // pred_region
      %107 = dma.done [#allocation7], 512
    $region49: #{tpu_custom_call.1} parent=1 // pred_fallthru
      _
    // Predicated region
    $region50: #{tpu_custom_call.1} parent=1 // pred_check
      _
    $region51: #{tpu_custom_call.1} parent=1 // pred_check_branch
      %109 = sbr.rel (0) target = $region53
    $region52: #{tpu_custom_call.1} parent=1 // pred_region
      %110 = dma.done [#allocation7], 512
    $region53: #{tpu_custom_call.1} parent=1 // pred_fallthru
      _
    // Predicated region
    $region54: #{tpu_custom_call.1} parent=1 // pred_check
      _
    $region55: #{tpu_custom_call.1} parent=1 // pred_check_branch
      %112 = sbr.rel (0) target = $region57
    $region56: #{tpu_custom_call.1} parent=1 // pred_region
      %113 = dma.done [#allocation10], 512
    $region57: #{tpu_custom_call.1} parent=1 // pred_fallthru
      _
    // Predicated region
    $region58: #{tpu_custom_call.1} parent=1 // pred_check
      _
    $region59: #{tpu_custom_call.1} parent=1 // pred_check_branch
      %115 = sbr.rel (0) target = $region61
    $region60: #{tpu_custom_call.1} parent=1 // pred_region
      %116 = dma.done [#allocation10], 512
    $region61: #{tpu_custom_call.1} parent=1 // pred_fallthru
      _
    // Predicated region
    $region62: #{tpu_custom_call.1} parent=1 // pred_check
      _
    $region63: #{tpu_custom_call.1} parent=1 // pred_check_branch
      %118 = sbr.rel (0) target = $region65
    $region64: #{tpu_custom_call.1} parent=1 // pred_region
      %119 = dma.done [#allocation13], 512
    $region65: #{tpu_custom_call.1} parent=1 // pred_fallthru
      _
    %v120 = vld [vmem:[%s1] sm:$0x1]
    %v121 = vld [vmem:[%s1 + $0x1] sm:$0x1]
    %v122 = vld [vmem:[%s2] sm:$0x1]
    %v123 = vld [vmem:[%s2 + $0x1] sm:$0x1]
    %v124 = vld [vmem:[#allocation3] sm:$0x1]
    %v125 = vld [vmem:[#allocation6] sm:$0xff]
    %v126 = vld [vmem:[#allocation6 + $0x8] sm:$0xff]
    %v127 = vld [vmem:[#allocation6 + $0x10] sm:$0xff]
    %v128 = vld [vmem:[#allocation6 + $0x18] sm:$0xff]
    %v129 = vld [vmem:[#allocation8] sm:$0xff]
    %v130 = vld [vmem:[#allocation8 + $0x8] sm:$0xff]
    %v131 = vld [vmem:[#allocation8 + $0x10] sm:$0xff]
    %v132 = vld [vmem:[#allocation8 + $0x18] sm:$0xff]
    %vm133 = vcmask 261120
    %v135 = vsel %vm133, %v120, 0
    %137 = vmatprep.subr.mxu0 0.0
    %138 = vmatpush1.msra.mxu0 %v129
    %139 = vmatprep.subr.mxu0 0.0
    %140 = vmatpush1.msra.mxu0 %v130
    %141 = vmatprep.subr.mxu0 0.0
    %142 = vmatpush1.msra.mxu0 %v131
    %143 = vmatprep.subr.mxu0 0.0
    %144 = vmatpush1.msra.mxu0 %v132
    %145 = vmatprep.subr.mxu0 0.0
    %146 = vmatpush1.msra.mxu0 0.0
    %147 = vmatprep.subr.mxu0 0.0
    %148 = vmatpush1.msra.mxu0 0.0
    %149 = vmatprep.subr.mxu0 0.0
    %150 = vmatpush1.msra.mxu0 0.0
    %151 = vmatprep.subr.mxu0 0.0
    %152 = vmatpush1.msra.mxu0 0.0
    %153 = vmatprep.subr.mxu0 0.0
    %154 = vmatpush1.msra.mxu0 0.0
    %155 = vmatprep.subr.mxu0 0.0
    %156 = vmatpush1.msra.mxu0 0.0
    %157 = vmatprep.subr.mxu0 0.0
    %158 = vmatpush1.msra.mxu0 0.0
    %159 = vmatprep.subr.mxu0 0.0
    %160 = vmatpush1.msra.mxu0 0.0
    %161 = vmatprep.subr.mxu0 0.0
    %162 = vmatpush1.msra.mxu0 0.0
    %163 = vmatprep.subr.mxu0 0.0
    %164 = vmatpush1.msra.mxu0 0.0
    %165 = vmatprep.subr.mxu0 0.0
    %166 = vmatpush1.msra.mxu0 0.0
    %167 = vmatprep.subr.mxu0 0.0
    %168 = vmatpush1.msra.mxu0 0.0
    %169 = vmatprep.subr.mxu0 0.0
    %170 = vmatpush1.msra.mxu0 0.0
    %171 = vmatprep.subr.mxu0 0.0
    %172 = vmatpush1.msra.mxu0 0.0
    %173 = vmatprep.subr.mxu0 0.0
    %174 = vmatpush1.msra.mxu0 0.0
    %175 = vmatprep.subr.mxu0 0.0
    %176 = vmatpush1.msra.mxu0 0.0
    %177 = vmatprep.subr.mxu0 0.0
    %178 = vmatpush1.msra.mxu0 0.0
    %179 = vmatprep.subr.mxu0 0.0
    %180 = vmatpush1.msra.mxu0 0.0
    %181 = vmatprep.subr.mxu0 0.0
    %182 = vmatpush1.msra.mxu0 0.0
    %183 = vmatprep.subr.mxu0 0.0
    %184 = vmatpush1.msra.mxu0 0.0
    %185 = vmatprep.subr.mxu0 0.0
    %186 = vmatpush1.msra.mxu0 0.0
    %187 = vmatprep.subr.mxu0 0.0
    %188 = vmatpush1.msra.mxu0 0.0
    %189 = vmatprep.subr.mxu0 0.0
    %190 = vmatpush1.msra.mxu0 0.0
    %191 = vmatprep.subr.mxu0 0.0
    %192 = vmatpush1.msra.mxu0 0.0
    %193 = vmatprep.subr.mxu0 0.0
    %194 = vmatpush1.msra.mxu0 0.0
    %195 = vmatprep.subr.mxu0 0.0
    %196 = vmatpush1.msra.mxu0 0.0
    %197 = vmatprep.subr.mxu0 0.0
    %198 = vmatpush1.msra.mxu0 0.0
    %199 = vmatprep.subr.mxu0 0.0
    %200 = vmatpush1.msra.mxu0 0.0
    %201 = vmatprep.mubr.f32.mxu0 0.0
    %202 = vmatmul.mubr.f32.gmra.mrb[0].mxu0 %v135
    %v203 = vpop.f32.mrb[0].mxu0
    %v204 = vadd.f32 0.0, %v203
    %v205 = vpop.f32.mrb[0].mxu0
    %206 = vdwg.mxu0
    %v208 = vsel %vm133, %v124, 0
    %210 = vmatprep.subr.mxu0 0.0
    %211 = vmatpush1.msra.mxu0 %v125
    %212 = vmatprep.subr.mxu0 0.0
    %213 = vmatpush1.msra.mxu0 %v126
    %214 = vmatprep.subr.mxu0 0.0
    %215 = vmatpush1.msra.mxu0 %v127
    %216 = vmatprep.subr.mxu0 0.0
    %217 = vmatpush1.msra.mxu0 %v128
    %218 = vmatprep.subr.mxu0 0.0
    %219 = vmatpush1.msra.mxu0 0.0
    %220 = vmatprep.subr.mxu0 0.0
    %221 = vmatpush1.msra.mxu0 0.0
    %222 = vmatprep.subr.mxu0 0.0
    %223 = vmatpush1.msra.mxu0 0.0
    %224 = vmatprep.subr.mxu0 0.0
    %225 = vmatpush1.msra.mxu0 0.0
    %226 = vmatprep.subr.mxu0 0.0
    %227 = vmatpush1.msra.mxu0 0.0
    %228 = vmatprep.subr.mxu0 0.0
    %229 = vmatpush1.msra.mxu0 0.0
    %230 = vmatprep.subr.mxu0 0.0
    %231 = vmatpush1.msra.mxu0 0.0
    %232 = vmatprep.subr.mxu0 0.0
    %233 = vmatpush1.msra.mxu0 0.0
    %234 = vmatprep.subr.mxu0 0.0
    %235 = vmatpush1.msra.mxu0 0.0
    %236 = vmatprep.subr.mxu0 0.0
    %237 = vmatpush1.msra.mxu0 0.0
    %238 = vmatprep.subr.mxu0 0.0
    %239 = vmatpush1.msra.mxu0 0.0
    %240 = vmatprep.subr.mxu0 0.0
    %241 = vmatpush1.msra.mxu0 0.0
    %242 = vmatprep.subr.mxu0 0.0
    %243 = vmatpush1.msra.mxu0 0.0
    %244 = vmatprep.subr.mxu0 0.0
    %245 = vmatpush1.msra.mxu0 0.0
    %246 = vmatprep.subr.mxu0 0.0
    %247 = vmatpush1.msra.mxu0 0.0
    %248 = vmatprep.subr.mxu0 0.0
    %249 = vmatpush1.msra.mxu0 0.0
    %250 = vmatprep.subr.mxu0 0.0
    %251 = vmatpush1.msra.mxu0 0.0
    %252 = vmatprep.subr.mxu0 0.0
    %253 = vmatpush1.msra.mxu0 0.0
    %254 = vmatprep.subr.mxu0 0.0
    %255 = vmatpush1.msra.mxu0 0.0
    %256 = vmatprep.subr.mxu0 0.0
    %257 = vmatpush1.msra.mxu0 0.0
    %258 = vmatprep.subr.mxu0 0.0
    %259 = vmatpush1.msra.mxu0 0.0
    %260 = vmatprep.subr.mxu0 0.0
    %261 = vmatpush1.msra.mxu0 0.0
    %262 = vmatprep.subr.mxu0 0.0
    %263 = vmatpush1.msra.mxu0 0.0
    %264 = vmatprep.subr.mxu0 0.0
    %265 = vmatpush1.msra.mxu0 0.0
    %266 = vmatprep.subr.mxu0 0.0
    %267 = vmatpush1.msra.mxu0 0.0
    %268 = vmatprep.subr.mxu0 0.0
    %269 = vmatpush1.msra.mxu0 0.0
    %270 = vmatprep.subr.mxu0 0.0
    %271 = vmatpush1.msra.mxu0 0.0
    %272 = vmatprep.subr.mxu0 0.0
    %273 = vmatpush1.msra.mxu0 0.0
    %274 = vmatprep.mubr.f32.mxu0 0.0
    %275 = vmatmul.mubr.f32.gmra.mrb[0].mxu0 %v208
    %v276 = vpop.f32.mrb[0].mxu0
    %v277 = vadd.f32 %v204, %v276
    %v278 = vpop.f32.mrb[0].mxu0
    %279 = vdwg.mxu0
    %v280 = vld [vmem:[%s7] sm:$0x1]
    %v281 = vadd.f32 %v277, %v280
    %v282 = vxor.u32 %v281, 2147483648
    %v283 = vmul.f32 %v282, 1.442695
    %v284 = vpow.pop %v283
    %v285 = vadd.f32 %v284, 1.0
    %v286 = vrcp.pop %v285
    %v287 = vmul.f32 1.0, %v286
    %v288 = vtanh.pop %v281
    %290 = vrot.lane.b32.xlu0 %v122, 32
    %v291 = vpop.permute.xlu0 %290
    %v293 = vmul.f32 %v287, %v291
    %295 = vrot.lane.b32.xlu0 %v288, 64
    %v296 = vpop.permute.xlu0 %295
    %v298 = vmul.f32 %v287, %v296
    %300 = vrot.lane.b32.xlu0 %v298, 32
    %v301 = vpop.permute.xlu0 %300
    %v303 = vadd.f32 %v293, %v301
    %v304 = vtanh.pop %v303
    %306 = vrot.lane.b32.xlu0 %v304, 64
    %v307 = vpop.permute.xlu0 %306
    %v309 = vmul.f32 %v287, %v307
    %v310 = vld [vmem:[#allocation9] sm:$0xff]
    %v311 = vld [vmem:[#allocation9 + $0x8] sm:$0xff]
    %v312 = vld [vmem:[#allocation9 + $0x10] sm:$0xff]
    %v313 = vld [vmem:[#allocation9 + $0x18] sm:$0xff]
    %v314 = vld [vmem:[#allocation11] sm:$0xff]
    %v315 = vld [vmem:[#allocation11 + $0x8] sm:$0xff]
    %v316 = vld [vmem:[#allocation11 + $0x10] sm:$0xff]
    %v317 = vld [vmem:[#allocation11 + $0x18] sm:$0xff]
    %v319 = vsel %vm133, %v121, 0
    %321 = vmatprep.subr.mxu0 0.0
    %322 = vmatpush1.msra.mxu0 %v314
    %323 = vmatprep.subr.mxu0 0.0
    %324 = vmatpush1.msra.mxu0 %v315
    %325 = vmatprep.subr.mxu0 0.0
    %326 = vmatpush1.msra.mxu0 %v316
    %327 = vmatprep.subr.mxu0 0.0
    %328 = vmatpush1.msra.mxu0 %v317
    %329 = vmatprep.subr.mxu0 0.0
    %330 = vmatpush1.msra.mxu0 0.0
    %331 = vmatprep.subr.mxu0 0.0
    %332 = vmatpush1.msra.mxu0 0.0
    %333 = vmatprep.subr.mxu0 0.0
    %334 = vmatpush1.msra.mxu0 0.0
    %335 = vmatprep.subr.mxu0 0.0
    %336 = vmatpush1.msra.mxu0 0.0
    %337 = vmatprep.subr.mxu0 0.0
    %338 = vmatpush1.msra.mxu0 0.0
    %339 = vmatprep.subr.mxu0 0.0
    %340 = vmatpush1.msra.mxu0 0.0
    %341 = vmatprep.subr.mxu0 0.0
    %342 = vmatpush1.msra.mxu0 0.0
    %343 = vmatprep.subr.mxu0 0.0
    %344 = vmatpush1.msra.mxu0 0.0
    %345 = vmatprep.subr.mxu0 0.0
    %346 = vmatpush1.msra.mxu0 0.0
    %347 = vmatprep.subr.mxu0 0.0
    %348 = vmatpush1.msra.mxu0 0.0
    %349 = vmatprep.subr.mxu0 0.0
    %350 = vmatpush1.msra.mxu0 0.0
    %351 = vmatprep.subr.mxu0 0.0
    %352 = vmatpush1.msra.mxu0 0.0
    %353 = vmatprep.subr.mxu0 0.0
    %354 = vmatpush1.msra.mxu0 0.0
    %355 = vmatprep.subr.mxu0 0.0
    %356 = vmatpush1.msra.mxu0 0.0
    %357 = vmatprep.subr.mxu0 0.0
    %358 = vmatpush1.msra.mxu0 0.0
    %359 = vmatprep.subr.mxu0 0.0
    %360 = vmatpush1.msra.mxu0 0.0
    %361 = vmatprep.subr.mxu0 0.0
    %362 = vmatpush1.msra.mxu0 0.0
    %363 = vmatprep.subr.mxu0 0.0
    %364 = vmatpush1.msra.mxu0 0.0
    %365 = vmatprep.subr.mxu0 0.0
    %366 = vmatpush1.msra.mxu0 0.0
    %367 = vmatprep.subr.mxu0 0.0
    %368 = vmatpush1.msra.mxu0 0.0
    %369 = vmatprep.subr.mxu0 0.0
    %370 = vmatpush1.msra.mxu0 0.0
    %371 = vmatprep.subr.mxu0 0.0
    %372 = vmatpush1.msra.mxu0 0.0
    %373 = vmatprep.subr.mxu0 0.0
    %374 = vmatpush1.msra.mxu0 0.0
    %375 = vmatprep.subr.mxu0 0.0
    %376 = vmatpush1.msra.mxu0 0.0
    %377 = vmatprep.subr.mxu0 0.0
    %378 = vmatpush1.msra.mxu0 0.0
    %379 = vmatprep.subr.mxu0 0.0
    %380 = vmatpush1.msra.mxu0 0.0
    %381 = vmatprep.subr.mxu0 0.0
    %382 = vmatpush1.msra.mxu0 0.0
    %383 = vmatprep.subr.mxu0 0.0
    %384 = vmatpush1.msra.mxu0 0.0
    %385 = vmatprep.mubr.f32.mxu0 0.0
    %386 = vmatmul.mubr.f32.gmra.mrb[0].mxu0 %v319
    %v387 = vpop.f32.mrb[0].mxu0
    %v388 = vadd.f32 0.0, %v387
    %v389 = vpop.f32.mrb[0].mxu0
    %390 = vdwg.mxu0
    %392 = vrot.lane.b32.xlu0 %v309, 32
    %v393 = vpop.permute.xlu0 %392
    %v394 = vsel %vm133, %v393, 0
    %396 = vmatprep.subr.mxu0 0.0
    %397 = vmatpush1.msra.mxu0 %v310
    %398 = vmatprep.subr.mxu0 0.0
    %399 = vmatpush1.msra.mxu0 %v311
    %400 = vmatprep.subr.mxu0 0.0
    %401 = vmatpush1.msra.mxu0 %v312
    %402 = vmatprep.subr.mxu0 0.0
    %403 = vmatpush1.msra.mxu0 %v313
    %404 = vmatprep.subr.mxu0 0.0
    %405 = vmatpush1.msra.mxu0 0.0
    %406 = vmatprep.subr.mxu0 0.0
    %407 = vmatpush1.msra.mxu0 0.0
    %408 = vmatprep.subr.mxu0 0.0
    %409 = vmatpush1.msra.mxu0 0.0
    %410 = vmatprep.subr.mxu0 0.0
    %411 = vmatpush1.msra.mxu0 0.0
    %412 = vmatprep.subr.mxu0 0.0
    %413 = vmatpush1.msra.mxu0 0.0
    %414 = vmatprep.subr.mxu0 0.0
    %415 = vmatpush1.msra.mxu0 0.0
    %416 = vmatprep.subr.mxu0 0.0
    %417 = vmatpush1.msra.mxu0 0.0
    %418 = vmatprep.subr.mxu0 0.0
    %419 = vmatpush1.msra.mxu0 0.0
    %420 = vmatprep.subr.mxu0 0.0
    %421 = vmatpush1.msra.mxu0 0.0
    %422 = vmatprep.subr.mxu0 0.0
    %423 = vmatpush1.msra.mxu0 0.0
    %424 = vmatprep.subr.mxu0 0.0
    %425 = vmatpush1.msra.mxu0 0.0
    %426 = vmatprep.subr.mxu0 0.0
    %427 = vmatpush1.msra.mxu0 0.0
    %428 = vmatprep.subr.mxu0 0.0
    %429 = vmatpush1.msra.mxu0 0.0
    %430 = vmatprep.subr.mxu0 0.0
    %431 = vmatpush1.msra.mxu0 0.0
    %432 = vmatprep.subr.mxu0 0.0
    %433 = vmatpush1.msra.mxu0 0.0
    %434 = vmatprep.subr.mxu0 0.0
    %435 = vmatpush1.msra.mxu0 0.0
    %436 = vmatprep.subr.mxu0 0.0
    %437 = vmatpush1.msra.mxu0 0.0
    %438 = vmatprep.subr.mxu0 0.0
    %439 = vmatpush1.msra.mxu0 0.0
    %440 = vmatprep.subr.mxu0 0.0
    %441 = vmatpush1.msra.mxu0 0.0
    %442 = vmatprep.subr.mxu0 0.0
    %443 = vmatpush1.msra.mxu0 0.0
    %444 = vmatprep.subr.mxu0 0.0
    %445 = vmatpush1.msra.mxu0 0.0
    %446 = vmatprep.subr.mxu0 0.0
    %447 = vmatpush1.msra.mxu0 0.0
    %448 = vmatprep.subr.mxu0 0.0
    %449 = vmatpush1.msra.mxu0 0.0
    %450 = vmatprep.subr.mxu0 0.0
    %451 = vmatpush1.msra.mxu0 0.0
    %452 = vmatprep.subr.mxu0 0.0
    %453 = vmatpush1.msra.mxu0 0.0
    %454 = vmatprep.subr.mxu0 0.0
    %455 = vmatpush1.msra.mxu0 0.0
    %456 = vmatprep.subr.mxu0 0.0
    %457 = vmatpush1.msra.mxu0 0.0
    %458 = vmatprep.subr.mxu0 0.0
    %459 = vmatpush1.msra.mxu0 0.0
    %460 = vmatprep.mubr.f32.mxu0 0.0
    %461 = vmatmul.mubr.f32.gmra.mrb[0].mxu0 %v394
    %v462 = vpop.f32.mrb[0].mxu0
    %v463 = vadd.f32 %v388, %v462
    %v464 = vpop.f32.mrb[0].mxu0
    %465 = vdwg.mxu0
    %v466 = vld [vmem:[%s7 + $0x1] sm:$0x1]
    %v467 = vadd.f32 %v463, %v466
    %v468 = vxor.u32 %v467, 2147483648
    %v469 = vmul.f32 %v468, 1.442695
    %v470 = vpow.pop %v469
    %v471 = vadd.f32 %v470, 1.0
    %v472 = vrcp.pop %v471
    %v473 = vmul.f32 1.0, %v472
    %v474 = vtanh.pop %v467
    %476 = vrot.lane.b32.xlu0 %v123, 32
    %v477 = vpop.permute.xlu0 %476
    %v479 = vmul.f32 %v473, %v477
    %481 = vrot.lane.b32.xlu0 %v474, 64
    %v482 = vpop.permute.xlu0 %481
    %v484 = vmul.f32 %v473, %v482
    %486 = vrot.lane.b32.xlu0 %v484, 32
    %v487 = vpop.permute.xlu0 %486
    %v489 = vadd.f32 %v479, %v487
    %v490 = vtanh.pop %v489
    %492 = vrot.lane.b32.xlu0 %v490, 64
    %v493 = vpop.permute.xlu0 %492
    %v495 = vmul.f32 %v473, %v493
    %497 = vrot.lane.b32.xlu0 %v495, 32
    %v498 = vpop.permute.xlu0 %497
    %vm500 = vcmask 253952
    %501 = vst.msk [vmem:[#allocation2] sm:$0x1] %vm500, %v498
    %v502 = vld [vmem:[#allocation3 + $0x1] sm:$0x1]
    %v503 = vld [vmem:[#allocation6] sm:$0xff]
    %v504 = vld [vmem:[#allocation6 + $0x8] sm:$0xff]
    %v505 = vld [vmem:[#allocation6 + $0x10] sm:$0xff]
    %v506 = vld [vmem:[#allocation6 + $0x18] sm:$0xff]
    %v507 = vld [vmem:[#allocation8] sm:$0xff]
    %v508 = vld [vmem:[#allocation8 + $0x8] sm:$0xff]
    %v509 = vld [vmem:[#allocation8 + $0x10] sm:$0xff]
    %v510 = vld [vmem:[#allocation8 + $0x18] sm:$0xff]
    %511 = vmatprep.subr.mxu0 0.0
    %512 = vmatpush1.msra.mxu0 %v507
    %513 = vmatprep.subr.mxu0 0.0
    %514 = vmatpush1.msra.mxu0 %v508
    %515 = vmatprep.subr.mxu0 0.0
    %516 = vmatpush1.msra.mxu0 %v509
    %517 = vmatprep.subr.mxu0 0.0
    %518 = vmatpush1.msra.mxu0 %v510
    %519 = vmatprep.subr.mxu0 0.0
    %520 = vmatpush1.msra.mxu0 0.0
    %521 = vmatprep.subr.mxu0 0.0
    %522 = vmatpush1.msra.mxu0 0.0
    %523 = vmatprep.subr.mxu0 0.0
    %524 = vmatpush1.msra.mxu0 0.0
    %525 = vmatprep.subr.mxu0 0.0
    %526 = vmatpush1.msra.mxu0 0.0
    %527 = vmatprep.subr.mxu0 0.0
    %528 = vmatpush1.msra.mxu0 0.0
    %529 = vmatprep.subr.mxu0 0.0
    %530 = vmatpush1.msra.mxu0 0.0
    %531 = vmatprep.subr.mxu0 0.0
    %532 = vmatpush1.msra.mxu0 0.0
    %533 = vmatprep.subr.mxu0 0.0
    %534 = vmatpush1.msra.mxu0 0.0
    %535 = vmatprep.subr.mxu0 0.0
    %536 = vmatpush1.msra.mxu0 0.0
    %537 = vmatprep.subr.mxu0 0.0
    %538 = vmatpush1.msra.mxu0 0.0
    %539 = vmatprep.subr.mxu0 0.0
    %540 = vmatpush1.msra.mxu0 0.0
    %541 = vmatprep.subr.mxu0 0.0
    %542 = vmatpush1.msra.mxu0 0.0
    %543 = vmatprep.subr.mxu0 0.0
    %544 = vmatpush1.msra.mxu0 0.0
    %545 = vmatprep.subr.mxu0 0.0
    %546 = vmatpush1.msra.mxu0 0.0
    %547 = vmatprep.subr.mxu0 0.0
    %548 = vmatpush1.msra.mxu0 0.0
    %549 = vmatprep.subr.mxu0 0.0
    %550 = vmatpush1.msra.mxu0 0.0
    %551 = vmatprep.subr.mxu0 0.0
    %552 = vmatpush1.msra.mxu0 0.0
    %553 = vmatprep.subr.mxu0 0.0
    %554 = vmatpush1.msra.mxu0 0.0
    %555 = vmatprep.subr.mxu0 0.0
    %556 = vmatpush1.msra.mxu0 0.0
    %557 = vmatprep.subr.mxu0 0.0
    %558 = vmatpush1.msra.mxu0 0.0
    %559 = vmatprep.subr.mxu0 0.0
    %560 = vmatpush1.msra.mxu0 0.0
    %561 = vmatprep.subr.mxu0 0.0
    %562 = vmatpush1.msra.mxu0 0.0
    %563 = vmatprep.subr.mxu0 0.0
    %564 = vmatpush1.msra.mxu0 0.0
    %565 = vmatprep.subr.mxu0 0.0
    %566 = vmatpush1.msra.mxu0 0.0
    %567 = vmatprep.subr.mxu0 0.0
    %568 = vmatpush1.msra.mxu0 0.0
    %569 = vmatprep.subr.mxu0 0.0
    %570 = vmatpush1.msra.mxu0 0.0
    %571 = vmatprep.subr.mxu0 0.0
    %572 = vmatpush1.msra.mxu0 0.0
    %573 = vmatprep.subr.mxu0 0.0
    %574 = vmatpush1.msra.mxu0 0.0
    %575 = vmatprep.mubr.f32.mxu0 0.0
    %576 = vmatmul.mubr.f32.gmra.mrb[0].mxu0 %v394
    %v577 = vpop.f32.mrb[0].mxu0
    %v578 = vadd.f32 0.0, %v577
    %v579 = vpop.f32.mrb[0].mxu0
    %580 = vdwg.mxu0
    %v582 = vsel %vm133, %v502, 0
    %584 = vmatprep.subr.mxu0 0.0
    %585 = vmatpush1.msra.mxu0 %v503
    %586 = vmatprep.subr.mxu0 0.0
    %587 = vmatpush1.msra.mxu0 %v504
    %588 = vmatprep.subr.mxu0 0.0
    %589 = vmatpush1.msra.mxu0 %v505
    %590 = vmatprep.subr.mxu0 0.0
    %591 = vmatpush1.msra.mxu0 %v506
    %592 = vmatprep.subr.mxu0 0.0
    %593 = vmatpush1.msra.mxu0 0.0
    %594 = vmatprep.subr.mxu0 0.0
    %595 = vmatpush1.msra.mxu0 0.0
    %596 = vmatprep.subr.mxu0 0.0
    %597 = vmatpush1.msra.mxu0 0.0
    %598 = vmatprep.subr.mxu0 0.0
    %599 = vmatpush1.msra.mxu0 0.0
    %600 = vmatprep.subr.mxu0 0.0
    %601 = vmatpush1.msra.mxu0 0.0
    %602 = vmatprep.subr.mxu0 0.0
    %603 = vmatpush1.msra.mxu0 0.0
    %604 = vmatprep.subr.mxu0 0.0
    %605 = vmatpush1.msra.mxu0 0.0
    %606 = vmatprep.subr.mxu0 0.0
    %607 = vmatpush1.msra.mxu0 0.0
    %608 = vmatprep.subr.mxu0 0.0
    %609 = vmatpush1.msra.mxu0 0.0
    %610 = vmatprep.subr.mxu0 0.0
    %611 = vmatpush1.msra.mxu0 0.0
    %612 = vmatprep.subr.mxu0 0.0
    %613 = vmatpush1.msra.mxu0 0.0
    %614 = vmatprep.subr.mxu0 0.0
    %615 = vmatpush1.msra.mxu0 0.0
    %616 = vmatprep.subr.mxu0 0.0
    %617 = vmatpush1.msra.mxu0 0.0
    %618 = vmatprep.subr.mxu0 0.0
    %619 = vmatpush1.msra.mxu0 0.0
    %620 = vmatprep.subr.mxu0 0.0
    %621 = vmatpush1.msra.mxu0 0.0
    %622 = vmatprep.subr.mxu0 0.0
    %623 = vmatpush1.msra.mxu0 0.0
    %624 = vmatprep.subr.mxu0 0.0
    %625 = vmatpush1.msra.mxu0 0.0
    %626 = vmatprep.subr.mxu0 0.0
    %627 = vmatpush1.msra.mxu0 0.0
    %628 = vmatprep.subr.mxu0 0.0
    %629 = vmatpush1.msra.mxu0 0.0
    %630 = vmatprep.subr.mxu0 0.0
    %631 = vmatpush1.msra.mxu0 0.0
    %632 = vmatprep.subr.mxu0 0.0
    %633 = vmatpush1.msra.mxu0 0.0
    %634 = vmatprep.subr.mxu0 0.0
    %635 = vmatpush1.msra.mxu0 0.0
    %636 = vmatprep.subr.mxu0 0.0
    %637 = vmatpush1.msra.mxu0 0.0
    %638 = vmatprep.subr.mxu0 0.0
    %639 = vmatpush1.msra.mxu0 0.0
    %640 = vmatprep.subr.mxu0 0.0
    %641 = vmatpush1.msra.mxu0 0.0
    %642 = vmatprep.subr.mxu0 0.0
    %643 = vmatpush1.msra.mxu0 0.0
    %644 = vmatprep.subr.mxu0 0.0
    %645 = vmatpush1.msra.mxu0 0.0
    %646 = vmatprep.subr.mxu0 0.0
    %647 = vmatpush1.msra.mxu0 0.0
    %648 = vmatprep.mubr.f32.mxu0 0.0
    %649 = vmatmul.mubr.f32.gmra.mrb[0].mxu0 %v582
    %v650 = vpop.f32.mrb[0].mxu0
    %v651 = vadd.f32 %v578, %v650
    %v652 = vpop.f32.mrb[0].mxu0
    %653 = vdwg.mxu0
    %v654 = vld [vmem:[%s7] sm:$0x1]
    %v655 = vadd.f32 %v651, %v654
    %v656 = vxor.u32 %v655, 2147483648
    %v657 = vmul.f32 %v656, 1.442695
    %v658 = vpow.pop %v657
    %v659 = vadd.f32 %v658, 1.0
    %v660 = vrcp.pop %v659
    %v661 = vmul.f32 1.0, %v660
    %v662 = vtanh.pop %v655
    %v663 = vmul.f32 %v661, %v303
    %665 = vrot.lane.b32.xlu0 %v662, 64
    %v666 = vpop.permute.xlu0 %665
    %v668 = vmul.f32 %v661, %v666
    %670 = vrot.lane.b32.xlu0 %v668, 32
    %v671 = vpop.permute.xlu0 %670
    %v673 = vadd.f32 %v663, %v671
    %v674 = vtanh.pop %v673
    %676 = vrot.lane.b32.xlu0 %v674, 64
    %v677 = vpop.permute.xlu0 %676
    %v679 = vmul.f32 %v661, %v677
    %v680 = vld [vmem:[#allocation9] sm:$0xff]
    %v681 = vld [vmem:[#allocation9 + $0x8] sm:$0xff]
    %v682 = vld [vmem:[#allocation9 + $0x10] sm:$0xff]
    %v683 = vld [vmem:[#allocation9 + $0x18] sm:$0xff]
    %v684 = vld [vmem:[#allocation11] sm:$0xff]
    %v685 = vld [vmem:[#allocation11 + $0x8] sm:$0xff]
    %v686 = vld [vmem:[#allocation11 + $0x10] sm:$0xff]
    %v687 = vld [vmem:[#allocation11 + $0x18] sm:$0xff]
    %v688 = vsel %vm133, %v498, 0
    %690 = vmatprep.subr.mxu0 0.0
    %691 = vmatpush1.msra.mxu0 %v684
    %692 = vmatprep.subr.mxu0 0.0
    %693 = vmatpush1.msra.mxu0 %v685
    %694 = vmatprep.subr.mxu0 0.0
    %695 = vmatpush1.msra.mxu0 %v686
    %696 = vmatprep.subr.mxu0 0.0
    %697 = vmatpush1.msra.mxu0 %v687
    %698 = vmatprep.subr.mxu0 0.0
    %699 = vmatpush1.msra.mxu0 0.0
    %700 = vmatprep.subr.mxu0 0.0
    %701 = vmatpush1.msra.mxu0 0.0
    %702 = vmatprep.subr.mxu0 0.0
    %703 = vmatpush1.msra.mxu0 0.0
    %704 = vmatprep.subr.mxu0 0.0
    %705 = vmatpush1.msra.mxu0 0.0
    %706 = vmatprep.subr.mxu0 0.0
    %707 = vmatpush1.msra.mxu0 0.0
    %708 = vmatprep.subr.mxu0 0.0
    %709 = vmatpush1.msra.mxu0 0.0
    %710 = vmatprep.subr.mxu0 0.0
    %711 = vmatpush1.msra.mxu0 0.0
    %712 = vmatprep.subr.mxu0 0.0
    %713 = vmatpush1.msra.mxu0 0.0
    %714 = vmatprep.subr.mxu0 0.0
    %715 = vmatpush1.msra.mxu0 0.0
    %716 = vmatprep.subr.mxu0 0.0
    %717 = vmatpush1.msra.mxu0 0.0
    %718 = vmatprep.subr.mxu0 0.0
    %719 = vmatpush1.msra.mxu0 0.0
    %720 = vmatprep.subr.mxu0 0.0
    %721 = vmatpush1.msra.mxu0 0.0
    %722 = vmatprep.subr.mxu0 0.0
    %723 = vmatpush1.msra.mxu0 0.0
    %724 = vmatprep.subr.mxu0 0.0
    %725 = vmatpush1.msra.mxu0 0.0
    %726 = vmatprep.subr.mxu0 0.0
    %727 = vmatpush1.msra.mxu0 0.0
    %728 = vmatprep.subr.mxu0 0.0
    %729 = vmatpush1.msra.mxu0 0.0
    %730 = vmatprep.subr.mxu0 0.0
    %731 = vmatpush1.msra.mxu0 0.0
    %732 = vmatprep.subr.mxu0 0.0
    %733 = vmatpush1.msra.mxu0 0.0
    %734 = vmatprep.subr.mxu0 0.0
    %735 = vmatpush1.msra.mxu0 0.0
    %736 = vmatprep.subr.mxu0 0.0
    %737 = vmatpush1.msra.mxu0 0.0
    %738 = vmatprep.subr.mxu0 0.0
    %739 = vmatpush1.msra.mxu0 0.0
    %740 = vmatprep.subr.mxu0 0.0
    %741 = vmatpush1.msra.mxu0 0.0
    %742 = vmatprep.subr.mxu0 0.0
    %743 = vmatpush1.msra.mxu0 0.0
    %744 = vmatprep.subr.mxu0 0.0
    %745 = vmatpush1.msra.mxu0 0.0
    %746 = vmatprep.subr.mxu0 0.0
    %747 = vmatpush1.msra.mxu0 0.0
    %748 = vmatprep.subr.mxu0 0.0
    %749 = vmatpush1.msra.mxu0 0.0
    %750 = vmatprep.subr.mxu0 0.0
    %751 = vmatpush1.msra.mxu0 0.0
    %752 = vmatprep.subr.mxu0 0.0
    %753 = vmatpush1.msra.mxu0 0.0
    %754 = vmatprep.mubr.f32.mxu0 0.0
    %755 = vmatmul.mubr.f32.gmra.mrb[0].mxu0 %v688
    %v756 = vpop.f32.mrb[0].mxu0
    %v757 = vadd.f32 0.0, %v756
    %v758 = vpop.f32.mrb[0].mxu0
    %759 = vdwg.mxu0
    %761 = vrot.lane.b32.xlu0 %v679, 32
    %v762 = vpop.permute.xlu0 %761
    %v763 = vsel %vm133, %v762, 0
    %765 = vmatprep.subr.mxu0 0.0
    %766 = vmatpush1.msra.mxu0 %v680
    %767 = vmatprep.subr.mxu0 0.0
    %768 = vmatpush1.msra.mxu0 %v681
    %769 = vmatprep.subr.mxu0 0.0
    %770 = vmatpush1.msra.mxu0 %v682
    %771 = vmatprep.subr.mxu0 0.0
    %772 = vmatpush1.msra.mxu0 %v683
    %773 = vmatprep.subr.mxu0 0.0
    %774 = vmatpush1.msra.mxu0 0.0
    %775 = vmatprep.subr.mxu0 0.0
    %776 = vmatpush1.msra.mxu0 0.0
    %777 = vmatprep.subr.mxu0 0.0
    %778 = vmatpush1.msra.mxu0 0.0
    %779 = vmatprep.subr.mxu0 0.0
    %780 = vmatpush1.msra.mxu0 0.0
    %781 = vmatprep.subr.mxu0 0.0
    %782 = vmatpush1.msra.mxu0 0.0
    %783 = vmatprep.subr.mxu0 0.0
    %784 = vmatpush1.msra.mxu0 0.0
    %785 = vmatprep.subr.mxu0 0.0
    %786 = vmatpush1.msra.mxu0 0.0
    %787 = vmatprep.subr.mxu0 0.0
    %788 = vmatpush1.msra.mxu0 0.0
    %789 = vmatprep.subr.mxu0 0.0
    %790 = vmatpush1.msra.mxu0 0.0
    %791 = vmatprep.subr.mxu0 0.0
    %792 = vmatpush1.msra.mxu0 0.0
    %793 = vmatprep.subr.mxu0 0.0
    %794 = vmatpush1.msra.mxu0 0.0
    %795 = vmatprep.subr.mxu0 0.0
    %796 = vmatpush1.msra.mxu0 0.0
    %797 = vmatprep.subr.mxu0 0.0
    %798 = vmatpush1.msra.mxu0 0.0
    %799 = vmatprep.subr.mxu0 0.0
    %800 = vmatpush1.msra.mxu0 0.0
    %801 = vmatprep.subr.mxu0 0.0
    %802 = vmatpush1.msra.mxu0 0.0
    %803 = vmatprep.subr.mxu0 0.0
    %804 = vmatpush1.msra.mxu0 0.0
    %805 = vmatprep.subr.mxu0 0.0
    %806 = vmatpush1.msra.mxu0 0.0
    %807 = vmatprep.subr.mxu0 0.0
    %808 = vmatpush1.msra.mxu0 0.0
    %809 = vmatprep.subr.mxu0 0.0
    %810 = vmatpush1.msra.mxu0 0.0
    %811 = vmatprep.subr.mxu0 0.0
    %812 = vmatpush1.msra.mxu0 0.0
    %813 = vmatprep.subr.mxu0 0.0
    %814 = vmatpush1.msra.mxu0 0.0
    %815 = vmatprep.subr.mxu0 0.0
    %816 = vmatpush1.msra.mxu0 0.0
    %817 = vmatprep.subr.mxu0 0.0
    %818 = vmatpush1.msra.mxu0 0.0
    %819 = vmatprep.subr.mxu0 0.0
    %820 = vmatpush1.msra.mxu0 0.0
    %821 = vmatprep.subr.mxu0 0.0
    %822 = vmatpush1.msra.mxu0 0.0
    %823 = vmatprep.subr.mxu0 0.0
    %824 = vmatpush1.msra.mxu0 0.0
    %825 = vmatprep.subr.mxu0 0.0
    %826 = vmatpush1.msra.mxu0 0.0
    %827 = vmatprep.subr.mxu0 0.0
    %828 = vmatpush1.msra.mxu0 0.0
    %829 = vmatprep.mubr.f32.mxu0 0.0
    %830 = vmatmul.mubr.f32.gmra.mrb[0].mxu0 %v763
    %v831 = vpop.f32.mrb[0].mxu0
    %v832 = vadd.f32 %v757, %v831
    %v833 = vpop.f32.mrb[0].mxu0
    %834 = vdwg.mxu0
    %v835 = vld [vmem:[%s7 + $0x1] sm:$0x1]
    %v836 = vadd.f32 %v832, %v835
    %v837 = vxor.u32 %v836, 2147483648
    %v838 = vmul.f32 %v837, 1.442695
    %v839 = vpow.pop %v838
    %v840 = vadd.f32 %v839, 1.0
    %v841 = vrcp.pop %v840
    %v842 = vmul.f32 1.0, %v841
    %v843 = vtanh.pop %v836
    %v844 = vmul.f32 %v842, %v489
    %846 = vrot.lane.b32.xlu0 %v843, 64
    %v847 = vpop.permute.xlu0 %846
    %v849 = vmul.f32 %v842, %v847
    %851 = vrot.lane.b32.xlu0 %v849, 32
    %v852 = vpop.permute.xlu0 %851
    %v854 = vadd.f32 %v844, %v852
    %v855 = vtanh.pop %v854
    %857 = vrot.lane.b32.xlu0 %v855, 64
    %v858 = vpop.permute.xlu0 %857
    %v860 = vmul.f32 %v842, %v858
    %862 = vrot.lane.b32.xlu0 %v860, 32
    %v863 = vpop.permute.xlu0 %862
    %865 = vst.msk [vmem:[#allocation2 + $0x1] sm:$0x1] %vm500, %v863
    %v866 = vld [vmem:[#allocation3 + $0x2] sm:$0x1]
    %v867 = vld [vmem:[#allocation6] sm:$0xff]
    %v868 = vld [vmem:[#allocation6 + $0x8] sm:$0xff]
    %v869 = vld [vmem:[#allocation6 + $0x10] sm:$0xff]
    %v870 = vld [vmem:[#allocation6 + $0x18] sm:$0xff]
    %v871 = vld [vmem:[#allocation8] sm:$0xff]
    %v872 = vld [vmem:[#allocation8 + $0x8] sm:$0xff]
    %v873 = vld [vmem:[#allocation8 + $0x10] sm:$0xff]
    %v874 = vld [vmem:[#allocation8 + $0x18] sm:$0xff]
    %875 = vmatprep.subr.mxu0 0.0
    %876 = vmatpush1.msra.mxu0 %v871
    %877 = vmatprep.subr.mxu0 0.0
    %878 = vmatpush1.msra.mxu0 %v872
    %879 = vmatprep.subr.mxu0 0.0
    %880 = vmatpush1.msra.mxu0 %v873
    %881 = vmatprep.subr.mxu0 0.0
    %882 = vmatpush1.msra.mxu0 %v874
    %883 = vmatprep.subr.mxu0 0.0
    %884 = vmatpush1.msra.mxu0 0.0
    %885 = vmatprep.subr.mxu0 0.0
    %886 = vmatpush1.msra.mxu0 0.0
    %887 = vmatprep.subr.mxu0 0.0
    %888 = vmatpush1.msra.mxu0 0.0
    %889 = vmatprep.subr.mxu0 0.0
    %890 = vmatpush1.msra.mxu0 0.0
    %891 = vmatprep.subr.mxu0 0.0
    %892 = vmatpush1.msra.mxu0 0.0
    %893 = vmatprep.subr.mxu0 0.0
    %894 = vmatpush1.msra.mxu0 0.0
    %895 = vmatprep.subr.mxu0 0.0
    %896 = vmatpush1.msra.mxu0 0.0
    %897 = vmatprep.subr.mxu0 0.0
    %898 = vmatpush1.msra.mxu0 0.0
    %899 = vmatprep.subr.mxu0 0.0
    %900 = vmatpush1.msra.mxu0 0.0
    %901 = vmatprep.subr.mxu0 0.0
    %902 = vmatpush1.msra.mxu0 0.0
    %903 = vmatprep.subr.mxu0 0.0
    %904 = vmatpush1.msra.mxu0 0.0
    %905 = vmatprep.subr.mxu0 0.0
    %906 = vmatpush1.msra.mxu0 0.0
    %907 = vmatprep.subr.mxu0 0.0
    %908 = vmatpush1.msra.mxu0 0.0
    %909 = vmatprep.subr.mxu0 0.0
    %910 = vmatpush1.msra.mxu0 0.0
    %911 = vmatprep.subr.mxu0 0.0
    %912 = vmatpush1.msra.mxu0 0.0
    %913 = vmatprep.subr.mxu0 0.0
    %914 = vmatpush1.msra.mxu0 0.0
    %915 = vmatprep.subr.mxu0 0.0
    %916 = vmatpush1.msra.mxu0 0.0
    %917 = vmatprep.subr.mxu0 0.0
    %918 = vmatpush1.msra.mxu0 0.0
    %919 = vmatprep.subr.mxu0 0.0
    %920 = vmatpush1.msra.mxu0 0.0
    %921 = vmatprep.subr.mxu0 0.0
    %922 = vmatpush1.msra.mxu0 0.0
    %923 = vmatprep.subr.mxu0 0.0
    %924 = vmatpush1.msra.mxu0 0.0
    %925 = vmatprep.subr.mxu0 0.0
    %926 = vmatpush1.msra.mxu0 0.0
    %927 = vmatprep.subr.mxu0 0.0
    %928 = vmatpush1.msra.mxu0 0.0
    %929 = vmatprep.subr.mxu0 0.0
    %930 = vmatpush1.msra.mxu0 0.0
    %931 = vmatprep.subr.mxu0 0.0
    %932 = vmatpush1.msra.mxu0 0.0
    %933 = vmatprep.subr.mxu0 0.0
    %934 = vmatpush1.msra.mxu0 0.0
    %935 = vmatprep.subr.mxu0 0.0
    %936 = vmatpush1.msra.mxu0 0.0
    %937 = vmatprep.subr.mxu0 0.0
    %938 = vmatpush1.msra.mxu0 0.0
    %939 = vmatprep.mubr.f32.mxu0 0.0
    %940 = vmatmul.mubr.f32.gmra.mrb[0].mxu0 %v763
    %v941 = vpop.f32.mrb[0].mxu0
    %v942 = vadd.f32 0.0, %v941
    %v943 = vpop.f32.mrb[0].mxu0
    %944 = vdwg.mxu0
    %v946 = vsel %vm133, %v866, 0
    %948 = vmatprep.subr.mxu0 0.0
    %949 = vmatpush1.msra.mxu0 %v867
    %950 = vmatprep.subr.mxu0 0.0
    %951 = vmatpush1.msra.mxu0 %v868
    %952 = vmatprep.subr.mxu0 0.0
    %953 = vmatpush1.msra.mxu0 %v869
    %954 = vmatprep.subr.mxu0 0.0
    %955 = vmatpush1.msra.mxu0 %v870
    %956 = vmatprep.subr.mxu0 0.0
    %957 = vmatpush1.msra.mxu0 0.0
    %958 = vmatprep.subr.mxu0 0.0
    %959 = vmatpush1.msra.mxu0 0.0
    %960 = vmatprep.subr.mxu0 0.0
    %961 = vmatpush1.msra.mxu0 0.0
    %962 = vmatprep.subr.mxu0 0.0
    %963 = vmatpush1.msra.mxu0 0.0
    %964 = vmatprep.subr.mxu0 0.0
    %965 = vmatpush1.msra.mxu0 0.0
    %966 = vmatprep.subr.mxu0 0.0
    %967 = vmatpush1.msra.mxu0 0.0
    %968 = vmatprep.subr.mxu0 0.0
    %969 = vmatpush1.msra.mxu0 0.0
    %970 = vmatprep.subr.mxu0 0.0
    %971 = vmatpush1.msra.mxu0 0.0
    %972 = vmatprep.subr.mxu0 0.0
    %973 = vmatpush1.msra.mxu0 0.0
    %974 = vmatprep.subr.mxu0 0.0
    %975 = vmatpush1.msra.mxu0 0.0
    %976 = vmatprep.subr.mxu0 0.0
    %977 = vmatpush1.msra.mxu0 0.0
    %978 = vmatprep.subr.mxu0 0.0
    %979 = vmatpush1.msra.mxu0 0.0
    %980 = vmatprep.subr.mxu0 0.0
    %981 = vmatpush1.msra.mxu0 0.0
    %982 = vmatprep.subr.mxu0 0.0
    %983 = vmatpush1.msra.mxu0 0.0
    %984 = vmatprep.subr.mxu0 0.0
    %985 = vmatpush1.msra.mxu0 0.0
    %986 = vmatprep.subr.mxu0 0.0
    %987 = vmatpush1.msra.mxu0 0.0
    %988 = vmatprep.subr.mxu0 0.0
    %989 = vmatpush1.msra.mxu0 0.0
    %990 = vmatprep.subr.mxu0 0.0
    %991 = vmatpush1.msra.mxu0 0.0
    %992 = vmatprep.subr.mxu0 0.0
    %993 = vmatpush1.msra.mxu0 0.0
    %994 = vmatprep.subr.mxu0 0.0
    %995 = vmatpush1.msra.mxu0 0.0
    %996 = vmatprep.subr.mxu0 0.0
    %997 = vmatpush1.msra.mxu0 0.0
    %998 = vmatprep.subr.mxu0 0.0
    %999 = vmatpush1.msra.mxu0 0.0
    %1000 = vmatprep.subr.mxu0 0.0
    %1001 = vmatpush1.msra.mxu0 0.0
    %1002 = vmatprep.subr.mxu0 0.0
    %1003 = vmatpush1.msra.mxu0 0.0
    %1004 = vmatprep.subr.mxu0 0.0
    %1005 = vmatpush1.msra.mxu0 0.0
    %1006 = vmatprep.subr.mxu0 0.0
    %1007 = vmatpush1.msra.mxu0 0.0
    %1008 = vmatprep.subr.mxu0 0.0
    %1009 = vmatpush1.msra.mxu0 0.0
    %1010 = vmatprep.subr.mxu0 0.0
    %1011 = vmatpush1.msra.mxu0 0.0
    %1012 = vmatprep.mubr.f32.mxu0 0.0
    %1013 = vmatmul.mubr.f32.gmra.mrb[0].mxu0 %v946
    %v1014 = vpop.f32.mrb[0].mxu0
    %v1015 = vadd.f32 %v942, %v1014
    %v1016 = vpop.f32.mrb[0].mxu0
    %1017 = vdwg.mxu0
    %v1018 = vld [vmem:[%s7] sm:$0x1]
    %v1019 = vadd.f32 %v1015, %v1018
    %v1020 = vxor.u32 %v1019, 2147483648
    %v1021 = vmul.f32 %v1020, 1.442695
    %v1022 = vpow.pop %v1021
    %v1023 = vadd.f32 %v1022, 1.0
    %v1024 = vrcp.pop %v1023
    %v1025 = vmul.f32 1.0, %v1024
    %v1026 = vtanh.pop %v1019
    %v1027 = vmul.f32 %v1025, %v673
    %1029 = vrot.lane.b32.xlu0 %v1026, 64
    %v1030 = vpop.permute.xlu0 %1029
    %v1032 = vmul.f32 %v1025, %v1030
    %1034 = vrot.lane.b32.xlu0 %v1032, 32
    %v1035 = vpop.permute.xlu0 %1034
    %v1037 = vadd.f32 %v1027, %v1035
    %v1038 = vtanh.pop %v1037
    %1040 = vrot.lane.b32.xlu0 %v1038, 64
    %v1041 = vpop.permute.xlu0 %1040
    %v1043 = vmul.f32 %v1025, %v1041
    %v1044 = vld [vmem:[#allocation9] sm:$0xff]
    %v1045 = vld [vmem:[#allocation9 + $0x8] sm:$0xff]
    %v1046 = vld [vmem:[#allocation9 + $0x10] sm:$0xff]
    %v1047 = vld [vmem:[#allocation9 + $0x18] sm:$0xff]
    %v1048 = vld [vmem:[#allocation11] sm:$0xff]
    %v1049 = vld [vmem:[#allocation11 + $0x8] sm:$0xff]
    %v1050 = vld [vmem:[#allocation11 + $0x10] sm:$0xff]
    %v1051 = vld [vmem:[#allocation11 + $0x18] sm:$0xff]
    %v1052 = vsel %vm133, %v863, 0
    %1054 = vmatprep.subr.mxu0 0.0
    %1055 = vmatpush1.msra.mxu0 %v1048
    %1056 = vmatprep.subr.mxu0 0.0
    %1057 = vmatpush1.msra.mxu0 %v1049
    %1058 = vmatprep.subr.mxu0 0.0
    %1059 = vmatpush1.msra.mxu0 %v1050
    %1060 = vmatprep.subr.mxu0 0.0
    %1061 = vmatpush1.msra.mxu0 %v1051
    %1062 = vmatprep.subr.mxu0 0.0
    %1063 = vmatpush1.msra.mxu0 0.0
    %1064 = vmatprep.subr.mxu0 0.0
    %1065 = vmatpush1.msra.mxu0 0.0
    %1066 = vmatprep.subr.mxu0 0.0
    %1067 = vmatpush1.msra.mxu0 0.0
    %1068 = vmatprep.subr.mxu0 0.0
    %1069 = vmatpush1.msra.mxu0 0.0
    %1070 = vmatprep.subr.mxu0 0.0
    %1071 = vmatpush1.msra.mxu0 0.0
    %1072 = vmatprep.subr.mxu0 0.0
    %1073 = vmatpush1.msra.mxu0 0.0
    %1074 = vmatprep.subr.mxu0 0.0
    %1075 = vmatpush1.msra.mxu0 0.0
    %1076 = vmatprep.subr.mxu0 0.0
    %1077 = vmatpush1.msra.mxu0 0.0
    %1078 = vmatprep.subr.mxu0 0.0
    %1079 = vmatpush1.msra.mxu0 0.0
    %1080 = vmatprep.subr.mxu0 0.0
    %1081 = vmatpush1.msra.mxu0 0.0
    %1082 = vmatprep.subr.mxu0 0.0
    %1083 = vmatpush1.msra.mxu0 0.0
    %1084 = vmatprep.subr.mxu0 0.0
    %1085 = vmatpush1.msra.mxu0 0.0
    %1086 = vmatprep.subr.mxu0 0.0
    %1087 = vmatpush1.msra.mxu0 0.0
    %1088 = vmatprep.subr.mxu0 0.0
    %1089 = vmatpush1.msra.mxu0 0.0
    %1090 = vmatprep.subr.mxu0 0.0
    %1091 = vmatpush1.msra.mxu0 0.0
    %1092 = vmatprep.subr.mxu0 0.0
    %1093 = vmatpush1.msra.mxu0 0.0
    %1094 = vmatprep.subr.mxu0 0.0
    %1095 = vmatpush1.msra.mxu0 0.0
    %1096 = vmatprep.subr.mxu0 0.0
    %1097 = vmatpush1.msra.mxu0 0.0
    %1098 = vmatprep.subr.mxu0 0.0
    %1099 = vmatpush1.msra.mxu0 0.0
    %1100 = vmatprep.subr.mxu0 0.0
    %1101 = vmatpush1.msra.mxu0 0.0
    %1102 = vmatprep.subr.mxu0 0.0
    %1103 = vmatpush1.msra.mxu0 0.0
    %1104 = vmatprep.subr.mxu0 0.0
    %1105 = vmatpush1.msra.mxu0 0.0
    %1106 = vmatprep.subr.mxu0 0.0
    %1107 = vmatpush1.msra.mxu0 0.0
    %1108 = vmatprep.subr.mxu0 0.0
    %1109 = vmatpush1.msra.mxu0 0.0
    %1110 = vmatprep.subr.mxu0 0.0
    %1111 = vmatpush1.msra.mxu0 0.0
    %1112 = vmatprep.subr.mxu0 0.0
    %1113 = vmatpush1.msra.mxu0 0.0
    %1114 = vmatprep.subr.mxu0 0.0
    %1115 = vmatpush1.msra.mxu0 0.0
    %1116 = vmatprep.subr.mxu0 0.0
    %1117 = vmatpush1.msra.mxu0 0.0
    %1118 = vmatprep.mubr.f32.mxu0 0.0
    %1119 = vmatmul.mubr.f32.gmra.mrb[0].mxu0 %v1052
    %v1120 = vpop.f32.mrb[0].mxu0
    %v1121 = vadd.f32 0.0, %v1120
    %v1122 = vpop.f32.mrb[0].mxu0
    %1123 = vdwg.mxu0
    %1125 = vrot.lane.b32.xlu0 %v1043, 32
    %v1126 = vpop.permute.xlu0 %1125
    %v1127 = vsel %vm133, %v1126, 0
    %1129 = vmatprep.subr.mxu0 0.0
    %1130 = vmatpush1.msra.mxu0 %v1044
    %1131 = vmatprep.subr.mxu0 0.0
    %1132 = vmatpush1.msra.mxu0 %v1045
    %1133 = vmatprep.subr.mxu0 0.0
    %1134 = vmatpush1.msra.mxu0 %v1046
    %1135 = vmatprep.subr.mxu0 0.0
    %1136 = vmatpush1.msra.mxu0 %v1047
    %1137 = vmatprep.subr.mxu0 0.0
    %1138 = vmatpush1.msra.mxu0 0.0
    %1139 = vmatprep.subr.mxu0 0.0
    %1140 = vmatpush1.msra.mxu0 0.0
    %1141 = vmatprep.subr.mxu0 0.0
    %1142 = vmatpush1.msra.mxu0 0.0
    %1143 = vmatprep.subr.mxu0 0.0
    %1144 = vmatpush1.msra.mxu0 0.0
    %1145 = vmatprep.subr.mxu0 0.0
    %1146 = vmatpush1.msra.mxu0 0.0
    %1147 = vmatprep.subr.mxu0 0.0
    %1148 = vmatpush1.msra.mxu0 0.0
    %1149 = vmatprep.subr.mxu0 0.0
    %1150 = vmatpush1.msra.mxu0 0.0
    %1151 = vmatprep.subr.mxu0 0.0
    %1152 = vmatpush1.msra.mxu0 0.0
    %1153 = vmatprep.subr.mxu0 0.0
    %1154 = vmatpush1.msra.mxu0 0.0
    %1155 = vmatprep.subr.mxu0 0.0
    %1156 = vmatpush1.msra.mxu0 0.0
    %1157 = vmatprep.subr.mxu0 0.0
    %1158 = vmatpush1.msra.mxu0 0.0
    %1159 = vmatprep.subr.mxu0 0.0
    %1160 = vmatpush1.msra.mxu0 0.0
    %1161 = vmatprep.subr.mxu0 0.0
    %1162 = vmatpush1.msra.mxu0 0.0
    %1163 = vmatprep.subr.mxu0 0.0
    %1164 = vmatpush1.msra.mxu0 0.0
    %1165 = vmatprep.subr.mxu0 0.0
    %1166 = vmatpush1.msra.mxu0 0.0
    %1167 = vmatprep.subr.mxu0 0.0
    %1168 = vmatpush1.msra.mxu0 0.0
    %1169 = vmatprep.subr.mxu0 0.0
    %1170 = vmatpush1.msra.mxu0 0.0
    %1171 = vmatprep.subr.mxu0 0.0
    %1172 = vmatpush1.msra.mxu0 0.0
    %1173 = vmatprep.subr.mxu0 0.0
    %1174 = vmatpush1.msra.mxu0 0.0
    %1175 = vmatprep.subr.mxu0 0.0
    %1176 = vmatpush1.msra.mxu0 0.0
    %1177 = vmatprep.subr.mxu0 0.0
    %1178 = vmatpush1.msra.mxu0 0.0
    %1179 = vmatprep.subr.mxu0 0.0
    %1180 = vmatpush1.msra.mxu0 0.0
    %1181 = vmatprep.subr.mxu0 0.0
    %1182 = vmatpush1.msra.mxu0 0.0
    %1183 = vmatprep.subr.mxu0 0.0
    %1184 = vmatpush1.msra.mxu0 0.0
    %1185 = vmatprep.subr.mxu0 0.0
    %1186 = vmatpush1.msra.mxu0 0.0
    %1187 = vmatprep.subr.mxu0 0.0
    %1188 = vmatpush1.msra.mxu0 0.0
    %1189 = vmatprep.subr.mxu0 0.0
    %1190 = vmatpush1.msra.mxu0 0.0
    %1191 = vmatprep.subr.mxu0 0.0
    %1192 = vmatpush1.msra.mxu0 0.0
    %1193 = vmatprep.mubr.f32.mxu0 0.0
    %1194 = vmatmul.mubr.f32.gmra.mrb[0].mxu0 %v1127
    %v1195 = vpop.f32.mrb[0].mxu0
    %v1196 = vadd.f32 %v1121, %v1195
    %v1197 = vpop.f32.mrb[0].mxu0
    %1198 = vdwg.mxu0
    %v1199 = vld [vmem:[%s7 + $0x1] sm:$0x1]
    %v1200 = vadd.f32 %v1196, %v1199
    %v1201 = vxor.u32 %v1200, 2147483648
    %v1202 = vmul.f32 %v1201, 1.442695
    %v1203 = vpow.pop %v1202
    %v1204 = vadd.f32 %v1203, 1.0
    %v1205 = vrcp.pop %v1204
    %v1206 = vmul.f32 1.0, %v1205
    %v1207 = vtanh.pop %v1200
    %v1208 = vmul.f32 %v1206, %v854
    %1210 = vrot.lane.b32.xlu0 %v1207, 64
    %v1211 = vpop.permute.xlu0 %1210
    %v1213 = vmul.f32 %v1206, %v1211
    %1215 = vrot.lane.b32.xlu0 %v1213, 32
    %v1216 = vpop.permute.xlu0 %1215
    %v1218 = vadd.f32 %v1208, %v1216
    %v1219 = vtanh.pop %v1218
    %1221 = vrot.lane.b32.xlu0 %v1219, 64
    %v1222 = vpop.permute.xlu0 %1221
    %v1224 = vmul.f32 %v1206, %v1222
    %1226 = vrot.lane.b32.xlu0 %v1224, 32
    %v1227 = vpop.permute.xlu0 %1226
    %1229 = vst.msk [vmem:[#allocation2 + $0x2] sm:$0x1] %vm500, %v1227
    %v1230 = vld [vmem:[#allocation3 + $0x3] sm:$0x1]
    %v1231 = vld [vmem:[#allocation6] sm:$0xff]
    %v1232 = vld [vmem:[#allocation6 + $0x8] sm:$0xff]
    %v1233 = vld [vmem:[#allocation6 + $0x10] sm:$0xff]
    %v1234 = vld [vmem:[#allocation6 + $0x18] sm:$0xff]
    %v1235 = vld [vmem:[#allocation8] sm:$0xff]
    %v1236 = vld [vmem:[#allocation8 + $0x8] sm:$0xff]
    %v1237 = vld [vmem:[#allocation8 + $0x10] sm:$0xff]
    %v1238 = vld [vmem:[#allocation8 + $0x18] sm:$0xff]
    %1239 = vmatprep.subr.mxu0 0.0
    %1240 = vmatpush1.msra.mxu0 %v1235
    %1241 = vmatprep.subr.mxu0 0.0
    %1242 = vmatpush1.msra.mxu0 %v1236
    %1243 = vmatprep.subr.mxu0 0.0
    %1244 = vmatpush1.msra.mxu0 %v1237
    %1245 = vmatprep.subr.mxu0 0.0
    %1246 = vmatpush1.msra.mxu0 %v1238
    %1247 = vmatprep.subr.mxu0 0.0
    %1248 = vmatpush1.msra.mxu0 0.0
    %1249 = vmatprep.subr.mxu0 0.0
    %1250 = vmatpush1.msra.mxu0 0.0
    %1251 = vmatprep.subr.mxu0 0.0
    %1252 = vmatpush1.msra.mxu0 0.0
    %1253 = vmatprep.subr.mxu0 0.0
    %1254 = vmatpush1.msra.mxu0 0.0
    %1255 = vmatprep.subr.mxu0 0.0
    %1256 = vmatpush1.msra.mxu0 0.0
    %1257 = vmatprep.subr.mxu0 0.0
    %1258 = vmatpush1.msra.mxu0 0.0
    %1259 = vmatprep.subr.mxu0 0.0
    %1260 = vmatpush1.msra.mxu0 0.0
    %1261 = vmatprep.subr.mxu0 0.0
    %1262 = vmatpush1.msra.mxu0 0.0
    %1263 = vmatprep.subr.mxu0 0.0
    %1264 = vmatpush1.msra.mxu0 0.0
    %1265 = vmatprep.subr.mxu0 0.0
    %1266 = vmatpush1.msra.mxu0 0.0
    %1267 = vmatprep.subr.mxu0 0.0
    %1268 = vmatpush1.msra.mxu0 0.0
    %1269 = vmatprep.subr.mxu0 0.0
    %1270 = vmatpush1.msra.mxu0 0.0
    %1271 = vmatprep.subr.mxu0 0.0
    %1272 = vmatpush1.msra.mxu0 0.0
    %1273 = vmatprep.subr.mxu0 0.0
    %1274 = vmatpush1.msra.mxu0 0.0
    %1275 = vmatprep.subr.mxu0 0.0
    %1276 = vmatpush1.msra.mxu0 0.0
    %1277 = vmatprep.subr.mxu0 0.0
    %1278 = vmatpush1.msra.mxu0 0.0
    %1279 = vmatprep.subr.mxu0 0.0
    %1280 = vmatpush1.msra.mxu0 0.0
    %1281 = vmatprep.subr.mxu0 0.0
    %1282 = vmatpush1.msra.mxu0 0.0
    %1283 = vmatprep.subr.mxu0 0.0
    %1284 = vmatpush1.msra.mxu0 0.0
    %1285 = vmatprep.subr.mxu0 0.0
    %1286 = vmatpush1.msra.mxu0 0.0
    %1287 = vmatprep.subr.mxu0 0.0
    %1288 = vmatpush1.msra.mxu0 0.0
    %1289 = vmatprep.subr.mxu0 0.0
    %1290 = vmatpush1.msra.mxu0 0.0
    %1291 = vmatprep.subr.mxu0 0.0
    %1292 = vmatpush1.msra.mxu0 0.0
    %1293 = vmatprep.subr.mxu0 0.0
    %1294 = vmatpush1.msra.mxu0 0.0
    %1295 = vmatprep.subr.mxu0 0.0
    %1296 = vmatpush1.msra.mxu0 0.0
    %1297 = vmatprep.subr.mxu0 0.0
    %1298 = vmatpush1.msra.mxu0 0.0
    %1299 = vmatprep.subr.mxu0 0.0
    %1300 = vmatpush1.msra.mxu0 0.0
    %1301 = vmatprep.subr.mxu0 0.0
    %1302 = vmatpush1.msra.mxu0 0.0
    %1303 = vmatprep.mubr.f32.mxu0 0.0
    %1304 = vmatmul.mubr.f32.gmra.mrb[0].mxu0 %v1127
    %v1305 = vpop.f32.mrb[0].mxu0
    %v1306 = vadd.f32 0.0, %v1305
    %v1307 = vpop.f32.mrb[0].mxu0
    %1308 = vdwg.mxu0
    %v1310 = vsel %vm133, %v1230, 0
    %1312 = vmatprep.subr.mxu0 0.0
    %1313 = vmatpush1.msra.mxu0 %v1231
    %1314 = vmatprep.subr.mxu0 0.0
    %1315 = vmatpush1.msra.mxu0 %v1232
    %1316 = vmatprep.subr.mxu0 0.0
    %1317 = vmatpush1.msra.mxu0 %v1233
    %1318 = vmatprep.subr.mxu0 0.0
    %1319 = vmatpush1.msra.mxu0 %v1234
    %1320 = vmatprep.subr.mxu0 0.0
    %1321 = vmatpush1.msra.mxu0 0.0
    %1322 = vmatprep.subr.mxu0 0.0
    %1323 = vmatpush1.msra.mxu0 0.0
    %1324 = vmatprep.subr.mxu0 0.0
    %1325 = vmatpush1.msra.mxu0 0.0
    %1326 = vmatprep.subr.mxu0 0.0
    %1327 = vmatpush1.msra.mxu0 0.0
    %1328 = vmatprep.subr.mxu0 0.0
    %1329 = vmatpush1.msra.mxu0 0.0
    %1330 = vmatprep.subr.mxu0 0.0
    %1331 = vmatpush1.msra.mxu0 0.0
    %1332 = vmatprep.subr.mxu0 0.0
    %1333 = vmatpush1.msra.mxu0 0.0
    %1334 = vmatprep.subr.mxu0 0.0
    %1335 = vmatpush1.msra.mxu0 0.0
    %1336 = vmatprep.subr.mxu0 0.0
    %1337 = vmatpush1.msra.mxu0 0.0
    %1338 = vmatprep.subr.mxu0 0.0
    %1339 = vmatpush1.msra.mxu0 0.0
    %1340 = vmatprep.subr.mxu0 0.0
    %1341 = vmatpush1.msra.mxu0 0.0
    %1342 = vmatprep.subr.mxu0 0.0
    %1343 = vmatpush1.msra.mxu0 0.0
    %1344 = vmatprep.subr.mxu0 0.0
    %1345 = vmatpush1.msra.mxu0 0.0
    %1346 = vmatprep.subr.mxu0 0.0
    %1347 = vmatpush1.msra.mxu0 0.0
    %1348 = vmatprep.subr.mxu0 0.0
    %1349 = vmatpush1.msra.mxu0 0.0
    %1350 = vmatprep.subr.mxu0 0.0
    %1351 = vmatpush1.msra.mxu0 0.0
    %1352 = vmatprep.subr.mxu0 0.0
    %1353 = vmatpush1.msra.mxu0 0.0
    %1354 = vmatprep.subr.mxu0 0.0
    %1355 = vmatpush1.msra.mxu0 0.0
    %1356 = vmatprep.subr.mxu0 0.0
    %1357 = vmatpush1.msra.mxu0 0.0
    %1358 = vmatprep.subr.mxu0 0.0
    %1359 = vmatpush1.msra.mxu0 0.0
    %1360 = vmatprep.subr.mxu0 0.0
    %1361 = vmatpush1.msra.mxu0 0.0
    %1362 = vmatprep.subr.mxu0 0.0
    %1363 = vmatpush1.msra.mxu0 0.0
    %1364 = vmatprep.subr.mxu0 0.0
    %1365 = vmatpush1.msra.mxu0 0.0
    %1366 = vmatprep.subr.mxu0 0.0
    %1367 = vmatpush1.msra.mxu0 0.0
    %1368 = vmatprep.subr.mxu0 0.0
    %1369 = vmatpush1.msra.mxu0 0.0
    %1370 = vmatprep.subr.mxu0 0.0
    %1371 = vmatpush1.msra.mxu0 0.0
    %1372 = vmatprep.subr.mxu0 0.0
    %1373 = vmatpush1.msra.mxu0 0.0
    %1374 = vmatprep.subr.mxu0 0.0
    %1375 = vmatpush1.msra.mxu0 0.0
    %1376 = vmatprep.mubr.f32.mxu0 0.0
    %1377 = vmatmul.mubr.f32.gmra.mrb[0].mxu0 %v1310
    %v1378 = vpop.f32.mrb[0].mxu0
    %v1379 = vadd.f32 %v1306, %v1378
    %v1380 = vpop.f32.mrb[0].mxu0
    %1381 = vdwg.mxu0
    %v1382 = vld [vmem:[%s7] sm:$0x1]
    %v1383 = vadd.f32 %v1379, %v1382
    %v1384 = vxor.u32 %v1383, 2147483648
    %v1385 = vmul.f32 %v1384, 1.442695
    %v1386 = vpow.pop %v1385
    %v1387 = vadd.f32 %v1386, 1.0
    %v1388 = vrcp.pop %v1387
    %v1389 = vmul.f32 1.0, %v1388
    %v1390 = vtanh.pop %v1383
    %v1391 = vmul.f32 %v1389, %v1037
    %1393 = vrot.lane.b32.xlu0 %v1390, 64
    %v1394 = vpop.permute.xlu0 %1393
    %v1396 = vmul.f32 %v1389, %v1394
    %1398 = vrot.lane.b32.xlu0 %v1396, 32
    %v1399 = vpop.permute.xlu0 %1398
    %v1401 = vadd.f32 %v1391, %v1399
    %v1402 = vtanh.pop %v1401
    %1404 = vrot.lane.b32.xlu0 %v1402, 64
    %v1405 = vpop.permute.xlu0 %1404
    %v1407 = vmul.f32 %v1389, %v1405
    %v1408 = vld [vmem:[#allocation9] sm:$0xff]
    %v1409 = vld [vmem:[#allocation9 + $0x8] sm:$0xff]
    %v1410 = vld [vmem:[#allocation9 + $0x10] sm:$0xff]
    %v1411 = vld [vmem:[#allocation9 + $0x18] sm:$0xff]
    %v1412 = vld [vmem:[#allocation11] sm:$0xff]
    %v1413 = vld [vmem:[#allocation11 + $0x8] sm:$0xff]
    %v1414 = vld [vmem:[#allocation11 + $0x10] sm:$0xff]
    %v1415 = vld [vmem:[#allocation11 + $0x18] sm:$0xff]
    %v1416 = vsel %vm133, %v1227, 0
    %1418 = vmatprep.subr.mxu0 0.0
    %1419 = vmatpush1.msra.mxu0 %v1412
    %1420 = vmatprep.subr.mxu0 0.0
    %1421 = vmatpush1.msra.mxu0 %v1413
    %1422 = vmatprep.subr.mxu0 0.0
    %1423 = vmatpush1.msra.mxu0 %v1414
    %1424 = vmatprep.subr.mxu0 0.0
    %1425 = vmatpush1.msra.mxu0 %v1415
    %1426 = vmatprep.subr.mxu0 0.0
    %1427 = vmatpush1.msra.mxu0 0.0
    %1428 = vmatprep.subr.mxu0 0.0
    %1429 = vmatpush1.msra.mxu0 0.0
    %1430 = vmatprep.subr.mxu0 0.0
    %1431 = vmatpush1.msra.mxu0 0.0
    %1432 = vmatprep.subr.mxu0 0.0
    %1433 = vmatpush1.msra.mxu0 0.0
    %1434 = vmatprep.subr.mxu0 0.0
    %1435 = vmatpush1.msra.mxu0 0.0
    %1436 = vmatprep.subr.mxu0 0.0
    %1437 = vmatpush1.msra.mxu0 0.0
    %1438 = vmatprep.subr.mxu0 0.0
    %1439 = vmatpush1.msra.mxu0 0.0
    %1440 = vmatprep.subr.mxu0 0.0
    %1441 = vmatpush1.msra.mxu0 0.0
    %1442 = vmatprep.subr.mxu0 0.0
    %1443 = vmatpush1.msra.mxu0 0.0
    %1444 = vmatprep.subr.mxu0 0.0
    %1445 = vmatpush1.msra.mxu0 0.0
    %1446 = vmatprep.subr.mxu0 0.0
    %1447 = vmatpush1.msra.mxu0 0.0
    %1448 = vmatprep.subr.mxu0 0.0
    %1449 = vmatpush1.msra.mxu0 0.0
    %1450 = vmatprep.subr.mxu0 0.0
    %1451 = vmatpush1.msra.mxu0 0.0
    %1452 = vmatprep.subr.mxu0 0.0
    %1453 = vmatpush1.msra.mxu0 0.0
    %1454 = vmatprep.subr.mxu0 0.0
    %1455 = vmatpush1.msra.mxu0 0.0
    %1456 = vmatprep.subr.mxu0 0.0
    %1457 = vmatpush1.msra.mxu0 0.0
    %1458 = vmatprep.subr.mxu0 0.0
    %1459 = vmatpush1.msra.mxu0 0.0
    %1460 = vmatprep.subr.mxu0 0.0
    %1461 = vmatpush1.msra.mxu0 0.0
    %1462 = vmatprep.subr.mxu0 0.0
    %1463 = vmatpush1.msra.mxu0 0.0
    %1464 = vmatprep.subr.mxu0 0.0
    %1465 = vmatpush1.msra.mxu0 0.0
    %1466 = vmatprep.subr.mxu0 0.0
    %1467 = vmatpush1.msra.mxu0 0.0
    %1468 = vmatprep.subr.mxu0 0.0
    %1469 = vmatpush1.msra.mxu0 0.0
    %1470 = vmatprep.subr.mxu0 0.0
    %1471 = vmatpush1.msra.mxu0 0.0
    %1472 = vmatprep.subr.mxu0 0.0
    %1473 = vmatpush1.msra.mxu0 0.0
    %1474 = vmatprep.subr.mxu0 0.0
    %1475 = vmatpush1.msra.mxu0 0.0
    %1476 = vmatprep.subr.mxu0 0.0
    %1477 = vmatpush1.msra.mxu0 0.0
    %1478 = vmatprep.subr.mxu0 0.0
    %1479 = vmatpush1.msra.mxu0 0.0
    %1480 = vmatprep.subr.mxu0 0.0
    %1481 = vmatpush1.msra.mxu0 0.0
    %1482 = vmatprep.mubr.f32.mxu0 0.0
    %1483 = vmatmul.mubr.f32.gmra.mrb[0].mxu0 %v1416
    %v1484 = vpop.f32.mrb[0].mxu0
    %v1485 = vadd.f32 0.0, %v1484
    %v1486 = vpop.f32.mrb[0].mxu0
    %1487 = vdwg.mxu0
    %1489 = vrot.lane.b32.xlu0 %v1407, 32
    %v1490 = vpop.permute.xlu0 %1489
    %v1491 = vsel %vm133, %v1490, 0
    %1493 = vmatprep.subr.mxu0 0.0
    %1494 = vmatpush1.msra.mxu0 %v1408
    %1495 = vmatprep.subr.mxu0 0.0
    %1496 = vmatpush1.msra.mxu0 %v1409
    %1497 = vmatprep.subr.mxu0 0.0
    %1498 = vmatpush1.msra.mxu0 %v1410
    %1499 = vmatprep.subr.mxu0 0.0
    %1500 = vmatpush1.msra.mxu0 %v1411
    %1501 = vmatprep.subr.mxu0 0.0
    %1502 = vmatpush1.msra.mxu0 0.0
    %1503 = vmatprep.subr.mxu0 0.0
    %1504 = vmatpush1.msra.mxu0 0.0
    %1505 = vmatprep.subr.mxu0 0.0
    %1506 = vmatpush1.msra.mxu0 0.0
    %1507 = vmatprep.subr.mxu0 0.0
    %1508 = vmatpush1.msra.mxu0 0.0
    %1509 = vmatprep.subr.mxu0 0.0
    %1510 = vmatpush1.msra.mxu0 0.0
    %1511 = vmatprep.subr.mxu0 0.0
    %1512 = vmatpush1.msra.mxu0 0.0
    %1513 = vmatprep.subr.mxu0 0.0
    %1514 = vmatpush1.msra.mxu0 0.0
    %1515 = vmatprep.subr.mxu0 0.0
    %1516 = vmatpush1.msra.mxu0 0.0
    %1517 = vmatprep.subr.mxu0 0.0
    %1518 = vmatpush1.msra.mxu0 0.0
    %1519 = vmatprep.subr.mxu0 0.0
    %1520 = vmatpush1.msra.mxu0 0.0
    %1521 = vmatprep.subr.mxu0 0.0
    %1522 = vmatpush1.msra.mxu0 0.0
    %1523 = vmatprep.subr.mxu0 0.0
    %1524 = vmatpush1.msra.mxu0 0.0
    %1525 = vmatprep.subr.mxu0 0.0
    %1526 = vmatpush1.msra.mxu0 0.0
    %1527 = vmatprep.subr.mxu0 0.0
    %1528 = vmatpush1.msra.mxu0 0.0
    %1529 = vmatprep.subr.mxu0 0.0
    %1530 = vmatpush1.msra.mxu0 0.0
    %1531 = vmatprep.subr.mxu0 0.0
    %1532 = vmatpush1.msra.mxu0 0.0
    %1533 = vmatprep.subr.mxu0 0.0
    %1534 = vmatpush1.msra.mxu0 0.0
    %1535 = vmatprep.subr.mxu0 0.0
    %1536 = vmatpush1.msra.mxu0 0.0
    %1537 = vmatprep.subr.mxu0 0.0
    %1538 = vmatpush1.msra.mxu0 0.0
    %1539 = vmatprep.subr.mxu0 0.0
    %1540 = vmatpush1.msra.mxu0 0.0
    %1541 = vmatprep.subr.mxu0 0.0
    %1542 = vmatpush1.msra.mxu0 0.0
    %1543 = vmatprep.subr.mxu0 0.0
    %1544 = vmatpush1.msra.mxu0 0.0
    %1545 = vmatprep.subr.mxu0 0.0
    %1546 = vmatpush1.msra.mxu0 0.0
    %1547 = vmatprep.subr.mxu0 0.0
    %1548 = vmatpush1.msra.mxu0 0.0
    %1549 = vmatprep.subr.mxu0 0.0
    %1550 = vmatpush1.msra.mxu0 0.0
    %1551 = vmatprep.subr.mxu0 0.0
    %1552 = vmatpush1.msra.mxu0 0.0
    %1553 = vmatprep.subr.mxu0 0.0
    %1554 = vmatpush1.msra.mxu0 0.0
    %1555 = vmatprep.subr.mxu0 0.0
    %1556 = vmatpush1.msra.mxu0 0.0
    %1557 = vmatprep.mubr.f32.mxu0 0.0
    %1558 = vmatmul.mubr.f32.gmra.mrb[0].mxu0 %v1491
    %v1559 = vpop.f32.mrb[0].mxu0
    %v1560 = vadd.f32 %v1485, %v1559
    %v1561 = vpop.f32.mrb[0].mxu0
    %1562 = vdwg.mxu0
    %v1563 = vld [vmem:[%s7 + $0x1] sm:$0x1]
    %v1564 = vadd.f32 %v1560, %v1563
    %v1565 = vxor.u32 %v1564, 2147483648
    %v1566 = vmul.f32 %v1565, 1.442695
    %v1567 = vpow.pop %v1566
    %v1568 = vadd.f32 %v1567, 1.0
    %v1569 = vrcp.pop %v1568
    %v1570 = vmul.f32 1.0, %v1569
    %v1571 = vtanh.pop %v1564
    %v1572 = vmul.f32 %v1570, %v1218
    %1574 = vrot.lane.b32.xlu0 %v1571, 64
    %v1575 = vpop.permute.xlu0 %1574
    %v1577 = vmul.f32 %v1570, %v1575
    %1579 = vrot.lane.b32.xlu0 %v1577, 32
    %v1580 = vpop.permute.xlu0 %1579
    %v1582 = vadd.f32 %v1572, %v1580
    %v1583 = vtanh.pop %v1582
    %1585 = vrot.lane.b32.xlu0 %v1583, 64
    %v1586 = vpop.permute.xlu0 %1585
    %v1588 = vmul.f32 %v1570, %v1586
    %1590 = vrot.lane.b32.xlu0 %v1588, 32
    %v1591 = vpop.permute.xlu0 %1590
    %1593 = vst.msk [vmem:[#allocation2 + $0x3] sm:$0x1] %vm500, %v1591
    %v1594 = vld [vmem:[#allocation3 + $0x4] sm:$0x1]
    %v1595 = vld [vmem:[#allocation6] sm:$0xff]
    %v1596 = vld [vmem:[#allocation6 + $0x8] sm:$0xff]
    %v1597 = vld [vmem:[#allocation6 + $0x10] sm:$0xff]
    %v1598 = vld [vmem:[#allocation6 + $0x18] sm:$0xff]
    %v1599 = vld [vmem:[#allocation8] sm:$0xff]
    %v1600 = vld [vmem:[#allocation8 + $0x8] sm:$0xff]
    %v1601 = vld [vmem:[#allocation8 + $0x10] sm:$0xff]
    %v1602 = vld [vmem:[#allocation8 + $0x18] sm:$0xff]
    %1603 = vmatprep.subr.mxu0 0.0
    %1604 = vmatpush1.msra.mxu0 %v1599
    %1605 = vmatprep.subr.mxu0 0.0
    %1606 = vmatpush1.msra.mxu0 %v1600
    %1607 = vmatprep.subr.mxu0 0.0
    %1608 = vmatpush1.msra.mxu0 %v1601
    %1609 = vmatprep.subr.mxu0 0.0
    %1610 = vmatpush1.msra.mxu0 %v1602
    %1611 = vmatprep.subr.mxu0 0.0
    %1612 = vmatpush1.msra.mxu0 0.0
    %1613 = vmatprep.subr.mxu0 0.0
    %1614 = vmatpush1.msra.mxu0 0.0
    %1615 = vmatprep.subr.mxu0 0.0
    %1616 = vmatpush1.msra.mxu0 0.0
    %1617 = vmatprep.subr.mxu0 0.0
    %1618 = vmatpush1.msra.mxu0 0.0
    %1619 = vmatprep.subr.mxu0 0.0
    %1620 = vmatpush1.msra.mxu0 0.0
    %1621 = vmatprep.subr.mxu0 0.0
    %1622 = vmatpush1.msra.mxu0 0.0
    %1623 = vmatprep.subr.mxu0 0.0
    %1624 = vmatpush1.msra.mxu0 0.0
    %1625 = vmatprep.subr.mxu0 0.0
    %1626 = vmatpush1.msra.mxu0 0.0
    %1627 = vmatprep.subr.mxu0 0.0
    %1628 = vmatpush1.msra.mxu0 0.0
    %1629 = vmatprep.subr.mxu0 0.0
    %1630 = vmatpush1.msra.mxu0 0.0
    %1631 = vmatprep.subr.mxu0 0.0
    %1632 = vmatpush1.msra.mxu0 0.0
    %1633 = vmatprep.subr.mxu0 0.0
    %1634 = vmatpush1.msra.mxu0 0.0
    %1635 = vmatprep.subr.mxu0 0.0
    %1636 = vmatpush1.msra.mxu0 0.0
    %1637 = vmatprep.subr.mxu0 0.0
    %1638 = vmatpush1.msra.mxu0 0.0
    %1639 = vmatprep.subr.mxu0 0.0
    %1640 = vmatpush1.msra.mxu0 0.0
    %1641 = vmatprep.subr.mxu0 0.0
    %1642 = vmatpush1.msra.mxu0 0.0
    %1643 = vmatprep.subr.mxu0 0.0
    %1644 = vmatpush1.msra.mxu0 0.0
    %1645 = vmatprep.subr.mxu0 0.0
    %1646 = vmatpush1.msra.mxu0 0.0
    %1647 = vmatprep.subr.mxu0 0.0
    %1648 = vmatpush1.msra.mxu0 0.0
    %1649 = vmatprep.subr.mxu0 0.0
    %1650 = vmatpush1.msra.mxu0 0.0
    %1651 = vmatprep.subr.mxu0 0.0
    %1652 = vmatpush1.msra.mxu0 0.0
    %1653 = vmatprep.subr.mxu0 0.0
    %1654 = vmatpush1.msra.mxu0 0.0
    %1655 = vmatprep.subr.mxu0 0.0
    %1656 = vmatpush1.msra.mxu0 0.0
    %1657 = vmatprep.subr.mxu0 0.0
    %1658 = vmatpush1.msra.mxu0 0.0
    %1659 = vmatprep.subr.mxu0 0.0
    %1660 = vmatpush1.msra.mxu0 0.0
    %1661 = vmatprep.subr.mxu0 0.0
    %1662 = vmatpush1.msra.mxu0 0.0
    %1663 = vmatprep.subr.mxu0 0.0
    %1664 = vmatpush1.msra.mxu0 0.0
    %1665 = vmatprep.subr.mxu0 0.0
    %1666 = vmatpush1.msra.mxu0 0.0
    %1667 = vmatprep.mubr.f32.mxu0 0.0
    %1668 = vmatmul.mubr.f32.gmra.mrb[0].mxu0 %v1491
    %v1669 = vpop.f32.mrb[0].mxu0
    %v1670 = vadd.f32 0.0, %v1669
    %v1671 = vpop.f32.mrb[0].mxu0
    %1672 = vdwg.mxu0
    %v1674 = vsel %vm133, %v1594, 0
    %1676 = vmatprep.subr.mxu0 0.0
    %1677 = vmatpush1.msra.mxu0 %v1595
    %1678 = vmatprep.subr.mxu0 0.0
    %1679 = vmatpush1.msra.mxu0 %v1596
    %1680 = vmatprep.subr.mxu0 0.0
    %1681 = vmatpush1.msra.mxu0 %v1597
    %1682 = vmatprep.subr.mxu0 0.0
    %1683 = vmatpush1.msra.mxu0 %v1598
    %1684 = vmatprep.subr.mxu0 0.0
    %1685 = vmatpush1.msra.mxu0 0.0
    %1686 = vmatprep.subr.mxu0 0.0
    %1687 = vmatpush1.msra.mxu0 0.0
    %1688 = vmatprep.subr.mxu0 0.0
    %1689 = vmatpush1.msra.mxu0 0.0
    %1690 = vmatprep.subr.mxu0 0.0
    %1691 = vmatpush1.msra.mxu0 0.0
    %1692 = vmatprep.subr.mxu0 0.0
    %1693 = vmatpush1.msra.mxu0 0.0
    %1694 = vmatprep.subr.mxu0 0.0
    %1695 = vmatpush1.msra.mxu0 0.0
    %1696 = vmatprep.subr.mxu0 0.0
    %1697 = vmatpush1.msra.mxu0 0.0
    %1698 = vmatprep.subr.mxu0 0.0
    %1699 = vmatpush1.msra.mxu0 0.0
    %1700 = vmatprep.subr.mxu0 0.0
    %1701 = vmatpush1.msra.mxu0 0.0
    %1702 = vmatprep.subr.mxu0 0.0
    %1703 = vmatpush1.msra.mxu0 0.0
    %1704 = vmatprep.subr.mxu0 0.0
    %1705 = vmatpush1.msra.mxu0 0.0
    %1706 = vmatprep.subr.mxu0 0.0
    %1707 = vmatpush1.msra.mxu0 0.0
    %1708 = vmatprep.subr.mxu0 0.0
    %1709 = vmatpush1.msra.mxu0 0.0
    %1710 = vmatprep.subr.mxu0 0.0
    %1711 = vmatpush1.msra.mxu0 0.0
    %1712 = vmatprep.subr.mxu0 0.0
    %1713 = vmatpush1.msra.mxu0 0.0
    %1714 = vmatprep.subr.mxu0 0.0
    %1715 = vmatpush1.msra.mxu0 0.0
    %1716 = vmatprep.subr.mxu0 0.0
    %1717 = vmatpush1.msra.mxu0 0.0
    %1718 = vmatprep.subr.mxu0 0.0
    %1719 = vmatpush1.msra.mxu0 0.0
    %1720 = vmatprep.subr.mxu0 0.0
    %1721 = vmatpush1.msra.mxu0 0.0
    %1722 = vmatprep.subr.mxu0 0.0
    %1723 = vmatpush1.msra.mxu0 0.0
    %1724 = vmatprep.subr.mxu0 0.0
    %1725 = vmatpush1.msra.mxu0 0.0
    %1726 = vmatprep.subr.mxu0 0.0
    %1727 = vmatpush1.msra.mxu0 0.0
    %1728 = vmatprep.subr.mxu0 0.0
    %1729 = vmatpush1.msra.mxu0 0.0
    %1730 = vmatprep.subr.mxu0 0.0
    %1731 = vmatpush1.msra.mxu0 0.0
    %1732 = vmatprep.subr.mxu0 0.0
    %1733 = vmatpush1.msra.mxu0 0.0
    %1734 = vmatprep.subr.mxu0 0.0
    %1735 = vmatpush1.msra.mxu0 0.0
    %1736 = vmatprep.subr.mxu0 0.0
    %1737 = vmatpush1.msra.mxu0 0.0
    %1738 = vmatprep.subr.mxu0 0.0
    %1739 = vmatpush1.msra.mxu0 0.0
    %1740 = vmatprep.mubr.f32.mxu0 0.0
    %1741 = vmatmul.mubr.f32.gmra.mrb[0].mxu0 %v1674
    %v1742 = vpop.f32.mrb[0].mxu0
    %v1743 = vadd.f32 %v1670, %v1742
    %v1744 = vpop.f32.mrb[0].mxu0
    %1745 = vdwg.mxu0
    %v1746 = vld [vmem:[%s7] sm:$0x1]
    %v1747 = vadd.f32 %v1743, %v1746
    %v1748 = vxor.u32 %v1747, 2147483648
    %v1749 = vmul.f32 %v1748, 1.442695
    %v1750 = vpow.pop %v1749
    %v1751 = vadd.f32 %v1750, 1.0
    %v1752 = vrcp.pop %v1751
    %v1753 = vmul.f32 1.0, %v1752
    %v1754 = vtanh.pop %v1747
    %v1755 = vmul.f32 %v1753, %v1401
    %1757 = vrot.lane.b32.xlu0 %v1754, 64
    %v1758 = vpop.permute.xlu0 %1757
    %v1760 = vmul.f32 %v1753, %v1758
    %1762 = vrot.lane.b32.xlu0 %v1760, 32
    %v1763 = vpop.permute.xlu0 %1762
    %v1765 = vadd.f32 %v1755, %v1763
    %v1766 = vtanh.pop %v1765
    %1768 = vrot.lane.b32.xlu0 %v1766, 64
    %v1769 = vpop.permute.xlu0 %1768
    %v1771 = vmul.f32 %v1753, %v1769
    %v1772 = vld [vmem:[#allocation9] sm:$0xff]
    %v1773 = vld [vmem:[#allocation9 + $0x8] sm:$0xff]
    %v1774 = vld [vmem:[#allocation9 + $0x10] sm:$0xff]
    %v1775 = vld [vmem:[#allocation9 + $0x18] sm:$0xff]
    %v1776 = vld [vmem:[#allocation11] sm:$0xff]
    %v1777 = vld [vmem:[#allocation11 + $0x8] sm:$0xff]
    %v1778 = vld [vmem:[#allocation11 + $0x10] sm:$0xff]
    %v1779 = vld [vmem:[#allocation11 + $0x18] sm:$0xff]
    %v1780 = vsel %vm133, %v1591, 0
    %1782 = vmatprep.subr.mxu0 0.0
    %1783 = vmatpush1.msra.mxu0 %v1776
    %1784 = vmatprep.subr.mxu0 0.0
    %1785 = vmatpush1.msra.mxu0 %v1777
    %1786 = vmatprep.subr.mxu0 0.0
    %1787 = vmatpush1.msra.mxu0 %v1778
    %1788 = vmatprep.subr.mxu0 0.0
    %1789 = vmatpush1.msra.mxu0 %v1779
    %1790 = vmatprep.subr.mxu0 0.0
    %1791 = vmatpush1.msra.mxu0 0.0
    %1792 = vmatprep.subr.mxu0 0.0
    %1793 = vmatpush1.msra.mxu0 0.0
    %1794 = vmatprep.subr.mxu0 0.0
    %1795 = vmatpush1.msra.mxu0 0.0
    %1796 = vmatprep.subr.mxu0 0.0
    %1797 = vmatpush1.msra.mxu0 0.0
    %1798 = vmatprep.subr.mxu0 0.0
    %1799 = vmatpush1.msra.mxu0 0.0
    %1800 = vmatprep.subr.mxu0 0.0
    %1801 = vmatpush1.msra.mxu0 0.0
    %1802 = vmatprep.subr.mxu0 0.0
    %1803 = vmatpush1.msra.mxu0 0.0
    %1804 = vmatprep.subr.mxu0 0.0
    %1805 = vmatpush1.msra.mxu0 0.0
    %1806 = vmatprep.subr.mxu0 0.0
    %1807 = vmatpush1.msra.mxu0 0.0
    %1808 = vmatprep.subr.mxu0 0.0
    %1809 = vmatpush1.msra.mxu0 0.0
    %1810 = vmatprep.subr.mxu0 0.0
    %1811 = vmatpush1.msra.mxu0 0.0
    %1812 = vmatprep.subr.mxu0 0.0
    %1813 = vmatpush1.msra.mxu0 0.0
    %1814 = vmatprep.subr.mxu0 0.0
    %1815 = vmatpush1.msra.mxu0 0.0
    %1816 = vmatprep.subr.mxu0 0.0
    %1817 = vmatpush1.msra.mxu0 0.0
    %1818 = vmatprep.subr.mxu0 0.0
    %1819 = vmatpush1.msra.mxu0 0.0
    %1820 = vmatprep.subr.mxu0 0.0
    %1821 = vmatpush1.msra.mxu0 0.0
    %1822 = vmatprep.subr.mxu0 0.0
    %1823 = vmatpush1.msra.mxu0 0.0
    %1824 = vmatprep.subr.mxu0 0.0
    %1825 = vmatpush1.msra.mxu0 0.0
    %1826 = vmatprep.subr.mxu0 0.0
    %1827 = vmatpush1.msra.mxu0 0.0
    %1828 = vmatprep.subr.mxu0 0.0
    %1829 = vmatpush1.msra.mxu0 0.0
    %1830 = vmatprep.subr.mxu0 0.0
    %1831 = vmatpush1.msra.mxu0 0.0
    %1832 = vmatprep.subr.mxu0 0.0
    %1833 = vmatpush1.msra.mxu0 0.0
    %1834 = vmatprep.subr.mxu0 0.0
    %1835 = vmatpush1.msra.mxu0 0.0
    %1836 = vmatprep.subr.mxu0 0.0
    %1837 = vmatpush1.msra.mxu0 0.0
    %1838 = vmatprep.subr.mxu0 0.0
    %1839 = vmatpush1.msra.mxu0 0.0
    %1840 = vmatprep.subr.mxu0 0.0
    %1841 = vmatpush1.msra.mxu0 0.0
    %1842 = vmatprep.subr.mxu0 0.0
    %1843 = vmatpush1.msra.mxu0 0.0
    %1844 = vmatprep.subr.mxu0 0.0
    %1845 = vmatpush1.msra.mxu0 0.0
    %1846 = vmatprep.mubr.f32.mxu0 0.0
    %1847 = vmatmul.mubr.f32.gmra.mrb[0].mxu0 %v1780
    %v1848 = vpop.f32.mrb[0].mxu0
    %v1849 = vadd.f32 0.0, %v1848
    %v1850 = vpop.f32.mrb[0].mxu0
    %1851 = vdwg.mxu0
    %1853 = vrot.lane.b32.xlu0 %v1771, 32
    %v1854 = vpop.permute.xlu0 %1853
    %v1855 = vsel %vm133, %v1854, 0
    %1857 = vmatprep.subr.mxu0 0.0
    %1858 = vmatpush1.msra.mxu0 %v1772
    %1859 = vmatprep.subr.mxu0 0.0
    %1860 = vmatpush1.msra.mxu0 %v1773
    %1861 = vmatprep.subr.mxu0 0.0
    %1862 = vmatpush1.msra.mxu0 %v1774
    %1863 = vmatprep.subr.mxu0 0.0
    %1864 = vmatpush1.msra.mxu0 %v1775
    %1865 = vmatprep.subr.mxu0 0.0
    %1866 = vmatpush1.msra.mxu0 0.0
    %1867 = vmatprep.subr.mxu0 0.0
    %1868 = vmatpush1.msra.mxu0 0.0
    %1869 = vmatprep.subr.mxu0 0.0
    %1870 = vmatpush1.msra.mxu0 0.0
    %1871 = vmatprep.subr.mxu0 0.0
    %1872 = vmatpush1.msra.mxu0 0.0
    %1873 = vmatprep.subr.mxu0 0.0
    %1874 = vmatpush1.msra.mxu0 0.0
    %1875 = vmatprep.subr.mxu0 0.0
    %1876 = vmatpush1.msra.mxu0 0.0
    %1877 = vmatprep.subr.mxu0 0.0
    %1878 = vmatpush1.msra.mxu0 0.0
    %1879 = vmatprep.subr.mxu0 0.0
    %1880 = vmatpush1.msra.mxu0 0.0
    %1881 = vmatprep.subr.mxu0 0.0
    %1882 = vmatpush1.msra.mxu0 0.0
    %1883 = vmatprep.subr.mxu0 0.0
    %1884 = vmatpush1.msra.mxu0 0.0
    %1885 = vmatprep.subr.mxu0 0.0
    %1886 = vmatpush1.msra.mxu0 0.0
    %1887 = vmatprep.subr.mxu0 0.0
    %1888 = vmatpush1.msra.mxu0 0.0
    %1889 = vmatprep.subr.mxu0 0.0
    %1890 = vmatpush1.msra.mxu0 0.0
    %1891 = vmatprep.subr.mxu0 0.0
    %1892 = vmatpush1.msra.mxu0 0.0
    %1893 = vmatprep.subr.mxu0 0.0
    %1894 = vmatpush1.msra.mxu0 0.0
    %1895 = vmatprep.subr.mxu0 0.0
    %1896 = vmatpush1.msra.mxu0 0.0
    %1897 = vmatprep.subr.mxu0 0.0
    %1898 = vmatpush1.msra.mxu0 0.0
    %1899 = vmatprep.subr.mxu0 0.0
    %1900 = vmatpush1.msra.mxu0 0.0
    %1901 = vmatprep.subr.mxu0 0.0
    %1902 = vmatpush1.msra.mxu0 0.0
    %1903 = vmatprep.subr.mxu0 0.0
    %1904 = vmatpush1.msra.mxu0 0.0
    %1905 = vmatprep.subr.mxu0 0.0
    %1906 = vmatpush1.msra.mxu0 0.0
    %1907 = vmatprep.subr.mxu0 0.0
    %1908 = vmatpush1.msra.mxu0 0.0
    %1909 = vmatprep.subr.mxu0 0.0
    %1910 = vmatpush1.msra.mxu0 0.0
    %1911 = vmatprep.subr.mxu0 0.0
    %1912 = vmatpush1.msra.mxu0 0.0
    %1913 = vmatprep.subr.mxu0 0.0
    %1914 = vmatpush1.msra.mxu0 0.0
    %1915 = vmatprep.subr.mxu0 0.0
    %1916 = vmatpush1.msra.mxu0 0.0
    %1917 = vmatprep.subr.mxu0 0.0
    %1918 = vmatpush1.msra.mxu0 0.0
    %1919 = vmatprep.subr.mxu0 0.0
    %1920 = vmatpush1.msra.mxu0 0.0
    %1921 = vmatprep.mubr.f32.mxu0 0.0
    %1922 = vmatmul.mubr.f32.gmra.mrb[0].mxu0 %v1855
    %v1923 = vpop.f32.mrb[0].mxu0
    %v1924 = vadd.f32 %v1849, %v1923
    %v1925 = vpop.f32.mrb[0].mxu0
    %1926 = vdwg.mxu0
    %v1927 = vld [vmem:[%s7 + $0x1] sm:$0x1]
    %v1928 = vadd.f32 %v1924, %v1927
    %v1929 = vxor.u32 %v1928, 2147483648
    %v1930 = vmul.f32 %v1929, 1.442695
    %v1931 = vpow.pop %v1930
    %v1932 = vadd.f32 %v1931, 1.0
    %v1933 = vrcp.pop %v1932
    %v1934 = vmul.f32 1.0, %v1933
    %v1935 = vtanh.pop %v1928
    %v1936 = vmul.f32 %v1934, %v1582
    %1938 = vrot.lane.b32.xlu0 %v1935, 64
    %v1939 = vpop.permute.xlu0 %1938
    %v1941 = vmul.f32 %v1934, %v1939
    %1943 = vrot.lane.b32.xlu0 %v1941, 32
    %v1944 = vpop.permute.xlu0 %1943
    %v1946 = vadd.f32 %v1936, %v1944
    %v1947 = vtanh.pop %v1946
    %1949 = vrot.lane.b32.xlu0 %v1947, 64
    %v1950 = vpop.permute.xlu0 %1949
    %v1952 = vmul.f32 %v1934, %v1950
    %1954 = vrot.lane.b32.xlu0 %v1952, 32
    %v1955 = vpop.permute.xlu0 %1954
    %1957 = vst.msk [vmem:[#allocation2 + $0x4] sm:$0x1] %vm500, %v1955
    %v1958 = vld [vmem:[#allocation3 + $0x5] sm:$0x1]
    %v1959 = vld [vmem:[#allocation6] sm:$0xff]
    %v1960 = vld [vmem:[#allocation6 + $0x8] sm:$0xff]
    %v1961 = vld [vmem:[#allocation6 + $0x10] sm:$0xff]
    %v1962 = vld [vmem:[#allocation6 + $0x18] sm:$0xff]
    %v1963 = vld [vmem:[#allocation8] sm:$0xff]
    %v1964 = vld [vmem:[#allocation8 + $0x8] sm:$0xff]
    %v1965 = vld [vmem:[#allocation8 + $0x10] sm:$0xff]
    %v1966 = vld [vmem:[#allocation8 + $0x18] sm:$0xff]
    %1967 = vmatprep.subr.mxu0 0.0
    %1968 = vmatpush1.msra.mxu0 %v1963
    %1969 = vmatprep.subr.mxu0 0.0
    %1970 = vmatpush1.msra.mxu0 %v1964
    %1971 = vmatprep.subr.mxu0 0.0
    %1972 = vmatpush1.msra.mxu0 %v1965
    %1973 = vmatprep.subr.mxu0 0.0
    %1974 = vmatpush1.msra.mxu0 %v1966
    %1975 = vmatprep.subr.mxu0 0.0
    %1976 = vmatpush1.msra.mxu0 0.0
    %1977 = vmatprep.subr.mxu0 0.0
    %1978 = vmatpush1.msra.mxu0 0.0
    %1979 = vmatprep.subr.mxu0 0.0
    %1980 = vmatpush1.msra.mxu0 0.0
    %1981 = vmatprep.subr.mxu0 0.0
    %1982 = vmatpush1.msra.mxu0 0.0
    %1983 = vmatprep.subr.mxu0 0.0
    %1984 = vmatpush1.msra.mxu0 0.0
    %1985 = vmatprep.subr.mxu0 0.0
    %1986 = vmatpush1.msra.mxu0 0.0
    %1987 = vmatprep.subr.mxu0 0.0
    %1988 = vmatpush1.msra.mxu0 0.0
    %1989 = vmatprep.subr.mxu0 0.0
    %1990 = vmatpush1.msra.mxu0 0.0
    %1991 = vmatprep.subr.mxu0 0.0
    %1992 = vmatpush1.msra.mxu0 0.0
    %1993 = vmatprep.subr.mxu0 0.0
    %1994 = vmatpush1.msra.mxu0 0.0
    %1995 = vmatprep.subr.mxu0 0.0
    %1996 = vmatpush1.msra.mxu0 0.0
    %1997 = vmatprep.subr.mxu0 0.0
    %1998 = vmatpush1.msra.mxu0 0.0
    %1999 = vmatprep.subr.mxu0 0.0
    %2000 = vmatpush1.msra.mxu0 0.0
    %2001 = vmatprep.subr.mxu0 0.0
    %2002 = vmatpush1.msra.mxu0 0.0
    %2003 = vmatprep.subr.mxu0 0.0
    %2004 = vmatpush1.msra.mxu0 0.0
    %2005 = vmatprep.subr.mxu0 0.0
    %2006 = vmatpush1.msra.mxu0 0.0
    %2007 = vmatprep.subr.mxu0 0.0
    %2008 = vmatpush1.msra.mxu0 0.0
    %2009 = vmatprep.subr.mxu0 0.0
    %2010 = vmatpush1.msra.mxu0 0.0
    %2011 = vmatprep.subr.mxu0 0.0
    %2012 = vmatpush1.msra.mxu0 0.0
    %2013 = vmatprep.subr.mxu0 0.0
    %2014 = vmatpush1.msra.mxu0 0.0
    %2015 = vmatprep.subr.mxu0 0.0
    %2016 = vmatpush1.msra.mxu0 0.0
    %2017 = vmatprep.subr.mxu0 0.0
    %2018 = vmatpush1.msra.mxu0 0.0
    %2019 = vmatprep.subr.mxu0 0.0
    %2020 = vmatpush1.msra.mxu0 0.0
    %2021 = vmatprep.subr.mxu0 0.0
    %2022 = vmatpush1.msra.mxu0 0.0
    %2023 = vmatprep.subr.mxu0 0.0
    %2024 = vmatpush1.msra.mxu0 0.0
    %2025 = vmatprep.subr.mxu0 0.0
    %2026 = vmatpush1.msra.mxu0 0.0
    %2027 = vmatprep.subr.mxu0 0.0
    %2028 = vmatpush1.msra.mxu0 0.0
    %2029 = vmatprep.subr.mxu0 0.0
    %2030 = vmatpush1.msra.mxu0 0.0
    %2031 = vmatprep.mubr.f32.mxu0 0.0
    %2032 = vmatmul.mubr.f32.gmra.mrb[0].mxu0 %v1855
    %v2033 = vpop.f32.mrb[0].mxu0
    %v2034 = vadd.f32 0.0, %v2033
    %v2035 = vpop.f32.mrb[0].mxu0
    %2036 = vdwg.mxu0
    %v2038 = vsel %vm133, %v1958, 0
    %2040 = vmatprep.subr.mxu0 0.0
    %2041 = vmatpush1.msra.mxu0 %v1959
    %2042 = vmatprep.subr.mxu0 0.0
    %2043 = vmatpush1.msra.mxu0 %v1960
    %2044 = vmatprep.subr.mxu0 0.0
    %2045 = vmatpush1.msra.mxu0 %v1961
    %2046 = vmatprep.subr.mxu0 0.0
    %2047 = vmatpush1.msra.mxu0 %v1962
    %2048 = vmatprep.subr.mxu0 0.0
    %2049 = vmatpush1.msra.mxu0 0.0
    %2050 = vmatprep.subr.mxu0 0.0
    %2051 = vmatpush1.msra.mxu0 0.0
    %2052 = vmatprep.subr.mxu0 0.0
    %2053 = vmatpush1.msra.mxu0 0.0
    %2054 = vmatprep.subr.mxu0 0.0
    %2055 = vmatpush1.msra.mxu0 0.0
    %2056 = vmatprep.subr.mxu0 0.0
    %2057 = vmatpush1.msra.mxu0 0.0
    %2058 = vmatprep.subr.mxu0 0.0
    %2059 = vmatpush1.msra.mxu0 0.0
    %2060 = vmatprep.subr.mxu0 0.0
    %2061 = vmatpush1.msra.mxu0 0.0
    %2062 = vmatprep.subr.mxu0 0.0
    %2063 = vmatpush1.msra.mxu0 0.0
    %2064 = vmatprep.subr.mxu0 0.0
    %2065 = vmatpush1.msra.mxu0 0.0
    %2066 = vmatprep.subr.mxu0 0.0
    %2067 = vmatpush1.msra.mxu0 0.0
    %2068 = vmatprep.subr.mxu0 0.0
    %2069 = vmatpush1.msra.mxu0 0.0
    %2070 = vmatprep.subr.mxu0 0.0
    %2071 = vmatpush1.msra.mxu0 0.0
    %2072 = vmatprep.subr.mxu0 0.0
    %2073 = vmatpush1.msra.mxu0 0.0
    %2074 = vmatprep.subr.mxu0 0.0
    %2075 = vmatpush1.msra.mxu0 0.0
    %2076 = vmatprep.subr.mxu0 0.0
    %2077 = vmatpush1.msra.mxu0 0.0
    %2078 = vmatprep.subr.mxu0 0.0
    %2079 = vmatpush1.msra.mxu0 0.0
    %2080 = vmatprep.subr.mxu0 0.0
    %2081 = vmatpush1.msra.mxu0 0.0
    %2082 = vmatprep.subr.mxu0 0.0
    %2083 = vmatpush1.msra.mxu0 0.0
    %2084 = vmatprep.subr.mxu0 0.0
    %2085 = vmatpush1.msra.mxu0 0.0
    %2086 = vmatprep.subr.mxu0 0.0
    %2087 = vmatpush1.msra.mxu0 0.0
    %2088 = vmatprep.subr.mxu0 0.0
    %2089 = vmatpush1.msra.mxu0 0.0
    %2090 = vmatprep.subr.mxu0 0.0
    %2091 = vmatpush1.msra.mxu0 0.0
    %2092 = vmatprep.subr.mxu0 0.0
    %2093 = vmatpush1.msra.mxu0 0.0
    %2094 = vmatprep.subr.mxu0 0.0
    %2095 = vmatpush1.msra.mxu0 0.0
    %2096 = vmatprep.subr.mxu0 0.0
    %2097 = vmatpush1.msra.mxu0 0.0
    %2098 = vmatprep.subr.mxu0 0.0
    %2099 = vmatpush1.msra.mxu0 0.0
    %2100 = vmatprep.subr.mxu0 0.0
    %2101 = vmatpush1.msra.mxu0 0.0
    %2102 = vmatprep.subr.mxu0 0.0
    %2103 = vmatpush1.msra.mxu0 0.0
    %2104 = vmatprep.mubr.f32.mxu0 0.0
    %2105 = vmatmul.mubr.f32.gmra.mrb[0].mxu0 %v2038
    %v2106 = vpop.f32.mrb[0].mxu0
    %v2107 = vadd.f32 %v2034, %v2106
    %v2108 = vpop.f32.mrb[0].mxu0
    %2109 = vdwg.mxu0
    %v2110 = vld [vmem:[%s7] sm:$0x1]
    %v2111 = vadd.f32 %v2107, %v2110
    %v2112 = vxor.u32 %v2111, 2147483648
    %v2113 = vmul.f32 %v2112, 1.442695
    %v2114 = vpow.pop %v2113
    %v2115 = vadd.f32 %v2114, 1.0
    %v2116 = vrcp.pop %v2115
    %v2117 = vmul.f32 1.0, %v2116
    %v2118 = vtanh.pop %v2111
    %v2119 = vmul.f32 %v2117, %v1765
    %2121 = vrot.lane.b32.xlu0 %v2118, 64
    %v2122 = vpop.permute.xlu0 %2121
    %v2124 = vmul.f32 %v2117, %v2122
    %2126 = vrot.lane.b32.xlu0 %v2124, 32
    %v2127 = vpop.permute.xlu0 %2126
    %v2129 = vadd.f32 %v2119, %v2127
    %v2130 = vtanh.pop %v2129
    %2132 = vrot.lane.b32.xlu0 %v2130, 64
    %v2133 = vpop.permute.xlu0 %2132
    %v2135 = vmul.f32 %v2117, %v2133
    %v2136 = vld [vmem:[#allocation9] sm:$0xff]
    %v2137 = vld [vmem:[#allocation9 + $0x8] sm:$0xff]
    %v2138 = vld [vmem:[#allocation9 + $0x10] sm:$0xff]
    %v2139 = vld [vmem:[#allocation9 + $0x18] sm:$0xff]
    %v2140 = vld [vmem:[#allocation11] sm:$0xff]
    %v2141 = vld [vmem:[#allocation11 + $0x8] sm:$0xff]
    %v2142 = vld [vmem:[#allocation11 + $0x10] sm:$0xff]
    %v2143 = vld [vmem:[#allocation11 + $0x18] sm:$0xff]
    %v2144 = vsel %vm133, %v1955, 0
    %2146 = vmatprep.subr.mxu0 0.0
    %2147 = vmatpush1.msra.mxu0 %v2140
    %2148 = vmatprep.subr.mxu0 0.0
    %2149 = vmatpush1.msra.mxu0 %v2141
    %2150 = vmatprep.subr.mxu0 0.0
    %2151 = vmatpush1.msra.mxu0 %v2142
    %2152 = vmatprep.subr.mxu0 0.0
    %2153 = vmatpush1.msra.mxu0 %v2143
    %2154 = vmatprep.subr.mxu0 0.0
    %2155 = vmatpush1.msra.mxu0 0.0
    %2156 = vmatprep.subr.mxu0 0.0
    %2157 = vmatpush1.msra.mxu0 0.0
    %2158 = vmatprep.subr.mxu0 0.0
    %2159 = vmatpush1.msra.mxu0 0.0
    %2160 = vmatprep.subr.mxu0 0.0
    %2161 = vmatpush1.msra.mxu0 0.0
    %2162 = vmatprep.subr.mxu0 0.0
    %2163 = vmatpush1.msra.mxu0 0.0
    %2164 = vmatprep.subr.mxu0 0.0
    %2165 = vmatpush1.msra.mxu0 0.0
    %2166 = vmatprep.subr.mxu0 0.0
    %2167 = vmatpush1.msra.mxu0 0.0
    %2168 = vmatprep.subr.mxu0 0.0
    %2169 = vmatpush1.msra.mxu0 0.0
    %2170 = vmatprep.subr.mxu0 0.0
    %2171 = vmatpush1.msra.mxu0 0.0
    %2172 = vmatprep.subr.mxu0 0.0
    %2173 = vmatpush1.msra.mxu0 0.0
    %2174 = vmatprep.subr.mxu0 0.0
    %2175 = vmatpush1.msra.mxu0 0.0
    %2176 = vmatprep.subr.mxu0 0.0
    %2177 = vmatpush1.msra.mxu0 0.0
    %2178 = vmatprep.subr.mxu0 0.0
    %2179 = vmatpush1.msra.mxu0 0.0
    %2180 = vmatprep.subr.mxu0 0.0
    %2181 = vmatpush1.msra.mxu0 0.0
    %2182 = vmatprep.subr.mxu0 0.0
    %2183 = vmatpush1.msra.mxu0 0.0
    %2184 = vmatprep.subr.mxu0 0.0
    %2185 = vmatpush1.msra.mxu0 0.0
    %2186 = vmatprep.subr.mxu0 0.0
    %2187 = vmatpush1.msra.mxu0 0.0
    %2188 = vmatprep.subr.mxu0 0.0
    %2189 = vmatpush1.msra.mxu0 0.0
    %2190 = vmatprep.subr.mxu0 0.0
    %2191 = vmatpush1.msra.mxu0 0.0
    %2192 = vmatprep.subr.mxu0 0.0
    %2193 = vmatpush1.msra.mxu0 0.0
    %2194 = vmatprep.subr.mxu0 0.0
    %2195 = vmatpush1.msra.mxu0 0.0
    %2196 = vmatprep.subr.mxu0 0.0
    %2197 = vmatpush1.msra.mxu0 0.0
    %2198 = vmatprep.subr.mxu0 0.0
    %2199 = vmatpush1.msra.mxu0 0.0
    %2200 = vmatprep.subr.mxu0 0.0
    %2201 = vmatpush1.msra.mxu0 0.0
    %2202 = vmatprep.subr.mxu0 0.0
    %2203 = vmatpush1.msra.mxu0 0.0
    %2204 = vmatprep.subr.mxu0 0.0
    %2205 = vmatpush1.msra.mxu0 0.0
    %2206 = vmatprep.subr.mxu0 0.0
    %2207 = vmatpush1.msra.mxu0 0.0
    %2208 = vmatprep.subr.mxu0 0.0
    %2209 = vmatpush1.msra.mxu0 0.0
    %2210 = vmatprep.mubr.f32.mxu0 0.0
    %2211 = vmatmul.mubr.f32.gmra.mrb[0].mxu0 %v2144
    %v2212 = vpop.f32.mrb[0].mxu0
    %v2213 = vadd.f32 0.0, %v2212
    %v2214 = vpop.f32.mrb[0].mxu0
    %2215 = vdwg.mxu0
    %2217 = vrot.lane.b32.xlu0 %v2135, 32
    %v2218 = vpop.permute.xlu0 %2217
    %v2219 = vsel %vm133, %v2218, 0
    %2221 = vmatprep.subr.mxu0 0.0
    %2222 = vmatpush1.msra.mxu0 %v2136
    %2223 = vmatprep.subr.mxu0 0.0
    %2224 = vmatpush1.msra.mxu0 %v2137
    %2225 = vmatprep.subr.mxu0 0.0
    %2226 = vmatpush1.msra.mxu0 %v2138
    %2227 = vmatprep.subr.mxu0 0.0
    %2228 = vmatpush1.msra.mxu0 %v2139
    %2229 = vmatprep.subr.mxu0 0.0
    %2230 = vmatpush1.msra.mxu0 0.0
    %2231 = vmatprep.subr.mxu0 0.0
    %2232 = vmatpush1.msra.mxu0 0.0
    %2233 = vmatprep.subr.mxu0 0.0
    %2234 = vmatpush1.msra.mxu0 0.0
    %2235 = vmatprep.subr.mxu0 0.0
    %2236 = vmatpush1.msra.mxu0 0.0
    %2237 = vmatprep.subr.mxu0 0.0
    %2238 = vmatpush1.msra.mxu0 0.0
    %2239 = vmatprep.subr.mxu0 0.0
    %2240 = vmatpush1.msra.mxu0 0.0
    %2241 = vmatprep.subr.mxu0 0.0
    %2242 = vmatpush1.msra.mxu0 0.0
    %2243 = vmatprep.subr.mxu0 0.0
    %2244 = vmatpush1.msra.mxu0 0.0
    %2245 = vmatprep.subr.mxu0 0.0
    %2246 = vmatpush1.msra.mxu0 0.0
    %2247 = vmatprep.subr.mxu0 0.0
    %2248 = vmatpush1.msra.mxu0 0.0
    %2249 = vmatprep.subr.mxu0 0.0
    %2250 = vmatpush1.msra.mxu0 0.0
    %2251 = vmatprep.subr.mxu0 0.0
    %2252 = vmatpush1.msra.mxu0 0.0
    %2253 = vmatprep.subr.mxu0 0.0
    %2254 = vmatpush1.msra.mxu0 0.0
    %2255 = vmatprep.subr.mxu0 0.0
    %2256 = vmatpush1.msra.mxu0 0.0
    %2257 = vmatprep.subr.mxu0 0.0
    %2258 = vmatpush1.msra.mxu0 0.0
    %2259 = vmatprep.subr.mxu0 0.0
    %2260 = vmatpush1.msra.mxu0 0.0
    %2261 = vmatprep.subr.mxu0 0.0
    %2262 = vmatpush1.msra.mxu0 0.0
    %2263 = vmatprep.subr.mxu0 0.0
    %2264 = vmatpush1.msra.mxu0 0.0
    %2265 = vmatprep.subr.mxu0 0.0
    %2266 = vmatpush1.msra.mxu0 0.0
    %2267 = vmatprep.subr.mxu0 0.0
    %2268 = vmatpush1.msra.mxu0 0.0
    %2269 = vmatprep.subr.mxu0 0.0
    %2270 = vmatpush1.msra.mxu0 0.0
    %2271 = vmatprep.subr.mxu0 0.0
    %2272 = vmatpush1.msra.mxu0 0.0
    %2273 = vmatprep.subr.mxu0 0.0
    %2274 = vmatpush1.msra.mxu0 0.0
    %2275 = vmatprep.subr.mxu0 0.0
    %2276 = vmatpush1.msra.mxu0 0.0
    %2277 = vmatprep.subr.mxu0 0.0
    %2278 = vmatpush1.msra.mxu0 0.0
    %2279 = vmatprep.subr.mxu0 0.0
    %2280 = vmatpush1.msra.mxu0 0.0
    %2281 = vmatprep.subr.mxu0 0.0
    %2282 = vmatpush1.msra.mxu0 0.0
    %2283 = vmatprep.subr.mxu0 0.0
    %2284 = vmatpush1.msra.mxu0 0.0
    %2285 = vmatprep.mubr.f32.mxu0 0.0
    %2286 = vmatmul.mubr.f32.gmra.mrb[0].mxu0 %v2219
    %v2287 = vpop.f32.mrb[0].mxu0
    %v2288 = vadd.f32 %v2213, %v2287
    %v2289 = vpop.f32.mrb[0].mxu0
    %2290 = vdwg.mxu0
    %v2291 = vld [vmem:[%s7 + $0x1] sm:$0x1]
    %v2292 = vadd.f32 %v2288, %v2291
    %v2293 = vxor.u32 %v2292, 2147483648
    %v2294 = vmul.f32 %v2293, 1.442695
    %v2295 = vpow.pop %v2294
    %v2296 = vadd.f32 %v2295, 1.0
    %v2297 = vrcp.pop %v2296
    %v2298 = vmul.f32 1.0, %v2297
    %v2299 = vtanh.pop %v2292
    %v2300 = vmul.f32 %v2298, %v1946
    %2302 = vrot.lane.b32.xlu0 %v2299, 64
    %v2303 = vpop.permute.xlu0 %2302
    %v2305 = vmul.f32 %v2298, %v2303
    %2307 = vrot.lane.b32.xlu0 %v2305, 32
    %v2308 = vpop.permute.xlu0 %2307
    %v2310 = vadd.f32 %v2300, %v2308
    %v2311 = vtanh.pop %v2310
    %2313 = vrot.lane.b32.xlu0 %v2311, 64
    %v2314 = vpop.permute.xlu0 %2313
    %v2316 = vmul.f32 %v2298, %v2314
    %2318 = vrot.lane.b32.xlu0 %v2316, 32
    %v2319 = vpop.permute.xlu0 %2318
    %2321 = vst.msk [vmem:[#allocation2 + $0x5] sm:$0x1] %vm500, %v2319
    %v2322 = vld [vmem:[#allocation3 + $0x6] sm:$0x1]
    %v2323 = vld [vmem:[#allocation6] sm:$0xff]
    %v2324 = vld [vmem:[#allocation6 + $0x8] sm:$0xff]
    %v2325 = vld [vmem:[#allocation6 + $0x10] sm:$0xff]
    %v2326 = vld [vmem:[#allocation6 + $0x18] sm:$0xff]
    %v2327 = vld [vmem:[#allocation8] sm:$0xff]
    %v2328 = vld [vmem:[#allocation8 + $0x8] sm:$0xff]
    %v2329 = vld [vmem:[#allocation8 + $0x10] sm:$0xff]
    %v2330 = vld [vmem:[#allocation8 + $0x18] sm:$0xff]
    %2331 = vmatprep.subr.mxu0 0.0
    %2332 = vmatpush1.msra.mxu0 %v2327
    %2333 = vmatprep.subr.mxu0 0.0
    %2334 = vmatpush1.msra.mxu0 %v2328
    %2335 = vmatprep.subr.mxu0 0.0
    %2336 = vmatpush1.msra.mxu0 %v2329
    %2337 = vmatprep.subr.mxu0 0.0
    %2338 = vmatpush1.msra.mxu0 %v2330
    %2339 = vmatprep.subr.mxu0 0.0
    %2340 = vmatpush1.msra.mxu0 0.0
    %2341 = vmatprep.subr.mxu0 0.0
    %2342 = vmatpush1.msra.mxu0 0.0
    %2343 = vmatprep.subr.mxu0 0.0
    %2344 = vmatpush1.msra.mxu0 0.0
    %2345 = vmatprep.subr.mxu0 0.0
    %2346 = vmatpush1.msra.mxu0 0.0
    %2347 = vmatprep.subr.mxu0 0.0
    %2348 = vmatpush1.msra.mxu0 0.0
    %2349 = vmatprep.subr.mxu0 0.0
    %2350 = vmatpush1.msra.mxu0 0.0
    %2351 = vmatprep.subr.mxu0 0.0
    %2352 = vmatpush1.msra.mxu0 0.0
    %2353 = vmatprep.subr.mxu0 0.0
    %2354 = vmatpush1.msra.mxu0 0.0
    %2355 = vmatprep.subr.mxu0 0.0
    %2356 = vmatpush1.msra.mxu0 0.0
    %2357 = vmatprep.subr.mxu0 0.0
    %2358 = vmatpush1.msra.mxu0 0.0
    %2359 = vmatprep.subr.mxu0 0.0
    %2360 = vmatpush1.msra.mxu0 0.0
    %2361 = vmatprep.subr.mxu0 0.0
    %2362 = vmatpush1.msra.mxu0 0.0
    %2363 = vmatprep.subr.mxu0 0.0
    %2364 = vmatpush1.msra.mxu0 0.0
    %2365 = vmatprep.subr.mxu0 0.0
    %2366 = vmatpush1.msra.mxu0 0.0
    %2367 = vmatprep.subr.mxu0 0.0
    %2368 = vmatpush1.msra.mxu0 0.0
    %2369 = vmatprep.subr.mxu0 0.0
    %2370 = vmatpush1.msra.mxu0 0.0
    %2371 = vmatprep.subr.mxu0 0.0
    %2372 = vmatpush1.msra.mxu0 0.0
    %2373 = vmatprep.subr.mxu0 0.0
    %2374 = vmatpush1.msra.mxu0 0.0
    %2375 = vmatprep.subr.mxu0 0.0
    %2376 = vmatpush1.msra.mxu0 0.0
    %2377 = vmatprep.subr.mxu0 0.0
    %2378 = vmatpush1.msra.mxu0 0.0
    %2379 = vmatprep.subr.mxu0 0.0
    %2380 = vmatpush1.msra.mxu0 0.0
    %2381 = vmatprep.subr.mxu0 0.0
    %2382 = vmatpush1.msra.mxu0 0.0
    %2383 = vmatprep.subr.mxu0 0.0
    %2384 = vmatpush1.msra.mxu0 0.0
    %2385 = vmatprep.subr.mxu0 0.0
    %2386 = vmatpush1.msra.mxu0 0.0
    %2387 = vmatprep.subr.mxu0 0.0
    %2388 = vmatpush1.msra.mxu0 0.0
    %2389 = vmatprep.subr.mxu0 0.0
    %2390 = vmatpush1.msra.mxu0 0.0
    %2391 = vmatprep.subr.mxu0 0.0
    %2392 = vmatpush1.msra.mxu0 0.0
    %2393 = vmatprep.subr.mxu0 0.0
    %2394 = vmatpush1.msra.mxu0 0.0
    %2395 = vmatprep.mubr.f32.mxu0 0.0
    %2396 = vmatmul.mubr.f32.gmra.mrb[0].mxu0 %v2219
    %v2397 = vpop.f32.mrb[0].mxu0
    %v2398 = vadd.f32 0.0, %v2397
    %v2399 = vpop.f32.mrb[0].mxu0
    %2400 = vdwg.mxu0
    %v2402 = vsel %vm133, %v2322, 0
    %2404 = vmatprep.subr.mxu0 0.0
    %2405 = vmatpush1.msra.mxu0 %v2323
    %2406 = vmatprep.subr.mxu0 0.0
    %2407 = vmatpush1.msra.mxu0 %v2324
    %2408 = vmatprep.subr.mxu0 0.0
    %2409 = vmatpush1.msra.mxu0 %v2325
    %2410 = vmatprep.subr.mxu0 0.0
    %2411 = vmatpush1.msra.mxu0 %v2326
    %2412 = vmatprep.subr.mxu0 0.0
    %2413 = vmatpush1.msra.mxu0 0.0
    %2414 = vmatprep.subr.mxu0 0.0
    %2415 = vmatpush1.msra.mxu0 0.0
    %2416 = vmatprep.subr.mxu0 0.0
    %2417 = vmatpush1.msra.mxu0 0.0
    %2418 = vmatprep.subr.mxu0 0.0
    %2419 = vmatpush1.msra.mxu0 0.0
    %2420 = vmatprep.subr.mxu0 0.0
    %2421 = vmatpush1.msra.mxu0 0.0
    %2422 = vmatprep.subr.mxu0 0.0
    %2423 = vmatpush1.msra.mxu0 0.0
    %2424 = vmatprep.subr.mxu0 0.0
    %2425 = vmatpush1.msra.mxu0 0.0
    %2426 = vmatprep.subr.mxu0 0.0
    %2427 = vmatpush1.msra.mxu0 0.0
    %2428 = vmatprep.subr.mxu0 0.0
    %2429 = vmatpush1.msra.mxu0 0.0
    %2430 = vmatprep.subr.mxu0 0.0
    %2431 = vmatpush1.msra.mxu0 0.0
    %2432 = vmatprep.subr.mxu0 0.0
    %2433 = vmatpush1.msra.mxu0 0.0
    %2434 = vmatprep.subr.mxu0 0.0
    %2435 = vmatpush1.msra.mxu0 0.0
    %2436 = vmatprep.subr.mxu0 0.0
    %2437 = vmatpush1.msra.mxu0 0.0
    %2438 = vmatprep.subr.mxu0 0.0
    %2439 = vmatpush1.msra.mxu0 0.0
    %2440 = vmatprep.subr.mxu0 0.0
    %2441 = vmatpush1.msra.mxu0 0.0
    %2442 = vmatprep.subr.mxu0 0.0
    %2443 = vmatpush1.msra.mxu0 0.0
    %2444 = vmatprep.subr.mxu0 0.0
    %2445 = vmatpush1.msra.mxu0 0.0
    %2446 = vmatprep.subr.mxu0 0.0
    %2447 = vmatpush1.msra.mxu0 0.0
    %2448 = vmatprep.subr.mxu0 0.0
    %2449 = vmatpush1.msra.mxu0 0.0
    %2450 = vmatprep.subr.mxu0 0.0
    %2451 = vmatpush1.msra.mxu0 0.0
    %2452 = vmatprep.subr.mxu0 0.0
    %2453 = vmatpush1.msra.mxu0 0.0
    %2454 = vmatprep.subr.mxu0 0.0
    %2455 = vmatpush1.msra.mxu0 0.0
    %2456 = vmatprep.subr.mxu0 0.0
    %2457 = vmatpush1.msra.mxu0 0.0
    %2458 = vmatprep.subr.mxu0 0.0
    %2459 = vmatpush1.msra.mxu0 0.0
    %2460 = vmatprep.subr.mxu0 0.0
    %2461 = vmatpush1.msra.mxu0 0.0
    %2462 = vmatprep.subr.mxu0 0.0
    %2463 = vmatpush1.msra.mxu0 0.0
    %2464 = vmatprep.subr.mxu0 0.0
    %2465 = vmatpush1.msra.mxu0 0.0
    %2466 = vmatprep.subr.mxu0 0.0
    %2467 = vmatpush1.msra.mxu0 0.0
    %2468 = vmatprep.mubr.f32.mxu0 0.0
    %2469 = vmatmul.mubr.f32.gmra.mrb[0].mxu0 %v2402
    %v2470 = vpop.f32.mrb[0].mxu0
    %v2471 = vadd.f32 %v2398, %v2470
    %v2472 = vpop.f32.mrb[0].mxu0
    %2473 = vdwg.mxu0
    %v2474 = vld [vmem:[%s7] sm:$0x1]
    %v2475 = vadd.f32 %v2471, %v2474
    %v2476 = vxor.u32 %v2475, 2147483648
    %v2477 = vmul.f32 %v2476, 1.442695
    %v2478 = vpow.pop %v2477
    %v2479 = vadd.f32 %v2478, 1.0
    %v2480 = vrcp.pop %v2479
    %v2481 = vmul.f32 1.0, %v2480
    %v2482 = vtanh.pop %v2475
    %v2483 = vmul.f32 %v2481, %v2129
    %2485 = vrot.lane.b32.xlu0 %v2482, 64
    %v2486 = vpop.permute.xlu0 %2485
    %v2488 = vmul.f32 %v2481, %v2486
    %2490 = vrot.lane.b32.xlu0 %v2488, 32
    %v2491 = vpop.permute.xlu0 %2490
    %v2493 = vadd.f32 %v2483, %v2491
    %v2494 = vtanh.pop %v2493
    %2496 = vrot.lane.b32.xlu0 %v2494, 64
    %v2497 = vpop.permute.xlu0 %2496
    %v2499 = vmul.f32 %v2481, %v2497
    %v2500 = vld [vmem:[#allocation9] sm:$0xff]
    %v2501 = vld [vmem:[#allocation9 + $0x8] sm:$0xff]
    %v2502 = vld [vmem:[#allocation9 + $0x10] sm:$0xff]
    %v2503 = vld [vmem:[#allocation9 + $0x18] sm:$0xff]
    %v2504 = vld [vmem:[#allocation11] sm:$0xff]
    %v2505 = vld [vmem:[#allocation11 + $0x8] sm:$0xff]
    %v2506 = vld [vmem:[#allocation11 + $0x10] sm:$0xff]
    %v2507 = vld [vmem:[#allocation11 + $0x18] sm:$0xff]
    %v2508 = vsel %vm133, %v2319, 0
    %2510 = vmatprep.subr.mxu0 0.0
    %2511 = vmatpush1.msra.mxu0 %v2504
    %2512 = vmatprep.subr.mxu0 0.0
    %2513 = vmatpush1.msra.mxu0 %v2505
    %2514 = vmatprep.subr.mxu0 0.0
    %2515 = vmatpush1.msra.mxu0 %v2506
    %2516 = vmatprep.subr.mxu0 0.0
    %2517 = vmatpush1.msra.mxu0 %v2507
    %2518 = vmatprep.subr.mxu0 0.0
    %2519 = vmatpush1.msra.mxu0 0.0
    %2520 = vmatprep.subr.mxu0 0.0
    %2521 = vmatpush1.msra.mxu0 0.0
    %2522 = vmatprep.subr.mxu0 0.0
    %2523 = vmatpush1.msra.mxu0 0.0
    %2524 = vmatprep.subr.mxu0 0.0
    %2525 = vmatpush1.msra.mxu0 0.0
    %2526 = vmatprep.subr.mxu0 0.0
    %2527 = vmatpush1.msra.mxu0 0.0
    %2528 = vmatprep.subr.mxu0 0.0
    %2529 = vmatpush1.msra.mxu0 0.0
    %2530 = vmatprep.subr.mxu0 0.0
    %2531 = vmatpush1.msra.mxu0 0.0
    %2532 = vmatprep.subr.mxu0 0.0
    %2533 = vmatpush1.msra.mxu0 0.0
    %2534 = vmatprep.subr.mxu0 0.0
    %2535 = vmatpush1.msra.mxu0 0.0
    %2536 = vmatprep.subr.mxu0 0.0
    %2537 = vmatpush1.msra.mxu0 0.0
    %2538 = vmatprep.subr.mxu0 0.0
    %2539 = vmatpush1.msra.mxu0 0.0
    %2540 = vmatprep.subr.mxu0 0.0
    %2541 = vmatpush1.msra.mxu0 0.0
    %2542 = vmatprep.subr.mxu0 0.0
    %2543 = vmatpush1.msra.mxu0 0.0
    %2544 = vmatprep.subr.mxu0 0.0
    %2545 = vmatpush1.msra.mxu0 0.0
    %2546 = vmatprep.subr.mxu0 0.0
    %2547 = vmatpush1.msra.mxu0 0.0
    %2548 = vmatprep.subr.mxu0 0.0
    %2549 = vmatpush1.msra.mxu0 0.0
    %2550 = vmatprep.subr.mxu0 0.0
    %2551 = vmatpush1.msra.mxu0 0.0
    %2552 = vmatprep.subr.mxu0 0.0
    %2553 = vmatpush1.msra.mxu0 0.0
    %2554 = vmatprep.subr.mxu0 0.0
    %2555 = vmatpush1.msra.mxu0 0.0
    %2556 = vmatprep.subr.mxu0 0.0
    %2557 = vmatpush1.msra.mxu0 0.0
    %2558 = vmatprep.subr.mxu0 0.0
    %2559 = vmatpush1.msra.mxu0 0.0
    %2560 = vmatprep.subr.mxu0 0.0
    %2561 = vmatpush1.msra.mxu0 0.0
    %2562 = vmatprep.subr.mxu0 0.0
    %2563 = vmatpush1.msra.mxu0 0.0
    %2564 = vmatprep.subr.mxu0 0.0
    %2565 = vmatpush1.msra.mxu0 0.0
    %2566 = vmatprep.subr.mxu0 0.0
    %2567 = vmatpush1.msra.mxu0 0.0
    %2568 = vmatprep.subr.mxu0 0.0
    %2569 = vmatpush1.msra.mxu0 0.0
    %2570 = vmatprep.subr.mxu0 0.0
    %2571 = vmatpush1.msra.mxu0 0.0
    %2572 = vmatprep.subr.mxu0 0.0
    %2573 = vmatpush1.msra.mxu0 0.0
    %2574 = vmatprep.mubr.f32.mxu0 0.0
    %2575 = vmatmul.mubr.f32.gmra.mrb[0].mxu0 %v2508
    %v2576 = vpop.f32.mrb[0].mxu0
    %v2577 = vadd.f32 0.0, %v2576
    %v2578 = vpop.f32.mrb[0].mxu0
    %2579 = vdwg.mxu0
    %2581 = vrot.lane.b32.xlu0 %v2499, 32
    %v2582 = vpop.permute.xlu0 %2581
    %v2583 = vsel %vm133, %v2582, 0
    %2585 = vmatprep.subr.mxu0 0.0
    %2586 = vmatpush1.msra.mxu0 %v2500
    %2587 = vmatprep.subr.mxu0 0.0
    %2588 = vmatpush1.msra.mxu0 %v2501
    %2589 = vmatprep.subr.mxu0 0.0
    %2590 = vmatpush1.msra.mxu0 %v2502
    %2591 = vmatprep.subr.mxu0 0.0
    %2592 = vmatpush1.msra.mxu0 %v2503
    %2593 = vmatprep.subr.mxu0 0.0
    %2594 = vmatpush1.msra.mxu0 0.0
    %2595 = vmatprep.subr.mxu0 0.0
    %2596 = vmatpush1.msra.mxu0 0.0
    %2597 = vmatprep.subr.mxu0 0.0
    %2598 = vmatpush1.msra.mxu0 0.0
    %2599 = vmatprep.subr.mxu0 0.0
    %2600 = vmatpush1.msra.mxu0 0.0
    %2601 = vmatprep.subr.mxu0 0.0
    %2602 = vmatpush1.msra.mxu0 0.0
    %2603 = vmatprep.subr.mxu0 0.0
    %2604 = vmatpush1.msra.mxu0 0.0
    %2605 = vmatprep.subr.mxu0 0.0
    %2606 = vmatpush1.msra.mxu0 0.0
    %2607 = vmatprep.subr.mxu0 0.0
    %2608 = vmatpush1.msra.mxu0 0.0
    %2609 = vmatprep.subr.mxu0 0.0
    %2610 = vmatpush1.msra.mxu0 0.0
    %2611 = vmatprep.subr.mxu0 0.0
    %2612 = vmatpush1.msra.mxu0 0.0
    %2613 = vmatprep.subr.mxu0 0.0
    %2614 = vmatpush1.msra.mxu0 0.0
    %2615 = vmatprep.subr.mxu0 0.0
    %2616 = vmatpush1.msra.mxu0 0.0
    %2617 = vmatprep.subr.mxu0 0.0
    %2618 = vmatpush1.msra.mxu0 0.0
    %2619 = vmatprep.subr.mxu0 0.0
    %2620 = vmatpush1.msra.mxu0 0.0
    %2621 = vmatprep.subr.mxu0 0.0
    %2622 = vmatpush1.msra.mxu0 0.0
    %2623 = vmatprep.subr.mxu0 0.0
    %2624 = vmatpush1.msra.mxu0 0.0
    %2625 = vmatprep.subr.mxu0 0.0
    %2626 = vmatpush1.msra.mxu0 0.0
    %2627 = vmatprep.subr.mxu0 0.0
    %2628 = vmatpush1.msra.mxu0 0.0
    %2629 = vmatprep.subr.mxu0 0.0
    %2630 = vmatpush1.msra.mxu0 0.0
    %2631 = vmatprep.subr.mxu0 0.0
    %2632 = vmatpush1.msra.mxu0 0.0
    %2633 = vmatprep.subr.mxu0 0.0
    %2634 = vmatpush1.msra.mxu0 0.0
    %2635 = vmatprep.subr.mxu0 0.0
    %2636 = vmatpush1.msra.mxu0 0.0
    %2637 = vmatprep.subr.mxu0 0.0
    %2638 = vmatpush1.msra.mxu0 0.0
    %2639 = vmatprep.subr.mxu0 0.0
    %2640 = vmatpush1.msra.mxu0 0.0
    %2641 = vmatprep.subr.mxu0 0.0
    %2642 = vmatpush1.msra.mxu0 0.0
    %2643 = vmatprep.subr.mxu0 0.0
    %2644 = vmatpush1.msra.mxu0 0.0
    %2645 = vmatprep.subr.mxu0 0.0
    %2646 = vmatpush1.msra.mxu0 0.0
    %2647 = vmatprep.subr.mxu0 0.0
    %2648 = vmatpush1.msra.mxu0 0.0
    %2649 = vmatprep.mubr.f32.mxu0 0.0
    %2650 = vmatmul.mubr.f32.gmra.mrb[0].mxu0 %v2583
    %v2651 = vpop.f32.mrb[0].mxu0
    %v2652 = vadd.f32 %v2577, %v2651
    %v2653 = vpop.f32.mrb[0].mxu0
    %2654 = vdwg.mxu0
    %v2655 = vld [vmem:[%s7 + $0x1] sm:$0x1]
    %v2656 = vadd.f32 %v2652, %v2655
    %v2657 = vxor.u32 %v2656, 2147483648
    %v2658 = vmul.f32 %v2657, 1.442695
    %v2659 = vpow.pop %v2658
    %v2660 = vadd.f32 %v2659, 1.0
    %v2661 = vrcp.pop %v2660
    %v2662 = vmul.f32 1.0, %v2661
    %v2663 = vtanh.pop %v2656
    %v2664 = vmul.f32 %v2662, %v2310
    %2666 = vrot.lane.b32.xlu0 %v2663, 64
    %v2667 = vpop.permute.xlu0 %2666
    %v2669 = vmul.f32 %v2662, %v2667
    %2671 = vrot.lane.b32.xlu0 %v2669, 32
    %v2672 = vpop.permute.xlu0 %2671
    %v2674 = vadd.f32 %v2664, %v2672
    %v2675 = vtanh.pop %v2674
    %2677 = vrot.lane.b32.xlu0 %v2675, 64
    %v2678 = vpop.permute.xlu0 %2677
    %v2680 = vmul.f32 %v2662, %v2678
    %2682 = vrot.lane.b32.xlu0 %v2680, 32
    %v2683 = vpop.permute.xlu0 %2682
    %2685 = vst.msk [vmem:[#allocation2 + $0x6] sm:$0x1] %vm500, %v2683
    %v2686 = vld [vmem:[#allocation3 + $0x7] sm:$0x1]
    %v2687 = vld [vmem:[#allocation6] sm:$0xff]
    %v2688 = vld [vmem:[#allocation6 + $0x8] sm:$0xff]
    %v2689 = vld [vmem:[#allocation6 + $0x10] sm:$0xff]
    %v2690 = vld [vmem:[#allocation6 + $0x18] sm:$0xff]
    %v2691 = vld [vmem:[#allocation8] sm:$0xff]
    %v2692 = vld [vmem:[#allocation8 + $0x8] sm:$0xff]
    %v2693 = vld [vmem:[#allocation8 + $0x10] sm:$0xff]
    %v2694 = vld [vmem:[#allocation8 + $0x18] sm:$0xff]
    %2695 = vmatprep.subr.mxu0 0.0
    %2696 = vmatpush1.msra.mxu0 %v2691
    %2697 = vmatprep.subr.mxu0 0.0
    %2698 = vmatpush1.msra.mxu0 %v2692
    %2699 = vmatprep.subr.mxu0 0.0
    %2700 = vmatpush1.msra.mxu0 %v2693
    %2701 = vmatprep.subr.mxu0 0.0
    %2702 = vmatpush1.msra.mxu0 %v2694
    %2703 = vmatprep.subr.mxu0 0.0
    %2704 = vmatpush1.msra.mxu0 0.0
    %2705 = vmatprep.subr.mxu0 0.0
    %2706 = vmatpush1.msra.mxu0 0.0
    %2707 = vmatprep.subr.mxu0 0.0
    %2708 = vmatpush1.msra.mxu0 0.0
    %2709 = vmatprep.subr.mxu0 0.0
    %2710 = vmatpush1.msra.mxu0 0.0
    %2711 = vmatprep.subr.mxu0 0.0
    %2712 = vmatpush1.msra.mxu0 0.0
    %2713 = vmatprep.subr.mxu0 0.0
    %2714 = vmatpush1.msra.mxu0 0.0
    %2715 = vmatprep.subr.mxu0 0.0
    %2716 = vmatpush1.msra.mxu0 0.0
    %2717 = vmatprep.subr.mxu0 0.0
    %2718 = vmatpush1.msra.mxu0 0.0
    %2719 = vmatprep.subr.mxu0 0.0
    %2720 = vmatpush1.msra.mxu0 0.0
    %2721 = vmatprep.subr.mxu0 0.0
    %2722 = vmatpush1.msra.mxu0 0.0
    %2723 = vmatprep.subr.mxu0 0.0
    %2724 = vmatpush1.msra.mxu0 0.0
    %2725 = vmatprep.subr.mxu0 0.0
    %2726 = vmatpush1.msra.mxu0 0.0
    %2727 = vmatprep.subr.mxu0 0.0
    %2728 = vmatpush1.msra.mxu0 0.0
    %2729 = vmatprep.subr.mxu0 0.0
    %2730 = vmatpush1.msra.mxu0 0.0
    %2731 = vmatprep.subr.mxu0 0.0
    %2732 = vmatpush1.msra.mxu0 0.0
    %2733 = vmatprep.subr.mxu0 0.0
    %2734 = vmatpush1.msra.mxu0 0.0
    %2735 = vmatprep.subr.mxu0 0.0
    %2736 = vmatpush1.msra.mxu0 0.0
    %2737 = vmatprep.subr.mxu0 0.0
    %2738 = vmatpush1.msra.mxu0 0.0
    %2739 = vmatprep.subr.mxu0 0.0
    %2740 = vmatpush1.msra.mxu0 0.0
    %2741 = vmatprep.subr.mxu0 0.0
    %2742 = vmatpush1.msra.mxu0 0.0
    %2743 = vmatprep.subr.mxu0 0.0
    %2744 = vmatpush1.msra.mxu0 0.0
    %2745 = vmatprep.subr.mxu0 0.0
    %2746 = vmatpush1.msra.mxu0 0.0
    %2747 = vmatprep.subr.mxu0 0.0
    %2748 = vmatpush1.msra.mxu0 0.0
    %2749 = vmatprep.subr.mxu0 0.0
    %2750 = vmatpush1.msra.mxu0 0.0
    %2751 = vmatprep.subr.mxu0 0.0
    %2752 = vmatpush1.msra.mxu0 0.0
    %2753 = vmatprep.subr.mxu0 0.0
    %2754 = vmatpush1.msra.mxu0 0.0
    %2755 = vmatprep.subr.mxu0 0.0
    %2756 = vmatpush1.msra.mxu0 0.0
    %2757 = vmatprep.subr.mxu0 0.0
    %2758 = vmatpush1.msra.mxu0 0.0
    %2759 = vmatprep.mubr.f32.mxu0 0.0
    %2760 = vmatmul.mubr.f32.gmra.mrb[0].mxu0 %v2583
    %v2761 = vpop.f32.mrb[0].mxu0
    %v2762 = vadd.f32 0.0, %v2761
    %v2763 = vpop.f32.mrb[0].mxu0
    %2764 = vdwg.mxu0
    %v2766 = vsel %vm133, %v2686, 0
    %2768 = vmatprep.subr.mxu0 0.0
    %2769 = vmatpush1.msra.mxu0 %v2687
    %2770 = vmatprep.subr.mxu0 0.0
    %2771 = vmatpush1.msra.mxu0 %v2688
    %2772 = vmatprep.subr.mxu0 0.0
    %2773 = vmatpush1.msra.mxu0 %v2689
    %2774 = vmatprep.subr.mxu0 0.0
    %2775 = vmatpush1.msra.mxu0 %v2690
    %2776 = vmatprep.subr.mxu0 0.0
    %2777 = vmatpush1.msra.mxu0 0.0
    %2778 = vmatprep.subr.mxu0 0.0
    %2779 = vmatpush1.msra.mxu0 0.0
    %2780 = vmatprep.subr.mxu0 0.0
    %2781 = vmatpush1.msra.mxu0 0.0
    %2782 = vmatprep.subr.mxu0 0.0
    %2783 = vmatpush1.msra.mxu0 0.0
    %2784 = vmatprep.subr.mxu0 0.0
    %2785 = vmatpush1.msra.mxu0 0.0
    %2786 = vmatprep.subr.mxu0 0.0
    %2787 = vmatpush1.msra.mxu0 0.0
    %2788 = vmatprep.subr.mxu0 0.0
    %2789 = vmatpush1.msra.mxu0 0.0
    %2790 = vmatprep.subr.mxu0 0.0
    %2791 = vmatpush1.msra.mxu0 0.0
    %2792 = vmatprep.subr.mxu0 0.0
    %2793 = vmatpush1.msra.mxu0 0.0
    %2794 = vmatprep.subr.mxu0 0.0
    %2795 = vmatpush1.msra.mxu0 0.0
    %2796 = vmatprep.subr.mxu0 0.0
    %2797 = vmatpush1.msra.mxu0 0.0
    %2798 = vmatprep.subr.mxu0 0.0
    %2799 = vmatpush1.msra.mxu0 0.0
    %2800 = vmatprep.subr.mxu0 0.0
    %2801 = vmatpush1.msra.mxu0 0.0
    %2802 = vmatprep.subr.mxu0 0.0
    %2803 = vmatpush1.msra.mxu0 0.0
    %2804 = vmatprep.subr.mxu0 0.0
    %2805 = vmatpush1.msra.mxu0 0.0
    %2806 = vmatprep.subr.mxu0 0.0
    %2807 = vmatpush1.msra.mxu0 0.0
    %2808 = vmatprep.subr.mxu0 0.0
    %2809 = vmatpush1.msra.mxu0 0.0
    %2810 = vmatprep.subr.mxu0 0.0
    %2811 = vmatpush1.msra.mxu0 0.0
    %2812 = vmatprep.subr.mxu0 0.0
    %2813 = vmatpush1.msra.mxu0 0.0
    %2814 = vmatprep.subr.mxu0 0.0
    %2815 = vmatpush1.msra.mxu0 0.0
    %2816 = vmatprep.subr.mxu0 0.0
    %2817 = vmatpush1.msra.mxu0 0.0
    %2818 = vmatprep.subr.mxu0 0.0
    %2819 = vmatpush1.msra.mxu0 0.0
    %2820 = vmatprep.subr.mxu0 0.0
    %2821 = vmatpush1.msra.mxu0 0.0
    %2822 = vmatprep.subr.mxu0 0.0
    %2823 = vmatpush1.msra.mxu0 0.0
    %2824 = vmatprep.subr.mxu0 0.0
    %2825 = vmatpush1.msra.mxu0 0.0
    %2826 = vmatprep.subr.mxu0 0.0
    %2827 = vmatpush1.msra.mxu0 0.0
    %2828 = vmatprep.subr.mxu0 0.0
    %2829 = vmatpush1.msra.mxu0 0.0
    %2830 = vmatprep.subr.mxu0 0.0
    %2831 = vmatpush1.msra.mxu0 0.0
    %2832 = vmatprep.mubr.f32.mxu0 0.0
    %2833 = vmatmul.mubr.f32.gmra.mrb[0].mxu0 %v2766
    %v2834 = vpop.f32.mrb[0].mxu0
    %v2835 = vadd.f32 %v2762, %v2834
    %v2836 = vpop.f32.mrb[0].mxu0
    %2837 = vdwg.mxu0
    %v2838 = vld [vmem:[%s7] sm:$0x1]
    %v2839 = vadd.f32 %v2835, %v2838
    %v2840 = vxor.u32 %v2839, 2147483648
    %v2841 = vmul.f32 %v2840, 1.442695
    %v2842 = vpow.pop %v2841
    %v2843 = vadd.f32 %v2842, 1.0
    %v2844 = vrcp.pop %v2843
    %v2845 = vmul.f32 1.0, %v2844
    %v2846 = vtanh.pop %v2839
    %v2847 = vmul.f32 %v2845, %v2493
    %2849 = vrot.lane.b32.xlu0 %v2846, 64
    %v2850 = vpop.permute.xlu0 %2849
    %v2852 = vmul.f32 %v2845, %v2850
    %2854 = vrot.lane.b32.xlu0 %v2852, 32
    %v2855 = vpop.permute.xlu0 %2854
    %v2857 = vadd.f32 %v2847, %v2855
    %v2858 = vtanh.pop %v2857
    %2860 = vrot.lane.b32.xlu0 %v2858, 64
    %v2861 = vpop.permute.xlu0 %2860
    %v2863 = vmul.f32 %v2845, %v2861
    %v2864 = vld [vmem:[#allocation9] sm:$0xff]
    %v2865 = vld [vmem:[#allocation9 + $0x8] sm:$0xff]
    %v2866 = vld [vmem:[#allocation9 + $0x10] sm:$0xff]
    %v2867 = vld [vmem:[#allocation9 + $0x18] sm:$0xff]
    %v2868 = vld [vmem:[#allocation11] sm:$0xff]
    %v2869 = vld [vmem:[#allocation11 + $0x8] sm:$0xff]
    %v2870 = vld [vmem:[#allocation11 + $0x10] sm:$0xff]
    %v2871 = vld [vmem:[#allocation11 + $0x18] sm:$0xff]
    %v2872 = vsel %vm133, %v2683, 0
    %2874 = vmatprep.subr.mxu0 0.0
    %2875 = vmatpush1.msra.mxu0 %v2868
    %2876 = vmatprep.subr.mxu0 0.0
    %2877 = vmatpush1.msra.mxu0 %v2869
    %2878 = vmatprep.subr.mxu0 0.0
    %2879 = vmatpush1.msra.mxu0 %v2870
    %2880 = vmatprep.subr.mxu0 0.0
    %2881 = vmatpush1.msra.mxu0 %v2871
    %2882 = vmatprep.subr.mxu0 0.0
    %2883 = vmatpush1.msra.mxu0 0.0
    %2884 = vmatprep.subr.mxu0 0.0
    %2885 = vmatpush1.msra.mxu0 0.0
    %2886 = vmatprep.subr.mxu0 0.0
    %2887 = vmatpush1.msra.mxu0 0.0
    %2888 = vmatprep.subr.mxu0 0.0
    %2889 = vmatpush1.msra.mxu0 0.0
    %2890 = vmatprep.subr.mxu0 0.0
    %2891 = vmatpush1.msra.mxu0 0.0
    %2892 = vmatprep.subr.mxu0 0.0
    %2893 = vmatpush1.msra.mxu0 0.0
    %2894 = vmatprep.subr.mxu0 0.0
    %2895 = vmatpush1.msra.mxu0 0.0
    %2896 = vmatprep.subr.mxu0 0.0
    %2897 = vmatpush1.msra.mxu0 0.0
    %2898 = vmatprep.subr.mxu0 0.0
    %2899 = vmatpush1.msra.mxu0 0.0
    %2900 = vmatprep.subr.mxu0 0.0
    %2901 = vmatpush1.msra.mxu0 0.0
    %2902 = vmatprep.subr.mxu0 0.0
    %2903 = vmatpush1.msra.mxu0 0.0
    %2904 = vmatprep.subr.mxu0 0.0
    %2905 = vmatpush1.msra.mxu0 0.0
    %2906 = vmatprep.subr.mxu0 0.0
    %2907 = vmatpush1.msra.mxu0 0.0
    %2908 = vmatprep.subr.mxu0 0.0
    %2909 = vmatpush1.msra.mxu0 0.0
    %2910 = vmatprep.subr.mxu0 0.0
    %2911 = vmatpush1.msra.mxu0 0.0
    %2912 = vmatprep.subr.mxu0 0.0
    %2913 = vmatpush1.msra.mxu0 0.0
    %2914 = vmatprep.subr.mxu0 0.0
    %2915 = vmatpush1.msra.mxu0 0.0
    %2916 = vmatprep.subr.mxu0 0.0
    %2917 = vmatpush1.msra.mxu0 0.0
    %2918 = vmatprep.subr.mxu0 0.0
    %2919 = vmatpush1.msra.mxu0 0.0
    %2920 = vmatprep.subr.mxu0 0.0
    %2921 = vmatpush1.msra.mxu0 0.0
    %2922 = vmatprep.subr.mxu0 0.0
    %2923 = vmatpush1.msra.mxu0 0.0
    %2924 = vmatprep.subr.mxu0 0.0
    %2925 = vmatpush1.msra.mxu0 0.0
    %2926 = vmatprep.subr.mxu0 0.0
    %2927 = vmatpush1.msra.mxu0 0.0
    %2928 = vmatprep.subr.mxu0 0.0
    %2929 = vmatpush1.msra.mxu0 0.0
    %2930 = vmatprep.subr.mxu0 0.0
    %2931 = vmatpush1.msra.mxu0 0.0
    %2932 = vmatprep.subr.mxu0 0.0
    %2933 = vmatpush1.msra.mxu0 0.0
    %2934 = vmatprep.subr.mxu0 0.0
    %2935 = vmatpush1.msra.mxu0 0.0
    %2936 = vmatprep.subr.mxu0 0.0
    %2937 = vmatpush1.msra.mxu0 0.0
    %2938 = vmatprep.mubr.f32.mxu0 0.0
    %2939 = vmatmul.mubr.f32.gmra.mrb[0].mxu0 %v2872
    %v2940 = vpop.f32.mrb[0].mxu0
    %v2941 = vadd.f32 0.0, %v2940
    %v2942 = vpop.f32.mrb[0].mxu0
    %2943 = vdwg.mxu0
    %2945 = vrot.lane.b32.xlu0 %v2863, 32
    %v2946 = vpop.permute.xlu0 %2945
    %v2947 = vsel %vm133, %v2946, 0
    %2949 = vmatprep.subr.mxu0 0.0
    %2950 = vmatpush1.msra.mxu0 %v2864
    %2951 = vmatprep.subr.mxu0 0.0
    %2952 = vmatpush1.msra.mxu0 %v2865
    %2953 = vmatprep.subr.mxu0 0.0
    %2954 = vmatpush1.msra.mxu0 %v2866
    %2955 = vmatprep.subr.mxu0 0.0
    %2956 = vmatpush1.msra.mxu0 %v2867
    %2957 = vmatprep.subr.mxu0 0.0
    %2958 = vmatpush1.msra.mxu0 0.0
    %2959 = vmatprep.subr.mxu0 0.0
    %2960 = vmatpush1.msra.mxu0 0.0
    %2961 = vmatprep.subr.mxu0 0.0
    %2962 = vmatpush1.msra.mxu0 0.0
    %2963 = vmatprep.subr.mxu0 0.0
    %2964 = vmatpush1.msra.mxu0 0.0
    %2965 = vmatprep.subr.mxu0 0.0
    %2966 = vmatpush1.msra.mxu0 0.0
    %2967 = vmatprep.subr.mxu0 0.0
    %2968 = vmatpush1.msra.mxu0 0.0
    %2969 = vmatprep.subr.mxu0 0.0
    %2970 = vmatpush1.msra.mxu0 0.0
    %2971 = vmatprep.subr.mxu0 0.0
    %2972 = vmatpush1.msra.mxu0 0.0
    %2973 = vmatprep.subr.mxu0 0.0
    %2974 = vmatpush1.msra.mxu0 0.0
    %2975 = vmatprep.subr.mxu0 0.0
    %2976 = vmatpush1.msra.mxu0 0.0
    %2977 = vmatprep.subr.mxu0 0.0
    %2978 = vmatpush1.msra.mxu0 0.0
    %2979 = vmatprep.subr.mxu0 0.0
    %2980 = vmatpush1.msra.mxu0 0.0
    %2981 = vmatprep.subr.mxu0 0.0
    %2982 = vmatpush1.msra.mxu0 0.0
    %2983 = vmatprep.subr.mxu0 0.0
    %2984 = vmatpush1.msra.mxu0 0.0
    %2985 = vmatprep.subr.mxu0 0.0
    %2986 = vmatpush1.msra.mxu0 0.0
    %2987 = vmatprep.subr.mxu0 0.0
    %2988 = vmatpush1.msra.mxu0 0.0
    %2989 = vmatprep.subr.mxu0 0.0
    %2990 = vmatpush1.msra.mxu0 0.0
    %2991 = vmatprep.subr.mxu0 0.0
    %2992 = vmatpush1.msra.mxu0 0.0
    %2993 = vmatprep.subr.mxu0 0.0
    %2994 = vmatpush1.msra.mxu0 0.0
    %2995 = vmatprep.subr.mxu0 0.0
    %2996 = vmatpush1.msra.mxu0 0.0
    %2997 = vmatprep.subr.mxu0 0.0
    %2998 = vmatpush1.msra.mxu0 0.0
    %2999 = vmatprep.subr.mxu0 0.0
    %3000 = vmatpush1.msra.mxu0 0.0
    %3001 = vmatprep.subr.mxu0 0.0
    %3002 = vmatpush1.msra.mxu0 0.0
    %3003 = vmatprep.subr.mxu0 0.0
    %3004 = vmatpush1.msra.mxu0 0.0
    %3005 = vmatprep.subr.mxu0 0.0
    %3006 = vmatpush1.msra.mxu0 0.0
    %3007 = vmatprep.subr.mxu0 0.0
    %3008 = vmatpush1.msra.mxu0 0.0
    %3009 = vmatprep.subr.mxu0 0.0
    %3010 = vmatpush1.msra.mxu0 0.0
    %3011 = vmatprep.subr.mxu0 0.0
    %3012 = vmatpush1.msra.mxu0 0.0
    %3013 = vmatprep.mubr.f32.mxu0 0.0
    %3014 = vmatmul.mubr.f32.gmra.mrb[0].mxu0 %v2947
    %v3015 = vpop.f32.mrb[0].mxu0
    %v3016 = vadd.f32 %v2941, %v3015
    %v3017 = vpop.f32.mrb[0].mxu0
    %3018 = vdwg.mxu0
    %v3019 = vld [vmem:[%s7 + $0x1] sm:$0x1]
    %v3020 = vadd.f32 %v3016, %v3019
    %v3021 = vxor.u32 %v3020, 2147483648
    %v3022 = vmul.f32 %v3021, 1.442695
    %v3023 = vpow.pop %v3022
    %v3024 = vadd.f32 %v3023, 1.0
    %v3025 = vrcp.pop %v3024
    %v3026 = vmul.f32 1.0, %v3025
    %v3027 = vtanh.pop %v3020
    %v3028 = vmul.f32 %v3026, %v2674
    %3030 = vrot.lane.b32.xlu0 %v3027, 64
    %v3031 = vpop.permute.xlu0 %3030
    %v3033 = vmul.f32 %v3026, %v3031
    %3035 = vrot.lane.b32.xlu0 %v3033, 32
    %v3036 = vpop.permute.xlu0 %3035
    %v3038 = vadd.f32 %v3028, %v3036
    %v3039 = vtanh.pop %v3038
    %3041 = vrot.lane.b32.xlu0 %v3039, 64
    %v3042 = vpop.permute.xlu0 %3041
    %v3044 = vmul.f32 %v3026, %v3042
    %3046 = vrot.lane.b32.xlu0 %v3044, 32
    %v3047 = vpop.permute.xlu0 %3046
    %3049 = vst.msk [vmem:[#allocation2 + $0x7] sm:$0x1] %vm500, %v3047
    %v3050 = vld [vmem:[#allocation2] sm:$0xff]
    %v3051 = vld [vmem:[#allocation12] sm:$0xff]
    %v3052 = vld [vmem:[#allocation12 + $0x8] sm:$0xff]
    %v3053 = vld [vmem:[#allocation12 + $0x10] sm:$0xff]
    %v3054 = vld [vmem:[#allocation12 + $0x18] sm:$0xff]
    %v3055 = vld [vmem:[%s9] sm:$0x1]
    %v3057 = vlaneseq
    %v3058 = vshrl.u32 %v3057, 7
    %v3059 = vsub.s32 0, %v3058
    %v3060 = vrot.slane %v3055, %v3059
    %v3063 = vsel %vm133, %v3050, 0
    %3065 = vmatprep.subr.mxu0 0.0
    %3066 = vmatpush1.msra.mxu0 %v3051
    %3067 = vmatprep.subr.mxu0 0.0
    %3068 = vmatpush1.msra.mxu0 %v3052
    %3069 = vmatprep.subr.mxu0 0.0
    %3070 = vmatpush1.msra.mxu0 %v3053
    %3071 = vmatprep.subr.mxu0 0.0
    %3072 = vmatpush1.msra.mxu0 %v3054
    %3073 = vmatprep.subr.mxu0 0.0
    %3074 = vmatpush1.msra.mxu0 0.0
    %3075 = vmatprep.subr.mxu0 0.0
    %3076 = vmatpush1.msra.mxu0 0.0
    %3077 = vmatprep.subr.mxu0 0.0
    %3078 = vmatpush1.msra.mxu0 0.0
    %3079 = vmatprep.subr.mxu0 0.0
    %3080 = vmatpush1.msra.mxu0 0.0
    %3081 = vmatprep.subr.mxu0 0.0
    %3082 = vmatpush1.msra.mxu0 0.0
    %3083 = vmatprep.subr.mxu0 0.0
    %3084 = vmatpush1.msra.mxu0 0.0
    %3085 = vmatprep.subr.mxu0 0.0
    %3086 = vmatpush1.msra.mxu0 0.0
    %3087 = vmatprep.subr.mxu0 0.0
    %3088 = vmatpush1.msra.mxu0 0.0
    %3089 = vmatprep.subr.mxu0 0.0
    %3090 = vmatpush1.msra.mxu0 0.0
    %3091 = vmatprep.subr.mxu0 0.0
    %3092 = vmatpush1.msra.mxu0 0.0
    %3093 = vmatprep.subr.mxu0 0.0
    %3094 = vmatpush1.msra.mxu0 0.0
    %3095 = vmatprep.subr.mxu0 0.0
    %3096 = vmatpush1.msra.mxu0 0.0
    %3097 = vmatprep.subr.mxu0 0.0
    %3098 = vmatpush1.msra.mxu0 0.0
    %3099 = vmatprep.subr.mxu0 0.0
    %3100 = vmatpush1.msra.mxu0 0.0
    %3101 = vmatprep.subr.mxu0 0.0
    %3102 = vmatpush1.msra.mxu0 0.0
    %3103 = vmatprep.subr.mxu0 0.0
    %3104 = vmatpush1.msra.mxu0 0.0
    %3105 = vmatprep.subr.mxu0 0.0
    %3106 = vmatpush1.msra.mxu0 0.0
    %3107 = vmatprep.subr.mxu0 0.0
    %3108 = vmatpush1.msra.mxu0 0.0
    %3109 = vmatprep.subr.mxu0 0.0
    %3110 = vmatpush1.msra.mxu0 0.0
    %3111 = vmatprep.subr.mxu0 0.0
    %3112 = vmatpush1.msra.mxu0 0.0
    %3113 = vmatprep.subr.mxu0 0.0
    %3114 = vmatpush1.msra.mxu0 0.0
    %3115 = vmatprep.subr.mxu0 0.0
    %3116 = vmatpush1.msra.mxu0 0.0
    %3117 = vmatprep.subr.mxu0 0.0
    %3118 = vmatpush1.msra.mxu0 0.0
    %3119 = vmatprep.subr.mxu0 0.0
    %3120 = vmatpush1.msra.mxu0 0.0
    %3121 = vmatprep.subr.mxu0 0.0
    %3122 = vmatpush1.msra.mxu0 0.0
    %3123 = vmatprep.subr.mxu0 0.0
    %3124 = vmatpush1.msra.mxu0 0.0
    %3125 = vmatprep.subr.mxu0 0.0
    %3126 = vmatpush1.msra.mxu0 0.0
    %3127 = vmatprep.subr.mxu0 0.0
    %3128 = vmatpush1.msra.mxu0 0.0
    %3129 = vmatprep.mubr.f32.mxu0 0.0
    %3130 = vmatmul.mubr.f32.gmra.mrb[0].mxu0 %v3063
    %v3131 = vpop.f32.mrb[0].mxu0
    %v3132 = vadd.f32 %v3060, %v3131
    %v3133 = vpop.f32.mrb[0].mxu0
    %3134 = vdwg.mxu0
    %3135 = vst.msk [vmem:[#allocation14] sm:$0xff] %vm133, %v3132
    %v3136 = vrot.slane %v3044, 7
    %vm3138 = vcmask 1040384
    %v3139 = vsel %vm3138, %v2863, %v3136
    %3141 = vrot.lane.b32.xlu0 %v3139, 32
    %v3142 = vpop.permute.xlu0 %3141
    %vm3144 = vcmask 254976
    %3145 = vst.msk [vmem:[#allocation15] sm:$0x3] %vm3144, %v3142
    %v3147 = vrot.slane %v3038, 7
    %v3149 = vsel %vm3138, %v2857, %v3147
    %3151 = vrot.lane.b32.xlu0 %v3149, 96
    %v3152 = vpop.permute.xlu0 %3151
    %3154 = vst.msk [vmem:[#allocation17] sm:$0x3] %vm3144, %v3152
    // Predicated region
    $region66: #{tpu_custom_call.1} parent=1 // pred_check
      _
    $region67: #{tpu_custom_call.1} parent=1 // pred_check_branch
      %3156 = sbr.rel (0) target = $region69
    $region68: #{tpu_custom_call.1} parent=1 // pred_region
      %s3158 = ssub.s32 128, 128
      %3159 = vsyncadd [#allocation5], %s3158
      %s3161 = sshll.u32 [#allocation14], 4
      %s3162 = int_to_ptr.vmem [resolvable:$true] %s3161
      %3164 = dma.vmem_to_hbm [thread:$0]  %s3162, 128, %s10, [#allocation5]
    $region69: #{tpu_custom_call.1} parent=1 // pred_fallthru
      _
    // Predicated region
    $region70: #{tpu_custom_call.1} parent=1 // pred_check
      _
    $region71: #{tpu_custom_call.1} parent=1 // pred_check_branch
      %3166 = sbr.rel (0) target = $region73
    $region72: #{tpu_custom_call.1} parent=1 // pred_region
      %s3168 = ssub.s32 32, 32
      %3169 = vsyncadd [#allocation16], %s3168
      %s3171 = sshll.u32 [#allocation15], 4
      %s3172 = int_to_ptr.vmem [resolvable:$true] %s3171
      %3174 = dma.vmem_to_hbm [thread:$0]  %s3172, 32, %s11, [#allocation16]
    $region73: #{tpu_custom_call.1} parent=1 // pred_fallthru
      _
    // Predicated region
    $region74: #{tpu_custom_call.1} parent=1 // pred_check
      _
    $region75: #{tpu_custom_call.1} parent=1 // pred_check_branch
      %3176 = sbr.rel (0) target = $region77
    $region76: #{tpu_custom_call.1} parent=1 // pred_region
      %s3178 = ssub.s32 32, 32
      %3179 = vsyncadd [#allocation16], %s3178
      %s3181 = sshll.u32 [#allocation17], 4
      %s3182 = int_to_ptr.vmem [resolvable:$true] %s3181
      %3184 = dma.vmem_to_hbm [thread:$0]  %s3182, 32, %s12, [#allocation16]
    $region77: #{tpu_custom_call.1} parent=1 // pred_fallthru
      _
    // Predicated region
    $region78: #{tpu_custom_call.1} parent=1 // pred_check
      _
    $region79: #{tpu_custom_call.1} parent=1 // pred_check_branch
      %3186 = sbr.rel (0) target = $region81
    $region80: #{tpu_custom_call.1} parent=1 // pred_region
      %3187 = dma.done [#allocation5], 128
    $region81: #{tpu_custom_call.1} parent=1 // pred_fallthru
      _
    // Predicated region
    $region82: #{tpu_custom_call.1} parent=1 // pred_check
      _
    $region83: #{tpu_custom_call.1} parent=1 // pred_check_branch
      %3189 = sbr.rel (0) target = $region85
    $region84: #{tpu_custom_call.1} parent=1 // pred_region
      %3190 = dma.done [#allocation16], 32
    $region85: #{tpu_custom_call.1} parent=1 // pred_fallthru
      _
    // Predicated region
    $region86: #{tpu_custom_call.1} parent=1 // pred_check
      _
    $region87: #{tpu_custom_call.1} parent=1 // pred_check_branch
      %3192 = sbr.rel (0) target = $region89
    $region88: #{tpu_custom_call.1} parent=1 // pred_region
      %3193 = dma.done [#allocation16], 32
    $region89: #{tpu_custom_call.1} parent=1 // pred_fallthru
      _
    %3194 = vsyncpa [#allocation4], 1
    %3195 = vsyncpa [#allocation7], 1
    %3196 = vsyncpa [#allocation10], 1
    %3197 = vsyncpa [#allocation13], 1
    %3198 = vsyncpa [#allocation5], 1
    %3199 = vsyncpa [#allocation16], 1

</llo_original>
